<compile_context>
chip_gen: v7x
topology: tpu7x:2x2x1
jax: 0.10.0
libtpu: 0.0.40
codegen_flags: <defaults>
</compile_context>

<pallas_src>
import jax
import jax.numpy as jnp
from jax.experimental import pallas as pl
from jax.experimental.pallas import tpu as pltpu

FEATURE_SIZE = 1280   # MobileNetV2 / EfficientNetB0-B1 feature size
OUT_FEATURES = 128
BN_EPS = 1e-5


def _head_kernel(feat_ref,    # (TN, C, HW)  backbone features (NCHW, HW flattened)
                 w_ref,       # (C, 128)     Linear.weight.T with BN1 and 1/HW folded in
                 b_ref,       # (1, 128)     bias with BN1 shift folded through W
                 s2_ref,      # (1, 128)     BN2 scale (eval)
                 sh2_ref,     # (1, 128)     BN2 shift (eval)
                 out_ref):    # (TN, 128)
    # AdaptiveAvgPool2d((1,1)) + Flatten: spatial sum (the 1/HW is in w_ref).
    # Dropout(0.5) is identity in eval mode.  BatchNorm1d(C) is folded into w/b.
    s = jnp.sum(feat_ref[...], axis=-1)                               # (TN, C)
    # Linear(C, 128) on the MXU, f32 accumulation.
    y = jnp.dot(s, w_ref[...], preferred_element_type=jnp.float32)    # (TN, 128)
    y = jnp.maximum(y + b_ref[...], 0.0)                              # bias + ReLU
    # BatchNorm1d(128), eval mode, as a fused affine.
    out_ref[...] = (y * s2_ref[...] + sh2_ref[...]).astype(out_ref.dtype)


def _pick_batch_tile(n, c, hw, bytes_per_elem=4, vmem_budget=20 * 1024 * 1024):
    """Batch tile so that the double-buffered feature block (with (8,128) lane
    padding of the HW axis) stays well under the v7x 64 MiB VMEM budget."""
    hw_pad = -(-hw // 128) * 128
    c_pad = -(-c // 8) * 8
    per_row = c_pad * hw_pad * bytes_per_elem
    tn = max(1, vmem_budget // (2 * per_row))
    return int(min(n, tn))


@jax.jit
def backbone_head(feat_nchw, params):
    """feat_nchw: (N, C, H, W) backbone output.  Returns (N, 128)."""
    n, c, h, w = feat_nchw.shape
    hw = h * w
    # Free reshape (contiguous minor-dim merge) — no HBM transpose/copy.
    feat = feat_nchw.reshape(n, c, hw)

    # Fold BN1 (eval, running stats) + 1/HW pooling scale into the Linear
    # weights/bias; fold BN2 (eval) into a scale/shift pair.  Tiny ops.
    s1 = params["bn1_gamma"] * jax.lax.rsqrt(params["bn1_var"] + BN_EPS)      # (1, C)
    w_fold = (s1.reshape(c, 1) * params["lin_w_t"]) * (1.0 / hw)              # (C, 128)
    b_fold = ((params["bn1_beta"] - params["bn1_mean"] * s1)
              @ params["lin_w_t"] + params["lin_b"])                          # (1, 128)
    s2 = params["bn2_gamma"] * jax.lax.rsqrt(params["bn2_var"] + BN_EPS)      # (1, 128)
    sh2 = params["bn2_beta"] - params["bn2_mean"] * s2                        # (1, 128)

    tn = _pick_batch_tile(n, c, hw)
    grid = (pl.cdiv(n, tn),)

    out = pl.pallas_call(
        _head_kernel,
        out_shape=jax.ShapeDtypeStruct((n, OUT_FEATURES), jnp.float32),
        grid_spec=pltpu.PrefetchScalarGridSpec(
            num_scalar_prefetch=0,
            grid=grid,
            in_specs=[
                pl.BlockSpec((tn, c, hw), lambda i: (i, 0, 0)),          # features
                pl.BlockSpec((c, OUT_FEATURES), lambda i: (0, 0)),       # folded W
                pl.BlockSpec((1, OUT_FEATURES), lambda i: (0, 0)),       # folded b
                pl.BlockSpec((1, OUT_FEATURES), lambda i: (0, 0)),       # BN2 scale
                pl.BlockSpec((1, OUT_FEATURES), lambda i: (0, 0)),       # BN2 shift
            ],
            out_specs=pl.BlockSpec((tn, OUT_FEATURES), lambda i: (i, 0)),
        ),
        compiler_params=pltpu.CompilerParams(
            dimension_semantics=("parallel",),          # megacore on v7x
            vmem_limit_bytes=48 * 1024 * 1024,          # > default 32 MiB, < v7x 64 MiB
        ),
    )(feat, w_fold, b_fold, s2, sh2)
    return out


def init_params(key, c=FEATURE_SIZE, out=OUT_FEATURES):
    """Deterministic synthetic parameters (shapes match the PyTorch head)."""
    k_w, k_b, k_m1, k_v1, k_m2, k_v2 = jax.random.split(key, 6)
    # Linear(C, 128): PyTorch weight shape (128, C); we store W.T = (C, 128)
    bound = 1.0 / (c ** 0.5)
    lin_w = jax.random.uniform(k_w, (out, c), jnp.float32, -bound, bound)
    lin_b = jax.random.uniform(k_b, (1, out), jnp.float32, -bound, bound)
    return {
        # BatchNorm1d(C) — affine + running stats (synthetic but deterministic)
        "bn1_gamma": jnp.ones((1, c), jnp.float32),
        "bn1_beta":  jnp.zeros((1, c), jnp.float32),
        "bn1_mean":  0.1 * jax.random.normal(k_m1, (1, c), jnp.float32),
        "bn1_var":   jnp.abs(jax.random.normal(k_v1, (1, c), jnp.float32)) + 1.0,
        "lin_w_t":   lin_w.T,            # (C, 128)
        "lin_b":     lin_b,              # (1, 128)
        # BatchNorm1d(128)
        "bn2_gamma": jnp.ones((1, out), jnp.float32),
        "bn2_beta":  jnp.zeros((1, out), jnp.float32),
        "bn2_mean":  0.1 * jax.random.normal(k_m2, (1, out), jnp.float32),
        "bn2_var":   jnp.abs(jax.random.normal(k_v2, (1, out), jnp.float32)) + 1.0,
    }


def reference_head(feat_nchw, p):
    """Pure-JAX reference of the same eval-mode forward (unfolded math)."""
    pooled = jnp.mean(feat_nchw, axis=(2, 3))                      # (N, C)
    xn = (pooled - p["bn1_mean"]) / jnp.sqrt(p["bn1_var"] + BN_EPS)
    xn = xn * p["bn1_gamma"] + p["bn1_beta"]
    y = xn @ p["lin_w_t"] + p["lin_b"]
    y = jnp.maximum(y, 0.0)
    y = (y - p["bn2_mean"]) / jnp.sqrt(p["bn2_var"] + BN_EPS)
    return y * p["bn2_gamma"] + p["bn2_beta"]


if __name__ == "__main__":
    key = jax.random.PRNGKey(0)
    k_feat, k_par = jax.random.split(key)

    # Small backbone feature map consistent with MobileNetV2 features:
    # batch=2, channels=1280, spatial 4x4 (NCHW, as PyTorch would produce).
    feat = jax.random.normal(k_feat, (2, FEATURE_SIZE, 4, 4), jnp.float32)
    params = init_params(k_par)

    out = jax.block_until_ready(backbone_head(feat, params))
    assert out.shape == (2, OUT_FEATURES), out.shape

    ref = reference_head(feat, params)
    assert jnp.allclose(out, ref, atol=2e-4, rtol=1e-4), \
        float(jnp.max(jnp.abs(out - ref)))

    print("KERNEL_OK")
</pallas_src>

<mosaic_0001>
module attributes {stable_mosaic.version = 11 : i64} {
  func.func @_head_kernel(%arg0: i32, %arg1: memref<2x1280x16xf32, #tpu.memory_space<vmem>>, %arg2: memref<1280x128xf32, #tpu.memory_space<vmem>>, %arg3: memref<1x128xf32, #tpu.memory_space<vmem>>, %arg4: memref<1x128xf32, #tpu.memory_space<vmem>>, %arg5: memref<1x128xf32, #tpu.memory_space<vmem>>, %arg6: memref<2x128xf32, #tpu.memory_space<vmem>>) attributes {dimension_semantics = [#tpu.dimension_semantics<parallel>], iteration_bounds = array<i64: 1>, scalar_prefetch = 0 : i64, scratch_operands = 0 : i64, tpu.core_type = #tpu.core_type<tc>, window_params = [{transform_indices = @transform_0, window_bounds = array<i64: 2, 1280, 16>}, {pipeline_mode = #tpu.pipeline_mode<synchronous>, transform_indices = @transform_1, window_bounds = array<i64: 1280, 128>}, {pipeline_mode = #tpu.pipeline_mode<synchronous>, transform_indices = @transform_2, window_bounds = array<i64: 1, 128>}, {pipeline_mode = #tpu.pipeline_mode<synchronous>, transform_indices = @transform_3, window_bounds = array<i64: 1, 128>}, {pipeline_mode = #tpu.pipeline_mode<synchronous>, transform_indices = @transform_4, window_bounds = array<i64: 1, 128>}, {transform_indices = @transform_5, window_bounds = array<i64: 2, 128>}]} {
    %c0 = arith.constant 0 : index
    %c0_0 = arith.constant 0 : index
    %c0_1 = arith.constant 0 : index
    %0 = vector.load %arg1[%c0, %c0_0, %c0_1] : memref<2x1280x16xf32, #tpu.memory_space<vmem>>, vector<2x1280x16xf32>
    %cst = arith.constant dense<0.000000e+00> : vector<2x1280xf32>
    %1 = vector.multi_reduction <add>, %0, %cst [2] : vector<2x1280x16xf32> to vector<2x1280xf32>
    %c0_2 = arith.constant 0 : index
    %c0_3 = arith.constant 0 : index
    %2 = vector.load %arg2[%c0_2, %c0_3] : memref<1280x128xf32, #tpu.memory_space<vmem>>, vector<1280x128xf32>
    %cst_4 = arith.constant dense<0.000000e+00> : vector<2x128xf32>
    %3 = tpu.matmul %1, %2, %cst_4 {dimension_numbers = #tpu.dot_dimension_numbers<[1], [0], [0], [1], [0, 0, 1, 1], [], []>} : vector<2x1280xf32>, vector<1280x128xf32>, vector<2x128xf32> -> vector<2x128xf32>
    %c0_5 = arith.constant 0 : index
    %c0_6 = arith.constant 0 : index
    %4 = vector.load %arg3[%c0_5, %c0_6] : memref<1x128xf32, #tpu.memory_space<vmem>>, vector<1x128xf32>
    %5 = vector.broadcast %4 : vector<1x128xf32> to vector<2x128xf32>
    %6 = arith.addf %3, %5 : vector<2x128xf32>
    %cst_7 = arith.constant 0.000000e+00 : f32
    %7 = vector.broadcast %cst_7 : f32 to vector<2x128xf32>
    %8 = arith.maximumf %6, %7 : vector<2x128xf32>
    %c0_8 = arith.constant 0 : index
    %c0_9 = arith.constant 0 : index
    %9 = vector.load %arg4[%c0_8, %c0_9] : memref<1x128xf32, #tpu.memory_space<vmem>>, vector<1x128xf32>
    %10 = vector.broadcast %9 : vector<1x128xf32> to vector<2x128xf32>
    %11 = arith.mulf %8, %10 : vector<2x128xf32>
    %c0_10 = arith.constant 0 : index
    %c0_11 = arith.constant 0 : index
    %12 = vector.load %arg5[%c0_10, %c0_11] : memref<1x128xf32, #tpu.memory_space<vmem>>, vector<1x128xf32>
    %13 = vector.broadcast %12 : vector<1x128xf32> to vector<2x128xf32>
    %14 = arith.addf %11, %13 : vector<2x128xf32>
    %c0_12 = arith.constant 0 : index
    %c0_13 = arith.constant 0 : index
    %15 = vector.load %arg6[%c0_12, %c0_13] : memref<2x128xf32, #tpu.memory_space<vmem>>, vector<2x128xf32>
    tpu.vector_store %arg6[%c0_12, %c0_13], %14 {strides = array<i32>} : memref<2x128xf32, #tpu.memory_space<vmem>>, vector<2x128xf32>,
    return
  }
  func.func @transform_0(%arg0: i32) -> (i32, i32, i32) {
    %c0_i32 = arith.constant 0 : i32
    %c0_i32_0 = arith.constant 0 : i32
    %c0_i32_1 = arith.constant 0 : i32
    return %arg0, %c0_i32, %c0_i32_0 : i32, i32, i32
  }
  func.func @transform_1(%arg0: i32) -> (i32, i32) {
    %c0_i32 = arith.constant 0 : i32
    %c0_i32_0 = arith.constant 0 : i32
    %c0_i32_1 = arith.constant 0 : i32
    return %c0_i32, %c0_i32_0 : i32, i32
  }
  func.func @transform_2(%arg0: i32) -> (i32, i32) {
    %c0_i32 = arith.constant 0 : i32
    %c0_i32_0 = arith.constant 0 : i32
    %c0_i32_1 = arith.constant 0 : i32
    return %c0_i32, %c0_i32_0 : i32, i32
  }
  func.func @transform_3(%arg0: i32) -> (i32, i32) {
    %c0_i32 = arith.constant 0 : i32
    %c0_i32_0 = arith.constant 0 : i32
    %c0_i32_1 = arith.constant 0 : i32
    return %c0_i32, %c0_i32_0 : i32, i32
  }
  func.func @transform_4(%arg0: i32) -> (i32, i32) {
    %c0_i32 = arith.constant 0 : i32
    %c0_i32_0 = arith.constant 0 : i32
    %c0_i32_1 = arith.constant 0 : i32
    return %c0_i32, %c0_i32_0 : i32, i32
  }
  func.func @transform_5(%arg0: i32) -> (i32, i32) {
    %c0_i32 = arith.constant 0 : i32
    %c0_i32_0 = arith.constant 0 : i32
    return %arg0, %c0_i32 : i32, i32
  }
}

</mosaic_0001>

<llo_original>
// kernel: backbone_head.1
$region0: #{backbone_head.1}
  #allocation0 [shape = 'u32[]', space=smem, size = 0x4, offset = 0x4, fixed_abs, tag = 'smem constant byte address 0x4 - core index']
  #allocation1 [shape = 'u32[144,128]{1,0:T(1,128)}', space=vmem, size = 0x12000, scoped, tag = 'internal scratch']
  %s0 = inlined_call_operand.vmem [shape: f32[2,1280,16], index: 0, kind: input, shape index: {}]
  %s1 = inlined_call_operand.vmem [shape: f32[1280,128], index: 1, kind: input, shape index: {}]
  %s2 = inlined_call_operand.vmem [shape: f32[1,128], index: 2, kind: input, shape index: {}]
  %s3 = inlined_call_operand.vmem [shape: f32[1,128], index: 3, kind: input, shape index: {}]
  %s4 = inlined_call_operand.vmem [shape: f32[1,128], index: 4, kind: input, shape index: {}]
  %s5 = inlined_call_operand.hbm [shape: f32[2,128], index: 5, kind: output, shape index: {}]
  %s6 = sld [smem:[#allocation0]]
  $region30: #{backbone_head.1} parent=0
    _
  %s8 = ssub.s32 1, %s6
  %s9 = scalar_select 0, %s8, %s6
  $region1: #{backbone_head.1} parent=0
    #allocation2 [shape = 'u8[1024]{0}', space=vmem, size = 0x400, scoped, tag = 'output window, operand 0, single buffered']
    #allocation3 [shape = 's32[1]{0}', space=sflag, size = 0x4, scoped, tag = 'scoped memory for backbone_head.1']
    %10 = vsyncpa [#allocation3], 0
    // Predicated region
    $region2: #{backbone_head.1} parent=1 // pred_check
      _
    $region3: #{backbone_head.1} parent=1 // pred_check_branch
      %12 = sbr.rel (0) target = $region5
    $region4: #{backbone_head.1} parent=1 // pred_region
      _
    $region5: #{backbone_head.1} parent=1 // pred_fallthru
      _
    // Predicated region
    $region6: #{backbone_head.1} parent=1 // pred_check
      _
    $region7: #{backbone_head.1} parent=1 // pred_check_branch
      %14 = sbr.rel (0) target = $region9
    $region8: #{backbone_head.1} parent=1 // pred_region
      _
    $region9: #{backbone_head.1} parent=1 // pred_fallthru
      _
    // Predicated region
    $region10: #{backbone_head.1} parent=1 // pred_check
      _
    $region11: #{backbone_head.1} parent=1 // pred_check_branch
      %16 = sbr.rel (0) target = $region13
    $region12: #{backbone_head.1} parent=1 // pred_region
      _
    $region13: #{backbone_head.1} parent=1 // pred_fallthru
      _
    // Predicated region
    $region14: #{backbone_head.1} parent=1 // pred_check
      _
    $region15: #{backbone_head.1} parent=1 // pred_check_branch
      %18 = sbr.rel (0) target = $region17
    $region16: #{backbone_head.1} parent=1 // pred_region
      _
    $region17: #{backbone_head.1} parent=1 // pred_fallthru
      _
    // Predicated region
    $region18: #{backbone_head.1} parent=1 // pred_check
      _
    $region19: #{backbone_head.1} parent=1 // pred_check_branch
      %20 = sbr.rel (0) target = $region21
    $region20: #{backbone_head.1} parent=1 // pred_region
      _
    $region21: #{backbone_head.1} parent=1 // pred_fallthru
      _
    %v21 = vld [vmem:[%s0] sm:$0xff]
    %v22 = vld [vmem:[%s0 + $0x8] sm:$0xff]
    %v23 = vld [vmem:[%s0 + $0x10] sm:$0xff]
    %v24 = vld [vmem:[%s0 + $0x18] sm:$0xff]
    %v25 = vld [vmem:[%s0 + $0x20] sm:$0xff]
    %v26 = vld [vmem:[%s0 + $0x28] sm:$0xff]
    %v27 = vld [vmem:[%s0 + $0x30] sm:$0xff]
    %v28 = vld [vmem:[%s0 + $0x38] sm:$0xff]
    %v29 = vld [vmem:[%s0 + $0x40] sm:$0xff]
    %v30 = vld [vmem:[%s0 + $0x48] sm:$0xff]
    %v31 = vld [vmem:[%s0 + $0x50] sm:$0xff]
    %v32 = vld [vmem:[%s0 + $0x58] sm:$0xff]
    %v33 = vld [vmem:[%s0 + $0x60] sm:$0xff]
    %v34 = vld [vmem:[%s0 + $0x68] sm:$0xff]
    %v35 = vld [vmem:[%s0 + $0x70] sm:$0xff]
    %v36 = vld [vmem:[%s0 + $0x78] sm:$0xff]
    %v37 = vld [vmem:[%s0 + $0x80] sm:$0xff]
    %v38 = vld [vmem:[%s0 + $0x88] sm:$0xff]
    %v39 = vld [vmem:[%s0 + $0x90] sm:$0xff]
    %v40 = vld [vmem:[%s0 + $0x98] sm:$0xff]
    %v41 = vld [vmem:[%s0 + $0xa0] sm:$0xff]
    %v42 = vld [vmem:[%s0 + $0xa8] sm:$0xff]
    %v43 = vld [vmem:[%s0 + $0xb0] sm:$0xff]
    %v44 = vld [vmem:[%s0 + $0xb8] sm:$0xff]
    %v45 = vld [vmem:[%s0 + $0xc0] sm:$0xff]
    %v46 = vld [vmem:[%s0 + $0xc8] sm:$0xff]
    %v47 = vld [vmem:[%s0 + $0xd0] sm:$0xff]
    %v48 = vld [vmem:[%s0 + $0xd8] sm:$0xff]
    %v49 = vld [vmem:[%s0 + $0xe0] sm:$0xff]
    %v50 = vld [vmem:[%s0 + $0xe8] sm:$0xff]
    %v51 = vld [vmem:[%s0 + $0xf0] sm:$0xff]
    %v52 = vld [vmem:[%s0 + $0xf8] sm:$0xff]
    %v53 = vld [vmem:[%s0 + $0x100] sm:$0xff]
    %v54 = vld [vmem:[%s0 + $0x108] sm:$0xff]
    %v55 = vld [vmem:[%s0 + $0x110] sm:$0xff]
    %v56 = vld [vmem:[%s0 + $0x118] sm:$0xff]
    %v57 = vld [vmem:[%s0 + $0x120] sm:$0xff]
    %v58 = vld [vmem:[%s0 + $0x128] sm:$0xff]
    %v59 = vld [vmem:[%s0 + $0x130] sm:$0xff]
    %v60 = vld [vmem:[%s0 + $0x138] sm:$0xff]
    %v61 = vld [vmem:[%s0 + $0x140] sm:$0xff]
    %v62 = vld [vmem:[%s0 + $0x148] sm:$0xff]
    %v63 = vld [vmem:[%s0 + $0x150] sm:$0xff]
    %v64 = vld [vmem:[%s0 + $0x158] sm:$0xff]
    %v65 = vld [vmem:[%s0 + $0x160] sm:$0xff]
    %v66 = vld [vmem:[%s0 + $0x168] sm:$0xff]
    %v67 = vld [vmem:[%s0 + $0x170] sm:$0xff]
    %v68 = vld [vmem:[%s0 + $0x178] sm:$0xff]
    %v69 = vld [vmem:[%s0 + $0x180] sm:$0xff]
    %v70 = vld [vmem:[%s0 + $0x188] sm:$0xff]
    %v71 = vld [vmem:[%s0 + $0x190] sm:$0xff]
    %v72 = vld [vmem:[%s0 + $0x198] sm:$0xff]
    %v73 = vld [vmem:[%s0 + $0x1a0] sm:$0xff]
    %v74 = vld [vmem:[%s0 + $0x1a8] sm:$0xff]
    %v75 = vld [vmem:[%s0 + $0x1b0] sm:$0xff]
    %v76 = vld [vmem:[%s0 + $0x1b8] sm:$0xff]
    %v77 = vld [vmem:[%s0 + $0x1c0] sm:$0xff]
    %v78 = vld [vmem:[%s0 + $0x1c8] sm:$0xff]
    %v79 = vld [vmem:[%s0 + $0x1d0] sm:$0xff]
    %v80 = vld [vmem:[%s0 + $0x1d8] sm:$0xff]
    %v81 = vld [vmem:[%s0 + $0x1e0] sm:$0xff]
    %v82 = vld [vmem:[%s0 + $0x1e8] sm:$0xff]
    %v83 = vld [vmem:[%s0 + $0x1f0] sm:$0xff]
    %v84 = vld [vmem:[%s0 + $0x1f8] sm:$0xff]
    %v85 = vld [vmem:[%s0 + $0x200] sm:$0xff]
    %v86 = vld [vmem:[%s0 + $0x208] sm:$0xff]
    %v87 = vld [vmem:[%s0 + $0x210] sm:$0xff]
    %v88 = vld [vmem:[%s0 + $0x218] sm:$0xff]
    %v89 = vld [vmem:[%s0 + $0x220] sm:$0xff]
    %v90 = vld [vmem:[%s0 + $0x228] sm:$0xff]
    %v91 = vld [vmem:[%s0 + $0x230] sm:$0xff]
    %v92 = vld [vmem:[%s0 + $0x238] sm:$0xff]
    %v93 = vld [vmem:[%s0 + $0x240] sm:$0xff]
    %v94 = vld [vmem:[%s0 + $0x248] sm:$0xff]
    %v95 = vld [vmem:[%s0 + $0x250] sm:$0xff]
    %v96 = vld [vmem:[%s0 + $0x258] sm:$0xff]
    %v97 = vld [vmem:[%s0 + $0x260] sm:$0xff]
    %v98 = vld [vmem:[%s0 + $0x268] sm:$0xff]
    %v99 = vld [vmem:[%s0 + $0x270] sm:$0xff]
    %v100 = vld [vmem:[%s0 + $0x278] sm:$0xff]
    %v101 = vld [vmem:[%s0 + $0x280] sm:$0xff]
    %v102 = vld [vmem:[%s0 + $0x288] sm:$0xff]
    %v103 = vld [vmem:[%s0 + $0x290] sm:$0xff]
    %v104 = vld [vmem:[%s0 + $0x298] sm:$0xff]
    %v105 = vld [vmem:[%s0 + $0x2a0] sm:$0xff]
    %v106 = vld [vmem:[%s0 + $0x2a8] sm:$0xff]
    %v107 = vld [vmem:[%s0 + $0x2b0] sm:$0xff]
    %v108 = vld [vmem:[%s0 + $0x2b8] sm:$0xff]
    %v109 = vld [vmem:[%s0 + $0x2c0] sm:$0xff]
    %v110 = vld [vmem:[%s0 + $0x2c8] sm:$0xff]
    %v111 = vld [vmem:[%s0 + $0x2d0] sm:$0xff]
    %v112 = vld [vmem:[%s0 + $0x2d8] sm:$0xff]
    %v113 = vld [vmem:[%s0 + $0x2e0] sm:$0xff]
    %v114 = vld [vmem:[%s0 + $0x2e8] sm:$0xff]
    %v115 = vld [vmem:[%s0 + $0x2f0] sm:$0xff]
    %v116 = vld [vmem:[%s0 + $0x2f8] sm:$0xff]
    %v117 = vld [vmem:[%s0 + $0x300] sm:$0xff]
    %v118 = vld [vmem:[%s0 + $0x308] sm:$0xff]
    %v119 = vld [vmem:[%s0 + $0x310] sm:$0xff]
    %v120 = vld [vmem:[%s0 + $0x318] sm:$0xff]
    %v121 = vld [vmem:[%s0 + $0x320] sm:$0xff]
    %v122 = vld [vmem:[%s0 + $0x328] sm:$0xff]
    %v123 = vld [vmem:[%s0 + $0x330] sm:$0xff]
    %v124 = vld [vmem:[%s0 + $0x338] sm:$0xff]
    %v125 = vld [vmem:[%s0 + $0x340] sm:$0xff]
    %v126 = vld [vmem:[%s0 + $0x348] sm:$0xff]
    %v127 = vld [vmem:[%s0 + $0x350] sm:$0xff]
    %v128 = vld [vmem:[%s0 + $0x358] sm:$0xff]
    %v129 = vld [vmem:[%s0 + $0x360] sm:$0xff]
    %v130 = vld [vmem:[%s0 + $0x368] sm:$0xff]
    %v131 = vld [vmem:[%s0 + $0x370] sm:$0xff]
    %v132 = vld [vmem:[%s0 + $0x378] sm:$0xff]
    %v133 = vld [vmem:[%s0 + $0x380] sm:$0xff]
    %v134 = vld [vmem:[%s0 + $0x388] sm:$0xff]
    %v135 = vld [vmem:[%s0 + $0x390] sm:$0xff]
    %v136 = vld [vmem:[%s0 + $0x398] sm:$0xff]
    %v137 = vld [vmem:[%s0 + $0x3a0] sm:$0xff]
    %v138 = vld [vmem:[%s0 + $0x3a8] sm:$0xff]
    %v139 = vld [vmem:[%s0 + $0x3b0] sm:$0xff]
    %v140 = vld [vmem:[%s0 + $0x3b8] sm:$0xff]
    %v141 = vld [vmem:[%s0 + $0x3c0] sm:$0xff]
    %v142 = vld [vmem:[%s0 + $0x3c8] sm:$0xff]
    %v143 = vld [vmem:[%s0 + $0x3d0] sm:$0xff]
    %v144 = vld [vmem:[%s0 + $0x3d8] sm:$0xff]
    %v145 = vld [vmem:[%s0 + $0x3e0] sm:$0xff]
    %v146 = vld [vmem:[%s0 + $0x3e8] sm:$0xff]
    %v147 = vld [vmem:[%s0 + $0x3f0] sm:$0xff]
    %v148 = vld [vmem:[%s0 + $0x3f8] sm:$0xff]
    %v149 = vld [vmem:[%s0 + $0x400] sm:$0xff]
    %v150 = vld [vmem:[%s0 + $0x408] sm:$0xff]
    %v151 = vld [vmem:[%s0 + $0x410] sm:$0xff]
    %v152 = vld [vmem:[%s0 + $0x418] sm:$0xff]
    %v153 = vld [vmem:[%s0 + $0x420] sm:$0xff]
    %v154 = vld [vmem:[%s0 + $0x428] sm:$0xff]
    %v155 = vld [vmem:[%s0 + $0x430] sm:$0xff]
    %v156 = vld [vmem:[%s0 + $0x438] sm:$0xff]
    %v157 = vld [vmem:[%s0 + $0x440] sm:$0xff]
    %v158 = vld [vmem:[%s0 + $0x448] sm:$0xff]
    %v159 = vld [vmem:[%s0 + $0x450] sm:$0xff]
    %v160 = vld [vmem:[%s0 + $0x458] sm:$0xff]
    %v161 = vld [vmem:[%s0 + $0x460] sm:$0xff]
    %v162 = vld [vmem:[%s0 + $0x468] sm:$0xff]
    %v163 = vld [vmem:[%s0 + $0x470] sm:$0xff]
    %v164 = vld [vmem:[%s0 + $0x478] sm:$0xff]
    %v165 = vld [vmem:[%s0 + $0x480] sm:$0xff]
    %v166 = vld [vmem:[%s0 + $0x488] sm:$0xff]
    %v167 = vld [vmem:[%s0 + $0x490] sm:$0xff]
    %v168 = vld [vmem:[%s0 + $0x498] sm:$0xff]
    %v169 = vld [vmem:[%s0 + $0x4a0] sm:$0xff]
    %v170 = vld [vmem:[%s0 + $0x4a8] sm:$0xff]
    %v171 = vld [vmem:[%s0 + $0x4b0] sm:$0xff]
    %v172 = vld [vmem:[%s0 + $0x4b8] sm:$0xff]
    %v173 = vld [vmem:[%s0 + $0x4c0] sm:$0xff]
    %v174 = vld [vmem:[%s0 + $0x4c8] sm:$0xff]
    %v175 = vld [vmem:[%s0 + $0x4d0] sm:$0xff]
    %v176 = vld [vmem:[%s0 + $0x4d8] sm:$0xff]
    %v177 = vld [vmem:[%s0 + $0x4e0] sm:$0xff]
    %v178 = vld [vmem:[%s0 + $0x4e8] sm:$0xff]
    %v179 = vld [vmem:[%s0 + $0x4f0] sm:$0xff]
    %v180 = vld [vmem:[%s0 + $0x4f8] sm:$0xff]
    %v181 = vld [vmem:[%s0 + $0x500] sm:$0xff]
    %v182 = vld [vmem:[%s0 + $0x508] sm:$0xff]
    %v183 = vld [vmem:[%s0 + $0x510] sm:$0xff]
    %v184 = vld [vmem:[%s0 + $0x518] sm:$0xff]
    %v185 = vld [vmem:[%s0 + $0x520] sm:$0xff]
    %v186 = vld [vmem:[%s0 + $0x528] sm:$0xff]
    %v187 = vld [vmem:[%s0 + $0x530] sm:$0xff]
    %v188 = vld [vmem:[%s0 + $0x538] sm:$0xff]
    %v189 = vld [vmem:[%s0 + $0x540] sm:$0xff]
    %v190 = vld [vmem:[%s0 + $0x548] sm:$0xff]
    %v191 = vld [vmem:[%s0 + $0x550] sm:$0xff]
    %v192 = vld [vmem:[%s0 + $0x558] sm:$0xff]
    %v193 = vld [vmem:[%s0 + $0x560] sm:$0xff]
    %v194 = vld [vmem:[%s0 + $0x568] sm:$0xff]
    %v195 = vld [vmem:[%s0 + $0x570] sm:$0xff]
    %v196 = vld [vmem:[%s0 + $0x578] sm:$0xff]
    %v197 = vld [vmem:[%s0 + $0x580] sm:$0xff]
    %v198 = vld [vmem:[%s0 + $0x588] sm:$0xff]
    %v199 = vld [vmem:[%s0 + $0x590] sm:$0xff]
    %v200 = vld [vmem:[%s0 + $0x598] sm:$0xff]
    %v201 = vld [vmem:[%s0 + $0x5a0] sm:$0xff]
    %v202 = vld [vmem:[%s0 + $0x5a8] sm:$0xff]
    %v203 = vld [vmem:[%s0 + $0x5b0] sm:$0xff]
    %v204 = vld [vmem:[%s0 + $0x5b8] sm:$0xff]
    %v205 = vld [vmem:[%s0 + $0x5c0] sm:$0xff]
    %v206 = vld [vmem:[%s0 + $0x5c8] sm:$0xff]
    %v207 = vld [vmem:[%s0 + $0x5d0] sm:$0xff]
    %v208 = vld [vmem:[%s0 + $0x5d8] sm:$0xff]
    %v209 = vld [vmem:[%s0 + $0x5e0] sm:$0xff]
    %v210 = vld [vmem:[%s0 + $0x5e8] sm:$0xff]
    %v211 = vld [vmem:[%s0 + $0x5f0] sm:$0xff]
    %v212 = vld [vmem:[%s0 + $0x5f8] sm:$0xff]
    %v213 = vld [vmem:[%s0 + $0x600] sm:$0xff]
    %v214 = vld [vmem:[%s0 + $0x608] sm:$0xff]
    %v215 = vld [vmem:[%s0 + $0x610] sm:$0xff]
    %v216 = vld [vmem:[%s0 + $0x618] sm:$0xff]
    %v217 = vld [vmem:[%s0 + $0x620] sm:$0xff]
    %v218 = vld [vmem:[%s0 + $0x628] sm:$0xff]
    %v219 = vld [vmem:[%s0 + $0x630] sm:$0xff]
    %v220 = vld [vmem:[%s0 + $0x638] sm:$0xff]
    %v221 = vld [vmem:[%s0 + $0x640] sm:$0xff]
    %v222 = vld [vmem:[%s0 + $0x648] sm:$0xff]
    %v223 = vld [vmem:[%s0 + $0x650] sm:$0xff]
    %v224 = vld [vmem:[%s0 + $0x658] sm:$0xff]
    %v225 = vld [vmem:[%s0 + $0x660] sm:$0xff]
    %v226 = vld [vmem:[%s0 + $0x668] sm:$0xff]
    %v227 = vld [vmem:[%s0 + $0x670] sm:$0xff]
    %v228 = vld [vmem:[%s0 + $0x678] sm:$0xff]
    %v229 = vld [vmem:[%s0 + $0x680] sm:$0xff]
    %v230 = vld [vmem:[%s0 + $0x688] sm:$0xff]
    %v231 = vld [vmem:[%s0 + $0x690] sm:$0xff]
    %v232 = vld [vmem:[%s0 + $0x698] sm:$0xff]
    %v233 = vld [vmem:[%s0 + $0x6a0] sm:$0xff]
    %v234 = vld [vmem:[%s0 + $0x6a8] sm:$0xff]
    %v235 = vld [vmem:[%s0 + $0x6b0] sm:$0xff]
    %v236 = vld [vmem:[%s0 + $0x6b8] sm:$0xff]
    %v237 = vld [vmem:[%s0 + $0x6c0] sm:$0xff]
    %v238 = vld [vmem:[%s0 + $0x6c8] sm:$0xff]
    %v239 = vld [vmem:[%s0 + $0x6d0] sm:$0xff]
    %v240 = vld [vmem:[%s0 + $0x6d8] sm:$0xff]
    %v241 = vld [vmem:[%s0 + $0x6e0] sm:$0xff]
    %v242 = vld [vmem:[%s0 + $0x6e8] sm:$0xff]
    %v243 = vld [vmem:[%s0 + $0x6f0] sm:$0xff]
    %v244 = vld [vmem:[%s0 + $0x6f8] sm:$0xff]
    %v245 = vld [vmem:[%s0 + $0x700] sm:$0xff]
    %v246 = vld [vmem:[%s0 + $0x708] sm:$0xff]
    %v247 = vld [vmem:[%s0 + $0x710] sm:$0xff]
    %v248 = vld [vmem:[%s0 + $0x718] sm:$0xff]
    %v249 = vld [vmem:[%s0 + $0x720] sm:$0xff]
    %v250 = vld [vmem:[%s0 + $0x728] sm:$0xff]
    %v251 = vld [vmem:[%s0 + $0x730] sm:$0xff]
    %v252 = vld [vmem:[%s0 + $0x738] sm:$0xff]
    %v253 = vld [vmem:[%s0 + $0x740] sm:$0xff]
    %v254 = vld [vmem:[%s0 + $0x748] sm:$0xff]
    %v255 = vld [vmem:[%s0 + $0x750] sm:$0xff]
    %v256 = vld [vmem:[%s0 + $0x758] sm:$0xff]
    %v257 = vld [vmem:[%s0 + $0x760] sm:$0xff]
    %v258 = vld [vmem:[%s0 + $0x768] sm:$0xff]
    %v259 = vld [vmem:[%s0 + $0x770] sm:$0xff]
    %v260 = vld [vmem:[%s0 + $0x778] sm:$0xff]
    %v261 = vld [vmem:[%s0 + $0x780] sm:$0xff]
    %v262 = vld [vmem:[%s0 + $0x788] sm:$0xff]
    %v263 = vld [vmem:[%s0 + $0x790] sm:$0xff]
    %v264 = vld [vmem:[%s0 + $0x798] sm:$0xff]
    %v265 = vld [vmem:[%s0 + $0x7a0] sm:$0xff]
    %v266 = vld [vmem:[%s0 + $0x7a8] sm:$0xff]
    %v267 = vld [vmem:[%s0 + $0x7b0] sm:$0xff]
    %v268 = vld [vmem:[%s0 + $0x7b8] sm:$0xff]
    %v269 = vld [vmem:[%s0 + $0x7c0] sm:$0xff]
    %v270 = vld [vmem:[%s0 + $0x7c8] sm:$0xff]
    %v271 = vld [vmem:[%s0 + $0x7d0] sm:$0xff]
    %v272 = vld [vmem:[%s0 + $0x7d8] sm:$0xff]
    %v273 = vld [vmem:[%s0 + $0x7e0] sm:$0xff]
    %v274 = vld [vmem:[%s0 + $0x7e8] sm:$0xff]
    %v275 = vld [vmem:[%s0 + $0x7f0] sm:$0xff]
    %v276 = vld [vmem:[%s0 + $0x7f8] sm:$0xff]
    %v277 = vld [vmem:[%s0 + $0x800] sm:$0xff]
    %v278 = vld [vmem:[%s0 + $0x808] sm:$0xff]
    %v279 = vld [vmem:[%s0 + $0x810] sm:$0xff]
    %v280 = vld [vmem:[%s0 + $0x818] sm:$0xff]
    %v281 = vld [vmem:[%s0 + $0x820] sm:$0xff]
    %v282 = vld [vmem:[%s0 + $0x828] sm:$0xff]
    %v283 = vld [vmem:[%s0 + $0x830] sm:$0xff]
    %v284 = vld [vmem:[%s0 + $0x838] sm:$0xff]
    %v285 = vld [vmem:[%s0 + $0x840] sm:$0xff]
    %v286 = vld [vmem:[%s0 + $0x848] sm:$0xff]
    %v287 = vld [vmem:[%s0 + $0x850] sm:$0xff]
    %v288 = vld [vmem:[%s0 + $0x858] sm:$0xff]
    %v289 = vld [vmem:[%s0 + $0x860] sm:$0xff]
    %v290 = vld [vmem:[%s0 + $0x868] sm:$0xff]
    %v291 = vld [vmem:[%s0 + $0x870] sm:$0xff]
    %v292 = vld [vmem:[%s0 + $0x878] sm:$0xff]
    %v293 = vld [vmem:[%s0 + $0x880] sm:$0xff]
    %v294 = vld [vmem:[%s0 + $0x888] sm:$0xff]
    %v295 = vld [vmem:[%s0 + $0x890] sm:$0xff]
    %v296 = vld [vmem:[%s0 + $0x898] sm:$0xff]
    %v297 = vld [vmem:[%s0 + $0x8a0] sm:$0xff]
    %v298 = vld [vmem:[%s0 + $0x8a8] sm:$0xff]
    %v299 = vld [vmem:[%s0 + $0x8b0] sm:$0xff]
    %v300 = vld [vmem:[%s0 + $0x8b8] sm:$0xff]
    %v301 = vld [vmem:[%s0 + $0x8c0] sm:$0xff]
    %v302 = vld [vmem:[%s0 + $0x8c8] sm:$0xff]
    %v303 = vld [vmem:[%s0 + $0x8d0] sm:$0xff]
    %v304 = vld [vmem:[%s0 + $0x8d8] sm:$0xff]
    %v305 = vld [vmem:[%s0 + $0x8e0] sm:$0xff]
    %v306 = vld [vmem:[%s0 + $0x8e8] sm:$0xff]
    %v307 = vld [vmem:[%s0 + $0x8f0] sm:$0xff]
    %v308 = vld [vmem:[%s0 + $0x8f8] sm:$0xff]
    %v309 = vld [vmem:[%s0 + $0x900] sm:$0xff]
    %v310 = vld [vmem:[%s0 + $0x908] sm:$0xff]
    %v311 = vld [vmem:[%s0 + $0x910] sm:$0xff]
    %v312 = vld [vmem:[%s0 + $0x918] sm:$0xff]
    %v313 = vld [vmem:[%s0 + $0x920] sm:$0xff]
    %v314 = vld [vmem:[%s0 + $0x928] sm:$0xff]
    %v315 = vld [vmem:[%s0 + $0x930] sm:$0xff]
    %v316 = vld [vmem:[%s0 + $0x938] sm:$0xff]
    %v317 = vld [vmem:[%s0 + $0x940] sm:$0xff]
    %v318 = vld [vmem:[%s0 + $0x948] sm:$0xff]
    %v319 = vld [vmem:[%s0 + $0x950] sm:$0xff]
    %v320 = vld [vmem:[%s0 + $0x958] sm:$0xff]
    %v321 = vld [vmem:[%s0 + $0x960] sm:$0xff]
    %v322 = vld [vmem:[%s0 + $0x968] sm:$0xff]
    %v323 = vld [vmem:[%s0 + $0x970] sm:$0xff]
    %v324 = vld [vmem:[%s0 + $0x978] sm:$0xff]
    %v325 = vld [vmem:[%s0 + $0x980] sm:$0xff]
    %v326 = vld [vmem:[%s0 + $0x988] sm:$0xff]
    %v327 = vld [vmem:[%s0 + $0x990] sm:$0xff]
    %v328 = vld [vmem:[%s0 + $0x998] sm:$0xff]
    %v329 = vld [vmem:[%s0 + $0x9a0] sm:$0xff]
    %v330 = vld [vmem:[%s0 + $0x9a8] sm:$0xff]
    %v331 = vld [vmem:[%s0 + $0x9b0] sm:$0xff]
    %v332 = vld [vmem:[%s0 + $0x9b8] sm:$0xff]
    %v333 = vld [vmem:[%s0 + $0x9c0] sm:$0xff]
    %v334 = vld [vmem:[%s0 + $0x9c8] sm:$0xff]
    %v335 = vld [vmem:[%s0 + $0x9d0] sm:$0xff]
    %v336 = vld [vmem:[%s0 + $0x9d8] sm:$0xff]
    %v337 = vld [vmem:[%s0 + $0x9e0] sm:$0xff]
    %v338 = vld [vmem:[%s0 + $0x9e8] sm:$0xff]
    %v339 = vld [vmem:[%s0 + $0x9f0] sm:$0xff]
    %v340 = vld [vmem:[%s0 + $0x9f8] sm:$0xff]
    %vm341 = vcmask 130048
    %v342 = vsel %vm341, %v21, 0.0
    %343 = vadd.xlane.f32.xlu0 %v342
    %v344 = vpop.xlane.xlu0 %343
    %v345 = vsel %vm341, %v22, 0.0
    %346 = vadd.xlane.f32.xlu0 %v345
    %v347 = vpop.xlane.xlu0 %346
    %v348 = vsel %vm341, %v23, 0.0
    %349 = vadd.xlane.f32.xlu0 %v348
    %v350 = vpop.xlane.xlu0 %349
    %v351 = vsel %vm341, %v24, 0.0
    %352 = vadd.xlane.f32.xlu0 %v351
    %v353 = vpop.xlane.xlu0 %352
    %v354 = vsel %vm341, %v25, 0.0
    %355 = vadd.xlane.f32.xlu0 %v354
    %v356 = vpop.xlane.xlu0 %355
    %v357 = vsel %vm341, %v26, 0.0
    %358 = vadd.xlane.f32.xlu0 %v357
    %v359 = vpop.xlane.xlu0 %358
    %v360 = vsel %vm341, %v27, 0.0
    %361 = vadd.xlane.f32.xlu0 %v360
    %v362 = vpop.xlane.xlu0 %361
    %v363 = vsel %vm341, %v28, 0.0
    %364 = vadd.xlane.f32.xlu0 %v363
    %v365 = vpop.xlane.xlu0 %364
    %v366 = vsel %vm341, %v29, 0.0
    %367 = vadd.xlane.f32.xlu0 %v366
    %v368 = vpop.xlane.xlu0 %367
    %v369 = vsel %vm341, %v30, 0.0
    %370 = vadd.xlane.f32.xlu0 %v369
    %v371 = vpop.xlane.xlu0 %370
    %v372 = vsel %vm341, %v31, 0.0
    %373 = vadd.xlane.f32.xlu0 %v372
    %v374 = vpop.xlane.xlu0 %373
    %v375 = vsel %vm341, %v32, 0.0
    %376 = vadd.xlane.f32.xlu0 %v375
    %v377 = vpop.xlane.xlu0 %376
    %v378 = vsel %vm341, %v33, 0.0
    %379 = vadd.xlane.f32.xlu0 %v378
    %v380 = vpop.xlane.xlu0 %379
    %v381 = vsel %vm341, %v34, 0.0
    %382 = vadd.xlane.f32.xlu0 %v381
    %v383 = vpop.xlane.xlu0 %382
    %v384 = vsel %vm341, %v35, 0.0
    %385 = vadd.xlane.f32.xlu0 %v384
    %v386 = vpop.xlane.xlu0 %385
    %v387 = vsel %vm341, %v36, 0.0
    %388 = vadd.xlane.f32.xlu0 %v387
    %v389 = vpop.xlane.xlu0 %388
    %v390 = vsel %vm341, %v37, 0.0
    %391 = vadd.xlane.f32.xlu0 %v390
    %v392 = vpop.xlane.xlu0 %391
    %v393 = vsel %vm341, %v38, 0.0
    %394 = vadd.xlane.f32.xlu0 %v393
    %v395 = vpop.xlane.xlu0 %394
    %v396 = vsel %vm341, %v39, 0.0
    %397 = vadd.xlane.f32.xlu0 %v396
    %v398 = vpop.xlane.xlu0 %397
    %v399 = vsel %vm341, %v40, 0.0
    %400 = vadd.xlane.f32.xlu0 %v399
    %v401 = vpop.xlane.xlu0 %400
    %v402 = vsel %vm341, %v41, 0.0
    %403 = vadd.xlane.f32.xlu0 %v402
    %v404 = vpop.xlane.xlu0 %403
    %v405 = vsel %vm341, %v42, 0.0
    %406 = vadd.xlane.f32.xlu0 %v405
    %v407 = vpop.xlane.xlu0 %406
    %v408 = vsel %vm341, %v43, 0.0
    %409 = vadd.xlane.f32.xlu0 %v408
    %v410 = vpop.xlane.xlu0 %409
    %v411 = vsel %vm341, %v44, 0.0
    %412 = vadd.xlane.f32.xlu0 %v411
    %v413 = vpop.xlane.xlu0 %412
    %v414 = vsel %vm341, %v45, 0.0
    %415 = vadd.xlane.f32.xlu0 %v414
    %v416 = vpop.xlane.xlu0 %415
    %v417 = vsel %vm341, %v46, 0.0
    %418 = vadd.xlane.f32.xlu0 %v417
    %v419 = vpop.xlane.xlu0 %418
    %v420 = vsel %vm341, %v47, 0.0
    %421 = vadd.xlane.f32.xlu0 %v420
    %v422 = vpop.xlane.xlu0 %421
    %v423 = vsel %vm341, %v48, 0.0
    %424 = vadd.xlane.f32.xlu0 %v423
    %v425 = vpop.xlane.xlu0 %424
    %v426 = vsel %vm341, %v49, 0.0
    %427 = vadd.xlane.f32.xlu0 %v426
    %v428 = vpop.xlane.xlu0 %427
    %v429 = vsel %vm341, %v50, 0.0
    %430 = vadd.xlane.f32.xlu0 %v429
    %v431 = vpop.xlane.xlu0 %430
    %v432 = vsel %vm341, %v51, 0.0
    %433 = vadd.xlane.f32.xlu0 %v432
    %v434 = vpop.xlane.xlu0 %433
    %v435 = vsel %vm341, %v52, 0.0
    %436 = vadd.xlane.f32.xlu0 %v435
    %v437 = vpop.xlane.xlu0 %436
    %v438 = vsel %vm341, %v53, 0.0
    %439 = vadd.xlane.f32.xlu0 %v438
    %v440 = vpop.xlane.xlu0 %439
    %v441 = vsel %vm341, %v54, 0.0
    %442 = vadd.xlane.f32.xlu0 %v441
    %v443 = vpop.xlane.xlu0 %442
    %v444 = vsel %vm341, %v55, 0.0
    %445 = vadd.xlane.f32.xlu0 %v444
    %v446 = vpop.xlane.xlu0 %445
    %v447 = vsel %vm341, %v56, 0.0
    %448 = vadd.xlane.f32.xlu0 %v447
    %v449 = vpop.xlane.xlu0 %448
    %v450 = vsel %vm341, %v57, 0.0
    %451 = vadd.xlane.f32.xlu0 %v450
    %v452 = vpop.xlane.xlu0 %451
    %v453 = vsel %vm341, %v58, 0.0
    %454 = vadd.xlane.f32.xlu0 %v453
    %v455 = vpop.xlane.xlu0 %454
    %v456 = vsel %vm341, %v59, 0.0
    %457 = vadd.xlane.f32.xlu0 %v456
    %v458 = vpop.xlane.xlu0 %457
    %v459 = vsel %vm341, %v60, 0.0
    %460 = vadd.xlane.f32.xlu0 %v459
    %v461 = vpop.xlane.xlu0 %460
    %v462 = vsel %vm341, %v61, 0.0
    %463 = vadd.xlane.f32.xlu0 %v462
    %v464 = vpop.xlane.xlu0 %463
    %v465 = vsel %vm341, %v62, 0.0
    %466 = vadd.xlane.f32.xlu0 %v465
    %v467 = vpop.xlane.xlu0 %466
    %v468 = vsel %vm341, %v63, 0.0
    %469 = vadd.xlane.f32.xlu0 %v468
    %v470 = vpop.xlane.xlu0 %469
    %v471 = vsel %vm341, %v64, 0.0
    %472 = vadd.xlane.f32.xlu0 %v471
    %v473 = vpop.xlane.xlu0 %472
    %v474 = vsel %vm341, %v65, 0.0
    %475 = vadd.xlane.f32.xlu0 %v474
    %v476 = vpop.xlane.xlu0 %475
    %v477 = vsel %vm341, %v66, 0.0
    %478 = vadd.xlane.f32.xlu0 %v477
    %v479 = vpop.xlane.xlu0 %478
    %v480 = vsel %vm341, %v67, 0.0
    %481 = vadd.xlane.f32.xlu0 %v480
    %v482 = vpop.xlane.xlu0 %481
    %v483 = vsel %vm341, %v68, 0.0
    %484 = vadd.xlane.f32.xlu0 %v483
    %v485 = vpop.xlane.xlu0 %484
    %v486 = vsel %vm341, %v69, 0.0
    %487 = vadd.xlane.f32.xlu0 %v486
    %v488 = vpop.xlane.xlu0 %487
    %v489 = vsel %vm341, %v70, 0.0
    %490 = vadd.xlane.f32.xlu0 %v489
    %v491 = vpop.xlane.xlu0 %490
    %v492 = vsel %vm341, %v71, 0.0
    %493 = vadd.xlane.f32.xlu0 %v492
    %v494 = vpop.xlane.xlu0 %493
    %v495 = vsel %vm341, %v72, 0.0
    %496 = vadd.xlane.f32.xlu0 %v495
    %v497 = vpop.xlane.xlu0 %496
    %v498 = vsel %vm341, %v73, 0.0
    %499 = vadd.xlane.f32.xlu0 %v498
    %v500 = vpop.xlane.xlu0 %499
    %v501 = vsel %vm341, %v74, 0.0
    %502 = vadd.xlane.f32.xlu0 %v501
    %v503 = vpop.xlane.xlu0 %502
    %v504 = vsel %vm341, %v75, 0.0
    %505 = vadd.xlane.f32.xlu0 %v504
    %v506 = vpop.xlane.xlu0 %505
    %v507 = vsel %vm341, %v76, 0.0
    %508 = vadd.xlane.f32.xlu0 %v507
    %v509 = vpop.xlane.xlu0 %508
    %v510 = vsel %vm341, %v77, 0.0
    %511 = vadd.xlane.f32.xlu0 %v510
    %v512 = vpop.xlane.xlu0 %511
    %v513 = vsel %vm341, %v78, 0.0
    %514 = vadd.xlane.f32.xlu0 %v513
    %v515 = vpop.xlane.xlu0 %514
    %v516 = vsel %vm341, %v79, 0.0
    %517 = vadd.xlane.f32.xlu0 %v516
    %v518 = vpop.xlane.xlu0 %517
    %v519 = vsel %vm341, %v80, 0.0
    %520 = vadd.xlane.f32.xlu0 %v519
    %v521 = vpop.xlane.xlu0 %520
    %v522 = vsel %vm341, %v81, 0.0
    %523 = vadd.xlane.f32.xlu0 %v522
    %v524 = vpop.xlane.xlu0 %523
    %v525 = vsel %vm341, %v82, 0.0
    %526 = vadd.xlane.f32.xlu0 %v525
    %v527 = vpop.xlane.xlu0 %526
    %v528 = vsel %vm341, %v83, 0.0
    %529 = vadd.xlane.f32.xlu0 %v528
    %v530 = vpop.xlane.xlu0 %529
    %v531 = vsel %vm341, %v84, 0.0
    %532 = vadd.xlane.f32.xlu0 %v531
    %v533 = vpop.xlane.xlu0 %532
    %v534 = vsel %vm341, %v85, 0.0
    %535 = vadd.xlane.f32.xlu0 %v534
    %v536 = vpop.xlane.xlu0 %535
    %v537 = vsel %vm341, %v86, 0.0
    %538 = vadd.xlane.f32.xlu0 %v537
    %v539 = vpop.xlane.xlu0 %538
    %v540 = vsel %vm341, %v87, 0.0
    %541 = vadd.xlane.f32.xlu0 %v540
    %v542 = vpop.xlane.xlu0 %541
    %v543 = vsel %vm341, %v88, 0.0
    %544 = vadd.xlane.f32.xlu0 %v543
    %v545 = vpop.xlane.xlu0 %544
    %v546 = vsel %vm341, %v89, 0.0
    %547 = vadd.xlane.f32.xlu0 %v546
    %v548 = vpop.xlane.xlu0 %547
    %v549 = vsel %vm341, %v90, 0.0
    %550 = vadd.xlane.f32.xlu0 %v549
    %v551 = vpop.xlane.xlu0 %550
    %v552 = vsel %vm341, %v91, 0.0
    %553 = vadd.xlane.f32.xlu0 %v552
    %v554 = vpop.xlane.xlu0 %553
    %v555 = vsel %vm341, %v92, 0.0
    %556 = vadd.xlane.f32.xlu0 %v555
    %v557 = vpop.xlane.xlu0 %556
    %v558 = vsel %vm341, %v93, 0.0
    %559 = vadd.xlane.f32.xlu0 %v558
    %v560 = vpop.xlane.xlu0 %559
    %v561 = vsel %vm341, %v94, 0.0
    %562 = vadd.xlane.f32.xlu0 %v561
    %v563 = vpop.xlane.xlu0 %562
    %v564 = vsel %vm341, %v95, 0.0
    %565 = vadd.xlane.f32.xlu0 %v564
    %v566 = vpop.xlane.xlu0 %565
    %v567 = vsel %vm341, %v96, 0.0
    %568 = vadd.xlane.f32.xlu0 %v567
    %v569 = vpop.xlane.xlu0 %568
    %v570 = vsel %vm341, %v97, 0.0
    %571 = vadd.xlane.f32.xlu0 %v570
    %v572 = vpop.xlane.xlu0 %571
    %v573 = vsel %vm341, %v98, 0.0
    %574 = vadd.xlane.f32.xlu0 %v573
    %v575 = vpop.xlane.xlu0 %574
    %v576 = vsel %vm341, %v99, 0.0
    %577 = vadd.xlane.f32.xlu0 %v576
    %v578 = vpop.xlane.xlu0 %577
    %v579 = vsel %vm341, %v100, 0.0
    %580 = vadd.xlane.f32.xlu0 %v579
    %v581 = vpop.xlane.xlu0 %580
    %v582 = vsel %vm341, %v101, 0.0
    %583 = vadd.xlane.f32.xlu0 %v582
    %v584 = vpop.xlane.xlu0 %583
    %v585 = vsel %vm341, %v102, 0.0
    %586 = vadd.xlane.f32.xlu0 %v585
    %v587 = vpop.xlane.xlu0 %586
    %v588 = vsel %vm341, %v103, 0.0
    %589 = vadd.xlane.f32.xlu0 %v588
    %v590 = vpop.xlane.xlu0 %589
    %v591 = vsel %vm341, %v104, 0.0
    %592 = vadd.xlane.f32.xlu0 %v591
    %v593 = vpop.xlane.xlu0 %592
    %v594 = vsel %vm341, %v105, 0.0
    %595 = vadd.xlane.f32.xlu0 %v594
    %v596 = vpop.xlane.xlu0 %595
    %v597 = vsel %vm341, %v106, 0.0
    %598 = vadd.xlane.f32.xlu0 %v597
    %v599 = vpop.xlane.xlu0 %598
    %v600 = vsel %vm341, %v107, 0.0
    %601 = vadd.xlane.f32.xlu0 %v600
    %v602 = vpop.xlane.xlu0 %601
    %v603 = vsel %vm341, %v108, 0.0
    %604 = vadd.xlane.f32.xlu0 %v603
    %v605 = vpop.xlane.xlu0 %604
    %v606 = vsel %vm341, %v109, 0.0
    %607 = vadd.xlane.f32.xlu0 %v606
    %v608 = vpop.xlane.xlu0 %607
    %v609 = vsel %vm341, %v110, 0.0
    %610 = vadd.xlane.f32.xlu0 %v609
    %v611 = vpop.xlane.xlu0 %610
    %v612 = vsel %vm341, %v111, 0.0
    %613 = vadd.xlane.f32.xlu0 %v612
    %v614 = vpop.xlane.xlu0 %613
    %v615 = vsel %vm341, %v112, 0.0
    %616 = vadd.xlane.f32.xlu0 %v615
    %v617 = vpop.xlane.xlu0 %616
    %v618 = vsel %vm341, %v113, 0.0
    %619 = vadd.xlane.f32.xlu0 %v618
    %v620 = vpop.xlane.xlu0 %619
    %v621 = vsel %vm341, %v114, 0.0
    %622 = vadd.xlane.f32.xlu0 %v621
    %v623 = vpop.xlane.xlu0 %622
    %v624 = vsel %vm341, %v115, 0.0
    %625 = vadd.xlane.f32.xlu0 %v624
    %v626 = vpop.xlane.xlu0 %625
    %v627 = vsel %vm341, %v116, 0.0
    %628 = vadd.xlane.f32.xlu0 %v627
    %v629 = vpop.xlane.xlu0 %628
    %v630 = vsel %vm341, %v117, 0.0
    %631 = vadd.xlane.f32.xlu0 %v630
    %v632 = vpop.xlane.xlu0 %631
    %v633 = vsel %vm341, %v118, 0.0
    %634 = vadd.xlane.f32.xlu0 %v633
    %v635 = vpop.xlane.xlu0 %634
    %v636 = vsel %vm341, %v119, 0.0
    %637 = vadd.xlane.f32.xlu0 %v636
    %v638 = vpop.xlane.xlu0 %637
    %v639 = vsel %vm341, %v120, 0.0
    %640 = vadd.xlane.f32.xlu0 %v639
    %v641 = vpop.xlane.xlu0 %640
    %v642 = vsel %vm341, %v121, 0.0
    %643 = vadd.xlane.f32.xlu0 %v642
    %v644 = vpop.xlane.xlu0 %643
    %v645 = vsel %vm341, %v122, 0.0
    %646 = vadd.xlane.f32.xlu0 %v645
    %v647 = vpop.xlane.xlu0 %646
    %v648 = vsel %vm341, %v123, 0.0
    %649 = vadd.xlane.f32.xlu0 %v648
    %v650 = vpop.xlane.xlu0 %649
    %v651 = vsel %vm341, %v124, 0.0
    %652 = vadd.xlane.f32.xlu0 %v651
    %v653 = vpop.xlane.xlu0 %652
    %v654 = vsel %vm341, %v125, 0.0
    %655 = vadd.xlane.f32.xlu0 %v654
    %v656 = vpop.xlane.xlu0 %655
    %v657 = vsel %vm341, %v126, 0.0
    %658 = vadd.xlane.f32.xlu0 %v657
    %v659 = vpop.xlane.xlu0 %658
    %v660 = vsel %vm341, %v127, 0.0
    %661 = vadd.xlane.f32.xlu0 %v660
    %v662 = vpop.xlane.xlu0 %661
    %v663 = vsel %vm341, %v128, 0.0
    %664 = vadd.xlane.f32.xlu0 %v663
    %v665 = vpop.xlane.xlu0 %664
    %v666 = vsel %vm341, %v129, 0.0
    %667 = vadd.xlane.f32.xlu0 %v666
    %v668 = vpop.xlane.xlu0 %667
    %v669 = vsel %vm341, %v130, 0.0
    %670 = vadd.xlane.f32.xlu0 %v669
    %v671 = vpop.xlane.xlu0 %670
    %v672 = vsel %vm341, %v131, 0.0
    %673 = vadd.xlane.f32.xlu0 %v672
    %v674 = vpop.xlane.xlu0 %673
    %v675 = vsel %vm341, %v132, 0.0
    %676 = vadd.xlane.f32.xlu0 %v675
    %v677 = vpop.xlane.xlu0 %676
    %v678 = vsel %vm341, %v133, 0.0
    %679 = vadd.xlane.f32.xlu0 %v678
    %v680 = vpop.xlane.xlu0 %679
    %v681 = vsel %vm341, %v134, 0.0
    %682 = vadd.xlane.f32.xlu0 %v681
    %v683 = vpop.xlane.xlu0 %682
    %v684 = vsel %vm341, %v135, 0.0
    %685 = vadd.xlane.f32.xlu0 %v684
    %v686 = vpop.xlane.xlu0 %685
    %v687 = vsel %vm341, %v136, 0.0
    %688 = vadd.xlane.f32.xlu0 %v687
    %v689 = vpop.xlane.xlu0 %688
    %v690 = vsel %vm341, %v137, 0.0
    %691 = vadd.xlane.f32.xlu0 %v690
    %v692 = vpop.xlane.xlu0 %691
    %v693 = vsel %vm341, %v138, 0.0
    %694 = vadd.xlane.f32.xlu0 %v693
    %v695 = vpop.xlane.xlu0 %694
    %v696 = vsel %vm341, %v139, 0.0
    %697 = vadd.xlane.f32.xlu0 %v696
    %v698 = vpop.xlane.xlu0 %697
    %v699 = vsel %vm341, %v140, 0.0
    %700 = vadd.xlane.f32.xlu0 %v699
    %v701 = vpop.xlane.xlu0 %700
    %v702 = vsel %vm341, %v141, 0.0
    %703 = vadd.xlane.f32.xlu0 %v702
    %v704 = vpop.xlane.xlu0 %703
    %v705 = vsel %vm341, %v142, 0.0
    %706 = vadd.xlane.f32.xlu0 %v705
    %v707 = vpop.xlane.xlu0 %706
    %v708 = vsel %vm341, %v143, 0.0
    %709 = vadd.xlane.f32.xlu0 %v708
    %v710 = vpop.xlane.xlu0 %709
    %v711 = vsel %vm341, %v144, 0.0
    %712 = vadd.xlane.f32.xlu0 %v711
    %v713 = vpop.xlane.xlu0 %712
    %v714 = vsel %vm341, %v145, 0.0
    %715 = vadd.xlane.f32.xlu0 %v714
    %v716 = vpop.xlane.xlu0 %715
    %v717 = vsel %vm341, %v146, 0.0
    %718 = vadd.xlane.f32.xlu0 %v717
    %v719 = vpop.xlane.xlu0 %718
    %v720 = vsel %vm341, %v147, 0.0
    %721 = vadd.xlane.f32.xlu0 %v720
    %v722 = vpop.xlane.xlu0 %721
    %v723 = vsel %vm341, %v148, 0.0
    %724 = vadd.xlane.f32.xlu0 %v723
    %v725 = vpop.xlane.xlu0 %724
    %v726 = vsel %vm341, %v149, 0.0
    %727 = vadd.xlane.f32.xlu0 %v726
    %v728 = vpop.xlane.xlu0 %727
    %v729 = vsel %vm341, %v150, 0.0
    %730 = vadd.xlane.f32.xlu0 %v729
    %v731 = vpop.xlane.xlu0 %730
    %v732 = vsel %vm341, %v151, 0.0
    %733 = vadd.xlane.f32.xlu0 %v732
    %v734 = vpop.xlane.xlu0 %733
    %v735 = vsel %vm341, %v152, 0.0
    %736 = vadd.xlane.f32.xlu0 %v735
    %v737 = vpop.xlane.xlu0 %736
    %v738 = vsel %vm341, %v153, 0.0
    %739 = vadd.xlane.f32.xlu0 %v738
    %v740 = vpop.xlane.xlu0 %739
    %v741 = vsel %vm341, %v154, 0.0
    %742 = vadd.xlane.f32.xlu0 %v741
    %v743 = vpop.xlane.xlu0 %742
    %v744 = vsel %vm341, %v155, 0.0
    %745 = vadd.xlane.f32.xlu0 %v744
    %v746 = vpop.xlane.xlu0 %745
    %v747 = vsel %vm341, %v156, 0.0
    %748 = vadd.xlane.f32.xlu0 %v747
    %v749 = vpop.xlane.xlu0 %748
    %v750 = vsel %vm341, %v157, 0.0
    %751 = vadd.xlane.f32.xlu0 %v750
    %v752 = vpop.xlane.xlu0 %751
    %v753 = vsel %vm341, %v158, 0.0
    %754 = vadd.xlane.f32.xlu0 %v753
    %v755 = vpop.xlane.xlu0 %754
    %v756 = vsel %vm341, %v159, 0.0
    %757 = vadd.xlane.f32.xlu0 %v756
    %v758 = vpop.xlane.xlu0 %757
    %v759 = vsel %vm341, %v160, 0.0
    %760 = vadd.xlane.f32.xlu0 %v759
    %v761 = vpop.xlane.xlu0 %760
    %v762 = vsel %vm341, %v161, 0.0
    %763 = vadd.xlane.f32.xlu0 %v762
    %v764 = vpop.xlane.xlu0 %763
    %v765 = vsel %vm341, %v162, 0.0
    %766 = vadd.xlane.f32.xlu0 %v765
    %v767 = vpop.xlane.xlu0 %766
    %v768 = vsel %vm341, %v163, 0.0
    %769 = vadd.xlane.f32.xlu0 %v768
    %v770 = vpop.xlane.xlu0 %769
    %v771 = vsel %vm341, %v164, 0.0
    %772 = vadd.xlane.f32.xlu0 %v771
    %v773 = vpop.xlane.xlu0 %772
    %v774 = vsel %vm341, %v165, 0.0
    %775 = vadd.xlane.f32.xlu0 %v774
    %v776 = vpop.xlane.xlu0 %775
    %v777 = vsel %vm341, %v166, 0.0
    %778 = vadd.xlane.f32.xlu0 %v777
    %v779 = vpop.xlane.xlu0 %778
    %v780 = vsel %vm341, %v167, 0.0
    %781 = vadd.xlane.f32.xlu0 %v780
    %v782 = vpop.xlane.xlu0 %781
    %v783 = vsel %vm341, %v168, 0.0
    %784 = vadd.xlane.f32.xlu0 %v783
    %v785 = vpop.xlane.xlu0 %784
    %v786 = vsel %vm341, %v169, 0.0
    %787 = vadd.xlane.f32.xlu0 %v786
    %v788 = vpop.xlane.xlu0 %787
    %v789 = vsel %vm341, %v170, 0.0
    %790 = vadd.xlane.f32.xlu0 %v789
    %v791 = vpop.xlane.xlu0 %790
    %v792 = vsel %vm341, %v171, 0.0
    %793 = vadd.xlane.f32.xlu0 %v792
    %v794 = vpop.xlane.xlu0 %793
    %v795 = vsel %vm341, %v172, 0.0
    %796 = vadd.xlane.f32.xlu0 %v795
    %v797 = vpop.xlane.xlu0 %796
    %v798 = vsel %vm341, %v173, 0.0
    %799 = vadd.xlane.f32.xlu0 %v798
    %v800 = vpop.xlane.xlu0 %799
    %v801 = vsel %vm341, %v174, 0.0
    %802 = vadd.xlane.f32.xlu0 %v801
    %v803 = vpop.xlane.xlu0 %802
    %v804 = vsel %vm341, %v175, 0.0
    %805 = vadd.xlane.f32.xlu0 %v804
    %v806 = vpop.xlane.xlu0 %805
    %v807 = vsel %vm341, %v176, 0.0
    %808 = vadd.xlane.f32.xlu0 %v807
    %v809 = vpop.xlane.xlu0 %808
    %v810 = vsel %vm341, %v177, 0.0
    %811 = vadd.xlane.f32.xlu0 %v810
    %v812 = vpop.xlane.xlu0 %811
    %v813 = vsel %vm341, %v178, 0.0
    %814 = vadd.xlane.f32.xlu0 %v813
    %v815 = vpop.xlane.xlu0 %814
    %v816 = vsel %vm341, %v179, 0.0
    %817 = vadd.xlane.f32.xlu0 %v816
    %v818 = vpop.xlane.xlu0 %817
    %v819 = vsel %vm341, %v180, 0.0
    %820 = vadd.xlane.f32.xlu0 %v819
    %v821 = vpop.xlane.xlu0 %820
    %v822 = vsel %vm341, %v181, 0.0
    %823 = vadd.xlane.f32.xlu0 %v822
    %v824 = vpop.xlane.xlu0 %823
    %v825 = vsel %vm341, %v182, 0.0
    %826 = vadd.xlane.f32.xlu0 %v825
    %v827 = vpop.xlane.xlu0 %826
    %v828 = vsel %vm341, %v183, 0.0
    %829 = vadd.xlane.f32.xlu0 %v828
    %v830 = vpop.xlane.xlu0 %829
    %v831 = vsel %vm341, %v184, 0.0
    %832 = vadd.xlane.f32.xlu0 %v831
    %v833 = vpop.xlane.xlu0 %832
    %v834 = vsel %vm341, %v185, 0.0
    %835 = vadd.xlane.f32.xlu0 %v834
    %v836 = vpop.xlane.xlu0 %835
    %v837 = vsel %vm341, %v186, 0.0
    %838 = vadd.xlane.f32.xlu0 %v837
    %v839 = vpop.xlane.xlu0 %838
    %v840 = vsel %vm341, %v187, 0.0
    %841 = vadd.xlane.f32.xlu0 %v840
    %v842 = vpop.xlane.xlu0 %841
    %v843 = vsel %vm341, %v188, 0.0
    %844 = vadd.xlane.f32.xlu0 %v843
    %v845 = vpop.xlane.xlu0 %844
    %v846 = vsel %vm341, %v189, 0.0
    %847 = vadd.xlane.f32.xlu0 %v846
    %v848 = vpop.xlane.xlu0 %847
    %v849 = vsel %vm341, %v190, 0.0
    %850 = vadd.xlane.f32.xlu0 %v849
    %v851 = vpop.xlane.xlu0 %850
    %v852 = vsel %vm341, %v191, 0.0
    %853 = vadd.xlane.f32.xlu0 %v852
    %v854 = vpop.xlane.xlu0 %853
    %v855 = vsel %vm341, %v192, 0.0
    %856 = vadd.xlane.f32.xlu0 %v855
    %v857 = vpop.xlane.xlu0 %856
    %v858 = vsel %vm341, %v193, 0.0
    %859 = vadd.xlane.f32.xlu0 %v858
    %v860 = vpop.xlane.xlu0 %859
    %v861 = vsel %vm341, %v194, 0.0
    %862 = vadd.xlane.f32.xlu0 %v861
    %v863 = vpop.xlane.xlu0 %862
    %v864 = vsel %vm341, %v195, 0.0
    %865 = vadd.xlane.f32.xlu0 %v864
    %v866 = vpop.xlane.xlu0 %865
    %v867 = vsel %vm341, %v196, 0.0
    %868 = vadd.xlane.f32.xlu0 %v867
    %v869 = vpop.xlane.xlu0 %868
    %v870 = vsel %vm341, %v197, 0.0
    %871 = vadd.xlane.f32.xlu0 %v870
    %v872 = vpop.xlane.xlu0 %871
    %v873 = vsel %vm341, %v198, 0.0
    %874 = vadd.xlane.f32.xlu0 %v873
    %v875 = vpop.xlane.xlu0 %874
    %v876 = vsel %vm341, %v199, 0.0
    %877 = vadd.xlane.f32.xlu0 %v876
    %v878 = vpop.xlane.xlu0 %877
    %v879 = vsel %vm341, %v200, 0.0
    %880 = vadd.xlane.f32.xlu0 %v879
    %v881 = vpop.xlane.xlu0 %880
    %v882 = vsel %vm341, %v201, 0.0
    %883 = vadd.xlane.f32.xlu0 %v882
    %v884 = vpop.xlane.xlu0 %883
    %v885 = vsel %vm341, %v202, 0.0
    %886 = vadd.xlane.f32.xlu0 %v885
    %v887 = vpop.xlane.xlu0 %886
    %v888 = vsel %vm341, %v203, 0.0
    %889 = vadd.xlane.f32.xlu0 %v888
    %v890 = vpop.xlane.xlu0 %889
    %v891 = vsel %vm341, %v204, 0.0
    %892 = vadd.xlane.f32.xlu0 %v891
    %v893 = vpop.xlane.xlu0 %892
    %v894 = vsel %vm341, %v205, 0.0
    %895 = vadd.xlane.f32.xlu0 %v894
    %v896 = vpop.xlane.xlu0 %895
    %v897 = vsel %vm341, %v206, 0.0
    %898 = vadd.xlane.f32.xlu0 %v897
    %v899 = vpop.xlane.xlu0 %898
    %v900 = vsel %vm341, %v207, 0.0
    %901 = vadd.xlane.f32.xlu0 %v900
    %v902 = vpop.xlane.xlu0 %901
    %v903 = vsel %vm341, %v208, 0.0
    %904 = vadd.xlane.f32.xlu0 %v903
    %v905 = vpop.xlane.xlu0 %904
    %v906 = vsel %vm341, %v209, 0.0
    %907 = vadd.xlane.f32.xlu0 %v906
    %v908 = vpop.xlane.xlu0 %907
    %v909 = vsel %vm341, %v210, 0.0
    %910 = vadd.xlane.f32.xlu0 %v909
    %v911 = vpop.xlane.xlu0 %910
    %v912 = vsel %vm341, %v211, 0.0
    %913 = vadd.xlane.f32.xlu0 %v912
    %v914 = vpop.xlane.xlu0 %913
    %v915 = vsel %vm341, %v212, 0.0
    %916 = vadd.xlane.f32.xlu0 %v915
    %v917 = vpop.xlane.xlu0 %916
    %v918 = vsel %vm341, %v213, 0.0
    %919 = vadd.xlane.f32.xlu0 %v918
    %v920 = vpop.xlane.xlu0 %919
    %v921 = vsel %vm341, %v214, 0.0
    %922 = vadd.xlane.f32.xlu0 %v921
    %v923 = vpop.xlane.xlu0 %922
    %v924 = vsel %vm341, %v215, 0.0
    %925 = vadd.xlane.f32.xlu0 %v924
    %v926 = vpop.xlane.xlu0 %925
    %v927 = vsel %vm341, %v216, 0.0
    %928 = vadd.xlane.f32.xlu0 %v927
    %v929 = vpop.xlane.xlu0 %928
    %v930 = vsel %vm341, %v217, 0.0
    %931 = vadd.xlane.f32.xlu0 %v930
    %v932 = vpop.xlane.xlu0 %931
    %v933 = vsel %vm341, %v218, 0.0
    %934 = vadd.xlane.f32.xlu0 %v933
    %v935 = vpop.xlane.xlu0 %934
    %v936 = vsel %vm341, %v219, 0.0
    %937 = vadd.xlane.f32.xlu0 %v936
    %v938 = vpop.xlane.xlu0 %937
    %v939 = vsel %vm341, %v220, 0.0
    %940 = vadd.xlane.f32.xlu0 %v939
    %v941 = vpop.xlane.xlu0 %940
    %v942 = vsel %vm341, %v221, 0.0
    %943 = vadd.xlane.f32.xlu0 %v942
    %v944 = vpop.xlane.xlu0 %943
    %v945 = vsel %vm341, %v222, 0.0
    %946 = vadd.xlane.f32.xlu0 %v945
    %v947 = vpop.xlane.xlu0 %946
    %v948 = vsel %vm341, %v223, 0.0
    %949 = vadd.xlane.f32.xlu0 %v948
    %v950 = vpop.xlane.xlu0 %949
    %v951 = vsel %vm341, %v224, 0.0
    %952 = vadd.xlane.f32.xlu0 %v951
    %v953 = vpop.xlane.xlu0 %952
    %v954 = vsel %vm341, %v225, 0.0
    %955 = vadd.xlane.f32.xlu0 %v954
    %v956 = vpop.xlane.xlu0 %955
    %v957 = vsel %vm341, %v226, 0.0
    %958 = vadd.xlane.f32.xlu0 %v957
    %v959 = vpop.xlane.xlu0 %958
    %v960 = vsel %vm341, %v227, 0.0
    %961 = vadd.xlane.f32.xlu0 %v960
    %v962 = vpop.xlane.xlu0 %961
    %v963 = vsel %vm341, %v228, 0.0
    %964 = vadd.xlane.f32.xlu0 %v963
    %v965 = vpop.xlane.xlu0 %964
    %v966 = vsel %vm341, %v229, 0.0
    %967 = vadd.xlane.f32.xlu0 %v966
    %v968 = vpop.xlane.xlu0 %967
    %v969 = vsel %vm341, %v230, 0.0
    %970 = vadd.xlane.f32.xlu0 %v969
    %v971 = vpop.xlane.xlu0 %970
    %v972 = vsel %vm341, %v231, 0.0
    %973 = vadd.xlane.f32.xlu0 %v972
    %v974 = vpop.xlane.xlu0 %973
    %v975 = vsel %vm341, %v232, 0.0
    %976 = vadd.xlane.f32.xlu0 %v975
    %v977 = vpop.xlane.xlu0 %976
    %v978 = vsel %vm341, %v233, 0.0
    %979 = vadd.xlane.f32.xlu0 %v978
    %v980 = vpop.xlane.xlu0 %979
    %v981 = vsel %vm341, %v234, 0.0
    %982 = vadd.xlane.f32.xlu0 %v981
    %v983 = vpop.xlane.xlu0 %982
    %v984 = vsel %vm341, %v235, 0.0
    %985 = vadd.xlane.f32.xlu0 %v984
    %v986 = vpop.xlane.xlu0 %985
    %v987 = vsel %vm341, %v236, 0.0
    %988 = vadd.xlane.f32.xlu0 %v987
    %v989 = vpop.xlane.xlu0 %988
    %v990 = vsel %vm341, %v237, 0.0
    %991 = vadd.xlane.f32.xlu0 %v990
    %v992 = vpop.xlane.xlu0 %991
    %v993 = vsel %vm341, %v238, 0.0
    %994 = vadd.xlane.f32.xlu0 %v993
    %v995 = vpop.xlane.xlu0 %994
    %v996 = vsel %vm341, %v239, 0.0
    %997 = vadd.xlane.f32.xlu0 %v996
    %v998 = vpop.xlane.xlu0 %997
    %v999 = vsel %vm341, %v240, 0.0
    %1000 = vadd.xlane.f32.xlu0 %v999
    %v1001 = vpop.xlane.xlu0 %1000
    %v1002 = vsel %vm341, %v241, 0.0
    %1003 = vadd.xlane.f32.xlu0 %v1002
    %v1004 = vpop.xlane.xlu0 %1003
    %v1005 = vsel %vm341, %v242, 0.0
    %1006 = vadd.xlane.f32.xlu0 %v1005
    %v1007 = vpop.xlane.xlu0 %1006
    %v1008 = vsel %vm341, %v243, 0.0
    %1009 = vadd.xlane.f32.xlu0 %v1008
    %v1010 = vpop.xlane.xlu0 %1009
    %v1011 = vsel %vm341, %v244, 0.0
    %1012 = vadd.xlane.f32.xlu0 %v1011
    %v1013 = vpop.xlane.xlu0 %1012
    %v1014 = vsel %vm341, %v245, 0.0
    %1015 = vadd.xlane.f32.xlu0 %v1014
    %v1016 = vpop.xlane.xlu0 %1015
    %v1017 = vsel %vm341, %v246, 0.0
    %1018 = vadd.xlane.f32.xlu0 %v1017
    %v1019 = vpop.xlane.xlu0 %1018
    %v1020 = vsel %vm341, %v247, 0.0
    %1021 = vadd.xlane.f32.xlu0 %v1020
    %v1022 = vpop.xlane.xlu0 %1021
    %v1023 = vsel %vm341, %v248, 0.0
    %1024 = vadd.xlane.f32.xlu0 %v1023
    %v1025 = vpop.xlane.xlu0 %1024
    %v1026 = vsel %vm341, %v249, 0.0
    %1027 = vadd.xlane.f32.xlu0 %v1026
    %v1028 = vpop.xlane.xlu0 %1027
    %v1029 = vsel %vm341, %v250, 0.0
    %1030 = vadd.xlane.f32.xlu0 %v1029
    %v1031 = vpop.xlane.xlu0 %1030
    %v1032 = vsel %vm341, %v251, 0.0
    %1033 = vadd.xlane.f32.xlu0 %v1032
    %v1034 = vpop.xlane.xlu0 %1033
    %v1035 = vsel %vm341, %v252, 0.0
    %1036 = vadd.xlane.f32.xlu0 %v1035
    %v1037 = vpop.xlane.xlu0 %1036
    %v1038 = vsel %vm341, %v253, 0.0
    %1039 = vadd.xlane.f32.xlu0 %v1038
    %v1040 = vpop.xlane.xlu0 %1039
    %v1041 = vsel %vm341, %v254, 0.0
    %1042 = vadd.xlane.f32.xlu0 %v1041
    %v1043 = vpop.xlane.xlu0 %1042
    %v1044 = vsel %vm341, %v255, 0.0
    %1045 = vadd.xlane.f32.xlu0 %v1044
    %v1046 = vpop.xlane.xlu0 %1045
    %v1047 = vsel %vm341, %v256, 0.0
    %1048 = vadd.xlane.f32.xlu0 %v1047
    %v1049 = vpop.xlane.xlu0 %1048
    %v1050 = vsel %vm341, %v257, 0.0
    %1051 = vadd.xlane.f32.xlu0 %v1050
    %v1052 = vpop.xlane.xlu0 %1051
    %v1053 = vsel %vm341, %v258, 0.0
    %1054 = vadd.xlane.f32.xlu0 %v1053
    %v1055 = vpop.xlane.xlu0 %1054
    %v1056 = vsel %vm341, %v259, 0.0
    %1057 = vadd.xlane.f32.xlu0 %v1056
    %v1058 = vpop.xlane.xlu0 %1057
    %v1059 = vsel %vm341, %v260, 0.0
    %1060 = vadd.xlane.f32.xlu0 %v1059
    %v1061 = vpop.xlane.xlu0 %1060
    %v1062 = vsel %vm341, %v261, 0.0
    %1063 = vadd.xlane.f32.xlu0 %v1062
    %v1064 = vpop.xlane.xlu0 %1063
    %v1065 = vsel %vm341, %v262, 0.0
    %1066 = vadd.xlane.f32.xlu0 %v1065
    %v1067 = vpop.xlane.xlu0 %1066
    %v1068 = vsel %vm341, %v263, 0.0
    %1069 = vadd.xlane.f32.xlu0 %v1068
    %v1070 = vpop.xlane.xlu0 %1069
    %v1071 = vsel %vm341, %v264, 0.0
    %1072 = vadd.xlane.f32.xlu0 %v1071
    %v1073 = vpop.xlane.xlu0 %1072
    %v1074 = vsel %vm341, %v265, 0.0
    %1075 = vadd.xlane.f32.xlu0 %v1074
    %v1076 = vpop.xlane.xlu0 %1075
    %v1077 = vsel %vm341, %v266, 0.0
    %1078 = vadd.xlane.f32.xlu0 %v1077
    %v1079 = vpop.xlane.xlu0 %1078
    %v1080 = vsel %vm341, %v267, 0.0
    %1081 = vadd.xlane.f32.xlu0 %v1080
    %v1082 = vpop.xlane.xlu0 %1081
    %v1083 = vsel %vm341, %v268, 0.0
    %1084 = vadd.xlane.f32.xlu0 %v1083
    %v1085 = vpop.xlane.xlu0 %1084
    %v1086 = vsel %vm341, %v269, 0.0
    %1087 = vadd.xlane.f32.xlu0 %v1086
    %v1088 = vpop.xlane.xlu0 %1087
    %v1089 = vsel %vm341, %v270, 0.0
    %1090 = vadd.xlane.f32.xlu0 %v1089
    %v1091 = vpop.xlane.xlu0 %1090
    %v1092 = vsel %vm341, %v271, 0.0
    %1093 = vadd.xlane.f32.xlu0 %v1092
    %v1094 = vpop.xlane.xlu0 %1093
    %v1095 = vsel %vm341, %v272, 0.0
    %1096 = vadd.xlane.f32.xlu0 %v1095
    %v1097 = vpop.xlane.xlu0 %1096
    %v1098 = vsel %vm341, %v273, 0.0
    %1099 = vadd.xlane.f32.xlu0 %v1098
    %v1100 = vpop.xlane.xlu0 %1099
    %v1101 = vsel %vm341, %v274, 0.0
    %1102 = vadd.xlane.f32.xlu0 %v1101
    %v1103 = vpop.xlane.xlu0 %1102
    %v1104 = vsel %vm341, %v275, 0.0
    %1105 = vadd.xlane.f32.xlu0 %v1104
    %v1106 = vpop.xlane.xlu0 %1105
    %v1107 = vsel %vm341, %v276, 0.0
    %1108 = vadd.xlane.f32.xlu0 %v1107
    %v1109 = vpop.xlane.xlu0 %1108
    %v1110 = vsel %vm341, %v277, 0.0
    %1111 = vadd.xlane.f32.xlu0 %v1110
    %v1112 = vpop.xlane.xlu0 %1111
    %v1113 = vsel %vm341, %v278, 0.0
    %1114 = vadd.xlane.f32.xlu0 %v1113
    %v1115 = vpop.xlane.xlu0 %1114
    %v1116 = vsel %vm341, %v279, 0.0
    %1117 = vadd.xlane.f32.xlu0 %v1116
    %v1118 = vpop.xlane.xlu0 %1117
    %v1119 = vsel %vm341, %v280, 0.0
    %1120 = vadd.xlane.f32.xlu0 %v1119
    %v1121 = vpop.xlane.xlu0 %1120
    %v1122 = vsel %vm341, %v281, 0.0
    %1123 = vadd.xlane.f32.xlu0 %v1122
    %v1124 = vpop.xlane.xlu0 %1123
    %v1125 = vsel %vm341, %v282, 0.0
    %1126 = vadd.xlane.f32.xlu0 %v1125
    %v1127 = vpop.xlane.xlu0 %1126
    %v1128 = vsel %vm341, %v283, 0.0
    %1129 = vadd.xlane.f32.xlu0 %v1128
    %v1130 = vpop.xlane.xlu0 %1129
    %v1131 = vsel %vm341, %v284, 0.0
    %1132 = vadd.xlane.f32.xlu0 %v1131
    %v1133 = vpop.xlane.xlu0 %1132
    %v1134 = vsel %vm341, %v285, 0.0
    %1135 = vadd.xlane.f32.xlu0 %v1134
    %v1136 = vpop.xlane.xlu0 %1135
    %v1137 = vsel %vm341, %v286, 0.0
    %1138 = vadd.xlane.f32.xlu0 %v1137
    %v1139 = vpop.xlane.xlu0 %1138
    %v1140 = vsel %vm341, %v287, 0.0
    %1141 = vadd.xlane.f32.xlu0 %v1140
    %v1142 = vpop.xlane.xlu0 %1141
    %v1143 = vsel %vm341, %v288, 0.0
    %1144 = vadd.xlane.f32.xlu0 %v1143
    %v1145 = vpop.xlane.xlu0 %1144
    %v1146 = vsel %vm341, %v289, 0.0
    %1147 = vadd.xlane.f32.xlu0 %v1146
    %v1148 = vpop.xlane.xlu0 %1147
    %v1149 = vsel %vm341, %v290, 0.0
    %1150 = vadd.xlane.f32.xlu0 %v1149
    %v1151 = vpop.xlane.xlu0 %1150
    %v1152 = vsel %vm341, %v291, 0.0
    %1153 = vadd.xlane.f32.xlu0 %v1152
    %v1154 = vpop.xlane.xlu0 %1153
    %v1155 = vsel %vm341, %v292, 0.0
    %1156 = vadd.xlane.f32.xlu0 %v1155
    %v1157 = vpop.xlane.xlu0 %1156
    %v1158 = vsel %vm341, %v293, 0.0
    %1159 = vadd.xlane.f32.xlu0 %v1158
    %v1160 = vpop.xlane.xlu0 %1159
    %v1161 = vsel %vm341, %v294, 0.0
    %1162 = vadd.xlane.f32.xlu0 %v1161
    %v1163 = vpop.xlane.xlu0 %1162
    %v1164 = vsel %vm341, %v295, 0.0
    %1165 = vadd.xlane.f32.xlu0 %v1164
    %v1166 = vpop.xlane.xlu0 %1165
    %v1167 = vsel %vm341, %v296, 0.0
    %1168 = vadd.xlane.f32.xlu0 %v1167
    %v1169 = vpop.xlane.xlu0 %1168
    %v1170 = vsel %vm341, %v297, 0.0
    %1171 = vadd.xlane.f32.xlu0 %v1170
    %v1172 = vpop.xlane.xlu0 %1171
    %v1173 = vsel %vm341, %v298, 0.0
    %1174 = vadd.xlane.f32.xlu0 %v1173
    %v1175 = vpop.xlane.xlu0 %1174
    %v1176 = vsel %vm341, %v299, 0.0
    %1177 = vadd.xlane.f32.xlu0 %v1176
    %v1178 = vpop.xlane.xlu0 %1177
    %v1179 = vsel %vm341, %v300, 0.0
    %1180 = vadd.xlane.f32.xlu0 %v1179
    %v1181 = vpop.xlane.xlu0 %1180
    %v1182 = vsel %vm341, %v301, 0.0
    %1183 = vadd.xlane.f32.xlu0 %v1182
    %v1184 = vpop.xlane.xlu0 %1183
    %v1185 = vsel %vm341, %v302, 0.0
    %1186 = vadd.xlane.f32.xlu0 %v1185
    %v1187 = vpop.xlane.xlu0 %1186
    %v1188 = vsel %vm341, %v303, 0.0
    %1189 = vadd.xlane.f32.xlu0 %v1188
    %v1190 = vpop.xlane.xlu0 %1189
    %v1191 = vsel %vm341, %v304, 0.0
    %1192 = vadd.xlane.f32.xlu0 %v1191
    %v1193 = vpop.xlane.xlu0 %1192
    %v1194 = vsel %vm341, %v305, 0.0
    %1195 = vadd.xlane.f32.xlu0 %v1194
    %v1196 = vpop.xlane.xlu0 %1195
    %v1197 = vsel %vm341, %v306, 0.0
    %1198 = vadd.xlane.f32.xlu0 %v1197
    %v1199 = vpop.xlane.xlu0 %1198
    %v1200 = vsel %vm341, %v307, 0.0
    %1201 = vadd.xlane.f32.xlu0 %v1200
    %v1202 = vpop.xlane.xlu0 %1201
    %v1203 = vsel %vm341, %v308, 0.0
    %1204 = vadd.xlane.f32.xlu0 %v1203
    %v1205 = vpop.xlane.xlu0 %1204
    %v1206 = vsel %vm341, %v309, 0.0
    %1207 = vadd.xlane.f32.xlu0 %v1206
    %v1208 = vpop.xlane.xlu0 %1207
    %v1209 = vsel %vm341, %v310, 0.0
    %1210 = vadd.xlane.f32.xlu0 %v1209
    %v1211 = vpop.xlane.xlu0 %1210
    %v1212 = vsel %vm341, %v311, 0.0
    %1213 = vadd.xlane.f32.xlu0 %v1212
    %v1214 = vpop.xlane.xlu0 %1213
    %v1215 = vsel %vm341, %v312, 0.0
    %1216 = vadd.xlane.f32.xlu0 %v1215
    %v1217 = vpop.xlane.xlu0 %1216
    %v1218 = vsel %vm341, %v313, 0.0
    %1219 = vadd.xlane.f32.xlu0 %v1218
    %v1220 = vpop.xlane.xlu0 %1219
    %v1221 = vsel %vm341, %v314, 0.0
    %1222 = vadd.xlane.f32.xlu0 %v1221
    %v1223 = vpop.xlane.xlu0 %1222
    %v1224 = vsel %vm341, %v315, 0.0
    %1225 = vadd.xlane.f32.xlu0 %v1224
    %v1226 = vpop.xlane.xlu0 %1225
    %v1227 = vsel %vm341, %v316, 0.0
    %1228 = vadd.xlane.f32.xlu0 %v1227
    %v1229 = vpop.xlane.xlu0 %1228
    %v1230 = vsel %vm341, %v317, 0.0
    %1231 = vadd.xlane.f32.xlu0 %v1230
    %v1232 = vpop.xlane.xlu0 %1231
    %v1233 = vsel %vm341, %v318, 0.0
    %1234 = vadd.xlane.f32.xlu0 %v1233
    %v1235 = vpop.xlane.xlu0 %1234
    %v1236 = vsel %vm341, %v319, 0.0
    %1237 = vadd.xlane.f32.xlu0 %v1236
    %v1238 = vpop.xlane.xlu0 %1237
    %v1239 = vsel %vm341, %v320, 0.0
    %1240 = vadd.xlane.f32.xlu0 %v1239
    %v1241 = vpop.xlane.xlu0 %1240
    %v1242 = vsel %vm341, %v321, 0.0
    %1243 = vadd.xlane.f32.xlu0 %v1242
    %v1244 = vpop.xlane.xlu0 %1243
    %v1245 = vsel %vm341, %v322, 0.0
    %1246 = vadd.xlane.f32.xlu0 %v1245
    %v1247 = vpop.xlane.xlu0 %1246
    %v1248 = vsel %vm341, %v323, 0.0
    %1249 = vadd.xlane.f32.xlu0 %v1248
    %v1250 = vpop.xlane.xlu0 %1249
    %v1251 = vsel %vm341, %v324, 0.0
    %1252 = vadd.xlane.f32.xlu0 %v1251
    %v1253 = vpop.xlane.xlu0 %1252
    %v1254 = vsel %vm341, %v325, 0.0
    %1255 = vadd.xlane.f32.xlu0 %v1254
    %v1256 = vpop.xlane.xlu0 %1255
    %v1257 = vsel %vm341, %v326, 0.0
    %1258 = vadd.xlane.f32.xlu0 %v1257
    %v1259 = vpop.xlane.xlu0 %1258
    %v1260 = vsel %vm341, %v327, 0.0
    %1261 = vadd.xlane.f32.xlu0 %v1260
    %v1262 = vpop.xlane.xlu0 %1261
    %v1263 = vsel %vm341, %v328, 0.0
    %1264 = vadd.xlane.f32.xlu0 %v1263
    %v1265 = vpop.xlane.xlu0 %1264
    %v1266 = vsel %vm341, %v329, 0.0
    %1267 = vadd.xlane.f32.xlu0 %v1266
    %v1268 = vpop.xlane.xlu0 %1267
    %v1269 = vsel %vm341, %v330, 0.0
    %1270 = vadd.xlane.f32.xlu0 %v1269
    %v1271 = vpop.xlane.xlu0 %1270
    %v1272 = vsel %vm341, %v331, 0.0
    %1273 = vadd.xlane.f32.xlu0 %v1272
    %v1274 = vpop.xlane.xlu0 %1273
    %v1275 = vsel %vm341, %v332, 0.0
    %1276 = vadd.xlane.f32.xlu0 %v1275
    %v1277 = vpop.xlane.xlu0 %1276
    %v1278 = vsel %vm341, %v333, 0.0
    %1279 = vadd.xlane.f32.xlu0 %v1278
    %v1280 = vpop.xlane.xlu0 %1279
    %v1281 = vsel %vm341, %v334, 0.0
    %1282 = vadd.xlane.f32.xlu0 %v1281
    %v1283 = vpop.xlane.xlu0 %1282
    %v1284 = vsel %vm341, %v335, 0.0
    %1285 = vadd.xlane.f32.xlu0 %v1284
    %v1286 = vpop.xlane.xlu0 %1285
    %v1287 = vsel %vm341, %v336, 0.0
    %1288 = vadd.xlane.f32.xlu0 %v1287
    %v1289 = vpop.xlane.xlu0 %1288
    %v1290 = vsel %vm341, %v337, 0.0
    %1291 = vadd.xlane.f32.xlu0 %v1290
    %v1292 = vpop.xlane.xlu0 %1291
    %v1293 = vsel %vm341, %v338, 0.0
    %1294 = vadd.xlane.f32.xlu0 %v1293
    %v1295 = vpop.xlane.xlu0 %1294
    %v1296 = vsel %vm341, %v339, 0.0
    %1297 = vadd.xlane.f32.xlu0 %v1296
    %v1298 = vpop.xlane.xlu0 %1297
    %v1299 = vsel %vm341, %v340, 0.0
    %1300 = vadd.xlane.f32.xlu0 %v1299
    %v1301 = vpop.xlane.xlu0 %1300
    %v1302 = vld [vmem:[%s1] sm:$0xff]
    %v1303 = vld [vmem:[%s1 + $0x8] sm:$0xff]
    %v1304 = vld [vmem:[%s1 + $0x10] sm:$0xff]
    %v1305 = vld [vmem:[%s1 + $0x18] sm:$0xff]
    %v1306 = vld [vmem:[%s1 + $0x20] sm:$0xff]
    %v1307 = vld [vmem:[%s1 + $0x28] sm:$0xff]
    %v1308 = vld [vmem:[%s1 + $0x30] sm:$0xff]
    %v1309 = vld [vmem:[%s1 + $0x38] sm:$0xff]
    %v1310 = vld [vmem:[%s1 + $0x40] sm:$0xff]
    %v1311 = vld [vmem:[%s1 + $0x48] sm:$0xff]
    %v1312 = vld [vmem:[%s1 + $0x50] sm:$0xff]
    %v1313 = vld [vmem:[%s1 + $0x58] sm:$0xff]
    %v1314 = vld [vmem:[%s1 + $0x60] sm:$0xff]
    %v1315 = vld [vmem:[%s1 + $0x68] sm:$0xff]
    %v1316 = vld [vmem:[%s1 + $0x70] sm:$0xff]
    %v1317 = vld [vmem:[%s1 + $0x78] sm:$0xff]
    %v1318 = vld [vmem:[%s1 + $0x80] sm:$0xff]
    %v1319 = vld [vmem:[%s1 + $0x88] sm:$0xff]
    %v1320 = vld [vmem:[%s1 + $0x90] sm:$0xff]
    %v1321 = vld [vmem:[%s1 + $0x98] sm:$0xff]
    %v1322 = vld [vmem:[%s1 + $0xa0] sm:$0xff]
    %v1323 = vld [vmem:[%s1 + $0xa8] sm:$0xff]
    %v1324 = vld [vmem:[%s1 + $0xb0] sm:$0xff]
    %v1325 = vld [vmem:[%s1 + $0xb8] sm:$0xff]
    %v1326 = vld [vmem:[%s1 + $0xc0] sm:$0xff]
    %v1327 = vld [vmem:[%s1 + $0xc8] sm:$0xff]
    %v1328 = vld [vmem:[%s1 + $0xd0] sm:$0xff]
    %v1329 = vld [vmem:[%s1 + $0xd8] sm:$0xff]
    %v1330 = vld [vmem:[%s1 + $0xe0] sm:$0xff]
    %v1331 = vld [vmem:[%s1 + $0xe8] sm:$0xff]
    %v1332 = vld [vmem:[%s1 + $0xf0] sm:$0xff]
    %v1333 = vld [vmem:[%s1 + $0xf8] sm:$0xff]
    %v1334 = vld [vmem:[%s1 + $0x100] sm:$0xff]
    %v1335 = vld [vmem:[%s1 + $0x108] sm:$0xff]
    %v1336 = vld [vmem:[%s1 + $0x110] sm:$0xff]
    %v1337 = vld [vmem:[%s1 + $0x118] sm:$0xff]
    %v1338 = vld [vmem:[%s1 + $0x120] sm:$0xff]
    %v1339 = vld [vmem:[%s1 + $0x128] sm:$0xff]
    %v1340 = vld [vmem:[%s1 + $0x130] sm:$0xff]
    %v1341 = vld [vmem:[%s1 + $0x138] sm:$0xff]
    %v1342 = vld [vmem:[%s1 + $0x140] sm:$0xff]
    %v1343 = vld [vmem:[%s1 + $0x148] sm:$0xff]
    %v1344 = vld [vmem:[%s1 + $0x150] sm:$0xff]
    %v1345 = vld [vmem:[%s1 + $0x158] sm:$0xff]
    %v1346 = vld [vmem:[%s1 + $0x160] sm:$0xff]
    %v1347 = vld [vmem:[%s1 + $0x168] sm:$0xff]
    %v1348 = vld [vmem:[%s1 + $0x170] sm:$0xff]
    %v1349 = vld [vmem:[%s1 + $0x178] sm:$0xff]
    %v1350 = vld [vmem:[%s1 + $0x180] sm:$0xff]
    %v1351 = vld [vmem:[%s1 + $0x188] sm:$0xff]
    %v1352 = vld [vmem:[%s1 + $0x190] sm:$0xff]
    %v1353 = vld [vmem:[%s1 + $0x198] sm:$0xff]
    %v1354 = vld [vmem:[%s1 + $0x1a0] sm:$0xff]
    %v1355 = vld [vmem:[%s1 + $0x1a8] sm:$0xff]
    %v1356 = vld [vmem:[%s1 + $0x1b0] sm:$0xff]
    %v1357 = vld [vmem:[%s1 + $0x1b8] sm:$0xff]
    %v1358 = vld [vmem:[%s1 + $0x1c0] sm:$0xff]
    %v1359 = vld [vmem:[%s1 + $0x1c8] sm:$0xff]
    %v1360 = vld [vmem:[%s1 + $0x1d0] sm:$0xff]
    %v1361 = vld [vmem:[%s1 + $0x1d8] sm:$0xff]
    %v1362 = vld [vmem:[%s1 + $0x1e0] sm:$0xff]
    %v1363 = vld [vmem:[%s1 + $0x1e8] sm:$0xff]
    %v1364 = vld [vmem:[%s1 + $0x1f0] sm:$0xff]
    %v1365 = vld [vmem:[%s1 + $0x1f8] sm:$0xff]
    %v1366 = vld [vmem:[%s1 + $0x200] sm:$0xff]
    %v1367 = vld [vmem:[%s1 + $0x208] sm:$0xff]
    %v1368 = vld [vmem:[%s1 + $0x210] sm:$0xff]
    %v1369 = vld [vmem:[%s1 + $0x218] sm:$0xff]
    %v1370 = vld [vmem:[%s1 + $0x220] sm:$0xff]
    %v1371 = vld [vmem:[%s1 + $0x228] sm:$0xff]
    %v1372 = vld [vmem:[%s1 + $0x230] sm:$0xff]
    %v1373 = vld [vmem:[%s1 + $0x238] sm:$0xff]
    %v1374 = vld [vmem:[%s1 + $0x240] sm:$0xff]
    %v1375 = vld [vmem:[%s1 + $0x248] sm:$0xff]
    %v1376 = vld [vmem:[%s1 + $0x250] sm:$0xff]
    %v1377 = vld [vmem:[%s1 + $0x258] sm:$0xff]
    %v1378 = vld [vmem:[%s1 + $0x260] sm:$0xff]
    %v1379 = vld [vmem:[%s1 + $0x268] sm:$0xff]
    %v1380 = vld [vmem:[%s1 + $0x270] sm:$0xff]
    %v1381 = vld [vmem:[%s1 + $0x278] sm:$0xff]
    %v1382 = vld [vmem:[%s1 + $0x280] sm:$0xff]
    %v1383 = vld [vmem:[%s1 + $0x288] sm:$0xff]
    %v1384 = vld [vmem:[%s1 + $0x290] sm:$0xff]
    %v1385 = vld [vmem:[%s1 + $0x298] sm:$0xff]
    %v1386 = vld [vmem:[%s1 + $0x2a0] sm:$0xff]
    %v1387 = vld [vmem:[%s1 + $0x2a8] sm:$0xff]
    %v1388 = vld [vmem:[%s1 + $0x2b0] sm:$0xff]
    %v1389 = vld [vmem:[%s1 + $0x2b8] sm:$0xff]
    %v1390 = vld [vmem:[%s1 + $0x2c0] sm:$0xff]
    %v1391 = vld [vmem:[%s1 + $0x2c8] sm:$0xff]
    %v1392 = vld [vmem:[%s1 + $0x2d0] sm:$0xff]
    %v1393 = vld [vmem:[%s1 + $0x2d8] sm:$0xff]
    %v1394 = vld [vmem:[%s1 + $0x2e0] sm:$0xff]
    %v1395 = vld [vmem:[%s1 + $0x2e8] sm:$0xff]
    %v1396 = vld [vmem:[%s1 + $0x2f0] sm:$0xff]
    %v1397 = vld [vmem:[%s1 + $0x2f8] sm:$0xff]
    %v1398 = vld [vmem:[%s1 + $0x300] sm:$0xff]
    %v1399 = vld [vmem:[%s1 + $0x308] sm:$0xff]
    %v1400 = vld [vmem:[%s1 + $0x310] sm:$0xff]
    %v1401 = vld [vmem:[%s1 + $0x318] sm:$0xff]
    %v1402 = vld [vmem:[%s1 + $0x320] sm:$0xff]
    %v1403 = vld [vmem:[%s1 + $0x328] sm:$0xff]
    %v1404 = vld [vmem:[%s1 + $0x330] sm:$0xff]
    %v1405 = vld [vmem:[%s1 + $0x338] sm:$0xff]
    %v1406 = vld [vmem:[%s1 + $0x340] sm:$0xff]
    %v1407 = vld [vmem:[%s1 + $0x348] sm:$0xff]
    %v1408 = vld [vmem:[%s1 + $0x350] sm:$0xff]
    %v1409 = vld [vmem:[%s1 + $0x358] sm:$0xff]
    %v1410 = vld [vmem:[%s1 + $0x360] sm:$0xff]
    %v1411 = vld [vmem:[%s1 + $0x368] sm:$0xff]
    %v1412 = vld [vmem:[%s1 + $0x370] sm:$0xff]
    %v1413 = vld [vmem:[%s1 + $0x378] sm:$0xff]
    %v1414 = vld [vmem:[%s1 + $0x380] sm:$0xff]
    %v1415 = vld [vmem:[%s1 + $0x388] sm:$0xff]
    %v1416 = vld [vmem:[%s1 + $0x390] sm:$0xff]
    %v1417 = vld [vmem:[%s1 + $0x398] sm:$0xff]
    %v1418 = vld [vmem:[%s1 + $0x3a0] sm:$0xff]
    %v1419 = vld [vmem:[%s1 + $0x3a8] sm:$0xff]
    %v1420 = vld [vmem:[%s1 + $0x3b0] sm:$0xff]
    %v1421 = vld [vmem:[%s1 + $0x3b8] sm:$0xff]
    %v1422 = vld [vmem:[%s1 + $0x3c0] sm:$0xff]
    %v1423 = vld [vmem:[%s1 + $0x3c8] sm:$0xff]
    %v1424 = vld [vmem:[%s1 + $0x3d0] sm:$0xff]
    %v1425 = vld [vmem:[%s1 + $0x3d8] sm:$0xff]
    %v1426 = vld [vmem:[%s1 + $0x3e0] sm:$0xff]
    %v1427 = vld [vmem:[%s1 + $0x3e8] sm:$0xff]
    %v1428 = vld [vmem:[%s1 + $0x3f0] sm:$0xff]
    %v1429 = vld [vmem:[%s1 + $0x3f8] sm:$0xff]
    %v1430 = vld [vmem:[%s1 + $0x400] sm:$0xff]
    %v1431 = vld [vmem:[%s1 + $0x408] sm:$0xff]
    %v1432 = vld [vmem:[%s1 + $0x410] sm:$0xff]
    %v1433 = vld [vmem:[%s1 + $0x418] sm:$0xff]
    %v1434 = vld [vmem:[%s1 + $0x420] sm:$0xff]
    %v1435 = vld [vmem:[%s1 + $0x428] sm:$0xff]
    %v1436 = vld [vmem:[%s1 + $0x430] sm:$0xff]
    %v1437 = vld [vmem:[%s1 + $0x438] sm:$0xff]
    %v1438 = vld [vmem:[%s1 + $0x440] sm:$0xff]
    %v1439 = vld [vmem:[%s1 + $0x448] sm:$0xff]
    %v1440 = vld [vmem:[%s1 + $0x450] sm:$0xff]
    %v1441 = vld [vmem:[%s1 + $0x458] sm:$0xff]
    %v1442 = vld [vmem:[%s1 + $0x460] sm:$0xff]
    %v1443 = vld [vmem:[%s1 + $0x468] sm:$0xff]
    %v1444 = vld [vmem:[%s1 + $0x470] sm:$0xff]
    %v1445 = vld [vmem:[%s1 + $0x478] sm:$0xff]
    %v1446 = vld [vmem:[%s1 + $0x480] sm:$0xff]
    %v1447 = vld [vmem:[%s1 + $0x488] sm:$0xff]
    %v1448 = vld [vmem:[%s1 + $0x490] sm:$0xff]
    %v1449 = vld [vmem:[%s1 + $0x498] sm:$0xff]
    %v1450 = vld [vmem:[%s1 + $0x4a0] sm:$0xff]
    %v1451 = vld [vmem:[%s1 + $0x4a8] sm:$0xff]
    %v1452 = vld [vmem:[%s1 + $0x4b0] sm:$0xff]
    %v1453 = vld [vmem:[%s1 + $0x4b8] sm:$0xff]
    %v1454 = vld [vmem:[%s1 + $0x4c0] sm:$0xff]
    %v1455 = vld [vmem:[%s1 + $0x4c8] sm:$0xff]
    %v1456 = vld [vmem:[%s1 + $0x4d0] sm:$0xff]
    %v1457 = vld [vmem:[%s1 + $0x4d8] sm:$0xff]
    %v1458 = vld [vmem:[%s1 + $0x4e0] sm:$0xff]
    %v1459 = vld [vmem:[%s1 + $0x4e8] sm:$0xff]
    %v1460 = vld [vmem:[%s1 + $0x4f0] sm:$0xff]
    %v1461 = vld [vmem:[%s1 + $0x4f8] sm:$0xff]
    %v1462 = vld [vmem:[%s2] sm:$0x1]
    %v1464 = vlaneseq
    %v1465 = vshrl.u32 %v1464, 7
    %v1466 = vsub.s32 0, %v1465
    %v1467 = vrot.slane %v1462, %v1466
    %v1789 = vlaneseq
    %v1790 = vand.u32 %v1789, 127
    %v1791 = vlaneseq
    %v1792 = vshrl.u32 %v1791, 7
    %v1793 = vsub.s32 %v1790, %v1792
    %v1794 = vrot.slane %v344, %v1793
    %v1795 = vadd.s32 %v1790, 4294967288
    %v1796 = vlaneseq
    %v1797 = vshrl.u32 %v1796, 7
    %v1798 = vsub.s32 %v1795, %v1797
    %v1799 = vrot.slane %v347, %v1798
    %vm1800 = vcmask 130112
    %v1801 = vsel %vm1800, %v1799, %v1794
    %v1802 = vadd.s32 %v1790, 4294967280
    %v1803 = vlaneseq
    %v1804 = vshrl.u32 %v1803, 7
    %v1805 = vsub.s32 %v1802, %v1804
    %v1806 = vrot.slane %v350, %v1805
    %vm1807 = vcmask 195712
    %v1808 = vsel %vm1807, %v1806, %v1801
    %v1809 = vadd.s32 %v1790, 4294967272
    %v1810 = vlaneseq
    %v1811 = vshrl.u32 %v1810, 7
    %v1812 = vsub.s32 %v1809, %v1811
    %v1813 = vrot.slane %v353, %v1812
    %vm1814 = vcmask 261312
    %v1815 = vsel %vm1814, %v1813, %v1808
    %v1816 = vadd.s32 %v1790, 4294967264
    %v1817 = vlaneseq
    %v1818 = vshrl.u32 %v1817, 7
    %v1819 = vsub.s32 %v1816, %v1818
    %v1820 = vrot.slane %v356, %v1819
    %vm1821 = vcmask 326912
    %v1822 = vsel %vm1821, %v1820, %v1815
    %v1823 = vadd.s32 %v1790, 4294967256
    %v1824 = vlaneseq
    %v1825 = vshrl.u32 %v1824, 7
    %v1826 = vsub.s32 %v1823, %v1825
    %v1827 = vrot.slane %v359, %v1826
    %vm1828 = vcmask 392512
    %v1829 = vsel %vm1828, %v1827, %v1822
    %v1830 = vadd.s32 %v1790, 4294967248
    %v1831 = vlaneseq
    %v1832 = vshrl.u32 %v1831, 7
    %v1833 = vsub.s32 %v1830, %v1832
    %v1834 = vrot.slane %v362, %v1833
    %vm1835 = vcmask 458112
    %v1836 = vsel %vm1835, %v1834, %v1829
    %v1837 = vadd.s32 %v1790, 4294967240
    %v1838 = vlaneseq
    %v1839 = vshrl.u32 %v1838, 7
    %v1840 = vsub.s32 %v1837, %v1839
    %v1841 = vrot.slane %v365, %v1840
    %vm1842 = vcmask 523712
    %v1843 = vsel %vm1842, %v1841, %v1836
    %v1844 = vadd.s32 %v1790, 4294967232
    %v1845 = vlaneseq
    %v1846 = vshrl.u32 %v1845, 7
    %v1847 = vsub.s32 %v1844, %v1846
    %v1848 = vrot.slane %v368, %v1847
    %vm1849 = vcmask 589312
    %v1850 = vsel %vm1849, %v1848, %v1843
    %v1851 = vadd.s32 %v1790, 4294967224
    %v1852 = vlaneseq
    %v1853 = vshrl.u32 %v1852, 7
    %v1854 = vsub.s32 %v1851, %v1853
    %v1855 = vrot.slane %v371, %v1854
    %vm1856 = vcmask 654912
    %v1857 = vsel %vm1856, %v1855, %v1850
    %v1858 = vadd.s32 %v1790, 4294967216
    %v1859 = vlaneseq
    %v1860 = vshrl.u32 %v1859, 7
    %v1861 = vsub.s32 %v1858, %v1860
    %v1862 = vrot.slane %v374, %v1861
    %vm1863 = vcmask 720512
    %v1864 = vsel %vm1863, %v1862, %v1857
    %v1865 = vadd.s32 %v1790, 4294967208
    %v1866 = vlaneseq
    %v1867 = vshrl.u32 %v1866, 7
    %v1868 = vsub.s32 %v1865, %v1867
    %v1869 = vrot.slane %v377, %v1868
    %vm1870 = vcmask 786112
    %v1871 = vsel %vm1870, %v1869, %v1864
    %v1872 = vadd.s32 %v1790, 4294967200
    %v1873 = vlaneseq
    %v1874 = vshrl.u32 %v1873, 7
    %v1875 = vsub.s32 %v1872, %v1874
    %v1876 = vrot.slane %v380, %v1875
    %vm1877 = vcmask 851712
    %v1878 = vsel %vm1877, %v1876, %v1871
    %v1879 = vadd.s32 %v1790, 4294967192
    %v1880 = vlaneseq
    %v1881 = vshrl.u32 %v1880, 7
    %v1882 = vsub.s32 %v1879, %v1881
    %v1883 = vrot.slane %v383, %v1882
    %vm1884 = vcmask 917312
    %v1885 = vsel %vm1884, %v1883, %v1878
    %v1886 = vadd.s32 %v1790, 4294967184
    %v1887 = vlaneseq
    %v1888 = vshrl.u32 %v1887, 7
    %v1889 = vsub.s32 %v1886, %v1888
    %v1890 = vrot.slane %v386, %v1889
    %vm1891 = vcmask 982912
    %v1892 = vsel %vm1891, %v1890, %v1885
    %v1893 = vadd.s32 %v1790, 4294967176
    %v1894 = vlaneseq
    %v1895 = vshrl.u32 %v1894, 7
    %v1896 = vsub.s32 %v1893, %v1895
    %v1897 = vrot.slane %v389, %v1896
    %vm1898 = vcmask 1048512
    %v1899 = vsel %vm1898, %v1897, %v1892
    %v1900 = vlaneseq
    %v1901 = vshrl.u32 %v1900, 7
    %v1902 = vsub.s32 %v1790, %v1901
    %v1903 = vrot.slane %v392, %v1902
    %v1904 = vlaneseq
    %v1905 = vshrl.u32 %v1904, 7
    %v1906 = vsub.s32 %v1795, %v1905
    %v1907 = vrot.slane %v395, %v1906
    %v1908 = vsel %vm1800, %v1907, %v1903
    %v1909 = vlaneseq
    %v1910 = vshrl.u32 %v1909, 7
    %v1911 = vsub.s32 %v1802, %v1910
    %v1912 = vrot.slane %v398, %v1911
    %v1913 = vsel %vm1807, %v1912, %v1908
    %v1914 = vlaneseq
    %v1915 = vshrl.u32 %v1914, 7
    %v1916 = vsub.s32 %v1809, %v1915
    %v1917 = vrot.slane %v401, %v1916
    %v1918 = vsel %vm1814, %v1917, %v1913
    %v1919 = vlaneseq
    %v1920 = vshrl.u32 %v1919, 7
    %v1921 = vsub.s32 %v1816, %v1920
    %v1922 = vrot.slane %v404, %v1921
    %v1923 = vsel %vm1821, %v1922, %v1918
    %v1924 = vlaneseq
    %v1925 = vshrl.u32 %v1924, 7
    %v1926 = vsub.s32 %v1823, %v1925
    %v1927 = vrot.slane %v407, %v1926
    %v1928 = vsel %vm1828, %v1927, %v1923
    %v1929 = vlaneseq
    %v1930 = vshrl.u32 %v1929, 7
    %v1931 = vsub.s32 %v1830, %v1930
    %v1932 = vrot.slane %v410, %v1931
    %v1933 = vsel %vm1835, %v1932, %v1928
    %v1934 = vlaneseq
    %v1935 = vshrl.u32 %v1934, 7
    %v1936 = vsub.s32 %v1837, %v1935
    %v1937 = vrot.slane %v413, %v1936
    %v1938 = vsel %vm1842, %v1937, %v1933
    %v1939 = vlaneseq
    %v1940 = vshrl.u32 %v1939, 7
    %v1941 = vsub.s32 %v1844, %v1940
    %v1942 = vrot.slane %v416, %v1941
    %v1943 = vsel %vm1849, %v1942, %v1938
    %v1944 = vlaneseq
    %v1945 = vshrl.u32 %v1944, 7
    %v1946 = vsub.s32 %v1851, %v1945
    %v1947 = vrot.slane %v419, %v1946
    %v1948 = vsel %vm1856, %v1947, %v1943
    %v1949 = vlaneseq
    %v1950 = vshrl.u32 %v1949, 7
    %v1951 = vsub.s32 %v1858, %v1950
    %v1952 = vrot.slane %v422, %v1951
    %v1953 = vsel %vm1863, %v1952, %v1948
    %v1954 = vlaneseq
    %v1955 = vshrl.u32 %v1954, 7
    %v1956 = vsub.s32 %v1865, %v1955
    %v1957 = vrot.slane %v425, %v1956
    %v1958 = vsel %vm1870, %v1957, %v1953
    %v1959 = vlaneseq
    %v1960 = vshrl.u32 %v1959, 7
    %v1961 = vsub.s32 %v1872, %v1960
    %v1962 = vrot.slane %v428, %v1961
    %v1963 = vsel %vm1877, %v1962, %v1958
    %v1964 = vlaneseq
    %v1965 = vshrl.u32 %v1964, 7
    %v1966 = vsub.s32 %v1879, %v1965
    %v1967 = vrot.slane %v431, %v1966
    %v1968 = vsel %vm1884, %v1967, %v1963
    %v1969 = vlaneseq
    %v1970 = vshrl.u32 %v1969, 7
    %v1971 = vsub.s32 %v1886, %v1970
    %v1972 = vrot.slane %v434, %v1971
    %v1973 = vsel %vm1891, %v1972, %v1968
    %v1974 = vlaneseq
    %v1975 = vshrl.u32 %v1974, 7
    %v1976 = vsub.s32 %v1893, %v1975
    %v1977 = vrot.slane %v437, %v1976
    %v1978 = vsel %vm1898, %v1977, %v1973
    %v1979 = vlaneseq
    %v1980 = vshrl.u32 %v1979, 7
    %v1981 = vsub.s32 %v1790, %v1980
    %v1982 = vrot.slane %v440, %v1981
    %v1983 = vlaneseq
    %v1984 = vshrl.u32 %v1983, 7
    %v1985 = vsub.s32 %v1795, %v1984
    %v1986 = vrot.slane %v443, %v1985
    %v1987 = vsel %vm1800, %v1986, %v1982
    %v1988 = vlaneseq
    %v1989 = vshrl.u32 %v1988, 7
    %v1990 = vsub.s32 %v1802, %v1989
    %v1991 = vrot.slane %v446, %v1990
    %v1992 = vsel %vm1807, %v1991, %v1987
    %v1993 = vlaneseq
    %v1994 = vshrl.u32 %v1993, 7
    %v1995 = vsub.s32 %v1809, %v1994
    %v1996 = vrot.slane %v449, %v1995
    %v1997 = vsel %vm1814, %v1996, %v1992
    %v1998 = vlaneseq
    %v1999 = vshrl.u32 %v1998, 7
    %v2000 = vsub.s32 %v1816, %v1999
    %v2001 = vrot.slane %v452, %v2000
    %v2002 = vsel %vm1821, %v2001, %v1997
    %v2003 = vlaneseq
    %v2004 = vshrl.u32 %v2003, 7
    %v2005 = vsub.s32 %v1823, %v2004
    %v2006 = vrot.slane %v455, %v2005
    %v2007 = vsel %vm1828, %v2006, %v2002
    %v2008 = vlaneseq
    %v2009 = vshrl.u32 %v2008, 7
    %v2010 = vsub.s32 %v1830, %v2009
    %v2011 = vrot.slane %v458, %v2010
    %v2012 = vsel %vm1835, %v2011, %v2007
    %v2013 = vlaneseq
    %v2014 = vshrl.u32 %v2013, 7
    %v2015 = vsub.s32 %v1837, %v2014
    %v2016 = vrot.slane %v461, %v2015
    %v2017 = vsel %vm1842, %v2016, %v2012
    %v2018 = vlaneseq
    %v2019 = vshrl.u32 %v2018, 7
    %v2020 = vsub.s32 %v1844, %v2019
    %v2021 = vrot.slane %v464, %v2020
    %v2022 = vsel %vm1849, %v2021, %v2017
    %v2023 = vlaneseq
    %v2024 = vshrl.u32 %v2023, 7
    %v2025 = vsub.s32 %v1851, %v2024
    %v2026 = vrot.slane %v467, %v2025
    %v2027 = vsel %vm1856, %v2026, %v2022
    %v2028 = vlaneseq
    %v2029 = vshrl.u32 %v2028, 7
    %v2030 = vsub.s32 %v1858, %v2029
    %v2031 = vrot.slane %v470, %v2030
    %v2032 = vsel %vm1863, %v2031, %v2027
    %v2033 = vlaneseq
    %v2034 = vshrl.u32 %v2033, 7
    %v2035 = vsub.s32 %v1865, %v2034
    %v2036 = vrot.slane %v473, %v2035
    %v2037 = vsel %vm1870, %v2036, %v2032
    %v2038 = vlaneseq
    %v2039 = vshrl.u32 %v2038, 7
    %v2040 = vsub.s32 %v1872, %v2039
    %v2041 = vrot.slane %v476, %v2040
    %v2042 = vsel %vm1877, %v2041, %v2037
    %v2043 = vlaneseq
    %v2044 = vshrl.u32 %v2043, 7
    %v2045 = vsub.s32 %v1879, %v2044
    %v2046 = vrot.slane %v479, %v2045
    %v2047 = vsel %vm1884, %v2046, %v2042
    %v2048 = vlaneseq
    %v2049 = vshrl.u32 %v2048, 7
    %v2050 = vsub.s32 %v1886, %v2049
    %v2051 = vrot.slane %v482, %v2050
    %v2052 = vsel %vm1891, %v2051, %v2047
    %v2053 = vlaneseq
    %v2054 = vshrl.u32 %v2053, 7
    %v2055 = vsub.s32 %v1893, %v2054
    %v2056 = vrot.slane %v485, %v2055
    %v2057 = vsel %vm1898, %v2056, %v2052
    %v2058 = vlaneseq
    %v2059 = vshrl.u32 %v2058, 7
    %v2060 = vsub.s32 %v1790, %v2059
    %v2061 = vrot.slane %v488, %v2060
    %v2062 = vlaneseq
    %v2063 = vshrl.u32 %v2062, 7
    %v2064 = vsub.s32 %v1795, %v2063
    %v2065 = vrot.slane %v491, %v2064
    %v2066 = vsel %vm1800, %v2065, %v2061
    %v2067 = vlaneseq
    %v2068 = vshrl.u32 %v2067, 7
    %v2069 = vsub.s32 %v1802, %v2068
    %v2070 = vrot.slane %v494, %v2069
    %v2071 = vsel %vm1807, %v2070, %v2066
    %v2072 = vlaneseq
    %v2073 = vshrl.u32 %v2072, 7
    %v2074 = vsub.s32 %v1809, %v2073
    %v2075 = vrot.slane %v497, %v2074
    %v2076 = vsel %vm1814, %v2075, %v2071
    %v2077 = vlaneseq
    %v2078 = vshrl.u32 %v2077, 7
    %v2079 = vsub.s32 %v1816, %v2078
    %v2080 = vrot.slane %v500, %v2079
    %v2081 = vsel %vm1821, %v2080, %v2076
    %v2082 = vlaneseq
    %v2083 = vshrl.u32 %v2082, 7
    %v2084 = vsub.s32 %v1823, %v2083
    %v2085 = vrot.slane %v503, %v2084
    %v2086 = vsel %vm1828, %v2085, %v2081
    %v2087 = vlaneseq
    %v2088 = vshrl.u32 %v2087, 7
    %v2089 = vsub.s32 %v1830, %v2088
    %v2090 = vrot.slane %v506, %v2089
    %v2091 = vsel %vm1835, %v2090, %v2086
    %v2092 = vlaneseq
    %v2093 = vshrl.u32 %v2092, 7
    %v2094 = vsub.s32 %v1837, %v2093
    %v2095 = vrot.slane %v509, %v2094
    %v2096 = vsel %vm1842, %v2095, %v2091
    %v2097 = vlaneseq
    %v2098 = vshrl.u32 %v2097, 7
    %v2099 = vsub.s32 %v1844, %v2098
    %v2100 = vrot.slane %v512, %v2099
    %v2101 = vsel %vm1849, %v2100, %v2096
    %v2102 = vlaneseq
    %v2103 = vshrl.u32 %v2102, 7
    %v2104 = vsub.s32 %v1851, %v2103
    %v2105 = vrot.slane %v515, %v2104
    %v2106 = vsel %vm1856, %v2105, %v2101
    %v2107 = vlaneseq
    %v2108 = vshrl.u32 %v2107, 7
    %v2109 = vsub.s32 %v1858, %v2108
    %v2110 = vrot.slane %v518, %v2109
    %v2111 = vsel %vm1863, %v2110, %v2106
    %v2112 = vlaneseq
    %v2113 = vshrl.u32 %v2112, 7
    %v2114 = vsub.s32 %v1865, %v2113
    %v2115 = vrot.slane %v521, %v2114
    %v2116 = vsel %vm1870, %v2115, %v2111
    %v2117 = vlaneseq
    %v2118 = vshrl.u32 %v2117, 7
    %v2119 = vsub.s32 %v1872, %v2118
    %v2120 = vrot.slane %v524, %v2119
    %v2121 = vsel %vm1877, %v2120, %v2116
    %v2122 = vlaneseq
    %v2123 = vshrl.u32 %v2122, 7
    %v2124 = vsub.s32 %v1879, %v2123
    %v2125 = vrot.slane %v527, %v2124
    %v2126 = vsel %vm1884, %v2125, %v2121
    %v2127 = vlaneseq
    %v2128 = vshrl.u32 %v2127, 7
    %v2129 = vsub.s32 %v1886, %v2128
    %v2130 = vrot.slane %v530, %v2129
    %v2131 = vsel %vm1891, %v2130, %v2126
    %v2132 = vlaneseq
    %v2133 = vshrl.u32 %v2132, 7
    %v2134 = vsub.s32 %v1893, %v2133
    %v2135 = vrot.slane %v533, %v2134
    %v2136 = vsel %vm1898, %v2135, %v2131
    %v2137 = vlaneseq
    %v2138 = vshrl.u32 %v2137, 7
    %v2139 = vsub.s32 %v1790, %v2138
    %v2140 = vrot.slane %v536, %v2139
    %v2141 = vlaneseq
    %v2142 = vshrl.u32 %v2141, 7
    %v2143 = vsub.s32 %v1795, %v2142
    %v2144 = vrot.slane %v539, %v2143
    %v2145 = vsel %vm1800, %v2144, %v2140
    %v2146 = vlaneseq
    %v2147 = vshrl.u32 %v2146, 7
    %v2148 = vsub.s32 %v1802, %v2147
    %v2149 = vrot.slane %v542, %v2148
    %v2150 = vsel %vm1807, %v2149, %v2145
    %v2151 = vlaneseq
    %v2152 = vshrl.u32 %v2151, 7
    %v2153 = vsub.s32 %v1809, %v2152
    %v2154 = vrot.slane %v545, %v2153
    %v2155 = vsel %vm1814, %v2154, %v2150
    %v2156 = vlaneseq
    %v2157 = vshrl.u32 %v2156, 7
    %v2158 = vsub.s32 %v1816, %v2157
    %v2159 = vrot.slane %v548, %v2158
    %v2160 = vsel %vm1821, %v2159, %v2155
    %v2161 = vlaneseq
    %v2162 = vshrl.u32 %v2161, 7
    %v2163 = vsub.s32 %v1823, %v2162
    %v2164 = vrot.slane %v551, %v2163
    %v2165 = vsel %vm1828, %v2164, %v2160
    %v2166 = vlaneseq
    %v2167 = vshrl.u32 %v2166, 7
    %v2168 = vsub.s32 %v1830, %v2167
    %v2169 = vrot.slane %v554, %v2168
    %v2170 = vsel %vm1835, %v2169, %v2165
    %v2171 = vlaneseq
    %v2172 = vshrl.u32 %v2171, 7
    %v2173 = vsub.s32 %v1837, %v2172
    %v2174 = vrot.slane %v557, %v2173
    %v2175 = vsel %vm1842, %v2174, %v2170
    %v2176 = vlaneseq
    %v2177 = vshrl.u32 %v2176, 7
    %v2178 = vsub.s32 %v1844, %v2177
    %v2179 = vrot.slane %v560, %v2178
    %v2180 = vsel %vm1849, %v2179, %v2175
    %v2181 = vlaneseq
    %v2182 = vshrl.u32 %v2181, 7
    %v2183 = vsub.s32 %v1851, %v2182
    %v2184 = vrot.slane %v563, %v2183
    %v2185 = vsel %vm1856, %v2184, %v2180
    %v2186 = vlaneseq
    %v2187 = vshrl.u32 %v2186, 7
    %v2188 = vsub.s32 %v1858, %v2187
    %v2189 = vrot.slane %v566, %v2188
    %v2190 = vsel %vm1863, %v2189, %v2185
    %v2191 = vlaneseq
    %v2192 = vshrl.u32 %v2191, 7
    %v2193 = vsub.s32 %v1865, %v2192
    %v2194 = vrot.slane %v569, %v2193
    %v2195 = vsel %vm1870, %v2194, %v2190
    %v2196 = vlaneseq
    %v2197 = vshrl.u32 %v2196, 7
    %v2198 = vsub.s32 %v1872, %v2197
    %v2199 = vrot.slane %v572, %v2198
    %v2200 = vsel %vm1877, %v2199, %v2195
    %v2201 = vlaneseq
    %v2202 = vshrl.u32 %v2201, 7
    %v2203 = vsub.s32 %v1879, %v2202
    %v2204 = vrot.slane %v575, %v2203
    %v2205 = vsel %vm1884, %v2204, %v2200
    %v2206 = vlaneseq
    %v2207 = vshrl.u32 %v2206, 7
    %v2208 = vsub.s32 %v1886, %v2207
    %v2209 = vrot.slane %v578, %v2208
    %v2210 = vsel %vm1891, %v2209, %v2205
    %v2211 = vlaneseq
    %v2212 = vshrl.u32 %v2211, 7
    %v2213 = vsub.s32 %v1893, %v2212
    %v2214 = vrot.slane %v581, %v2213
    %v2215 = vsel %vm1898, %v2214, %v2210
    %v2216 = vlaneseq
    %v2217 = vshrl.u32 %v2216, 7
    %v2218 = vsub.s32 %v1790, %v2217
    %v2219 = vrot.slane %v584, %v2218
    %v2220 = vlaneseq
    %v2221 = vshrl.u32 %v2220, 7
    %v2222 = vsub.s32 %v1795, %v2221
    %v2223 = vrot.slane %v587, %v2222
    %v2224 = vsel %vm1800, %v2223, %v2219
    %v2225 = vlaneseq
    %v2226 = vshrl.u32 %v2225, 7
    %v2227 = vsub.s32 %v1802, %v2226
    %v2228 = vrot.slane %v590, %v2227
    %v2229 = vsel %vm1807, %v2228, %v2224
    %v2230 = vlaneseq
    %v2231 = vshrl.u32 %v2230, 7
    %v2232 = vsub.s32 %v1809, %v2231
    %v2233 = vrot.slane %v593, %v2232
    %v2234 = vsel %vm1814, %v2233, %v2229
    %v2235 = vlaneseq
    %v2236 = vshrl.u32 %v2235, 7
    %v2237 = vsub.s32 %v1816, %v2236
    %v2238 = vrot.slane %v596, %v2237
    %v2239 = vsel %vm1821, %v2238, %v2234
    %v2240 = vlaneseq
    %v2241 = vshrl.u32 %v2240, 7
    %v2242 = vsub.s32 %v1823, %v2241
    %v2243 = vrot.slane %v599, %v2242
    %v2244 = vsel %vm1828, %v2243, %v2239
    %v2245 = vlaneseq
    %v2246 = vshrl.u32 %v2245, 7
    %v2247 = vsub.s32 %v1830, %v2246
    %v2248 = vrot.slane %v602, %v2247
    %v2249 = vsel %vm1835, %v2248, %v2244
    %v2250 = vlaneseq
    %v2251 = vshrl.u32 %v2250, 7
    %v2252 = vsub.s32 %v1837, %v2251
    %v2253 = vrot.slane %v605, %v2252
    %v2254 = vsel %vm1842, %v2253, %v2249
    %v2255 = vlaneseq
    %v2256 = vshrl.u32 %v2255, 7
    %v2257 = vsub.s32 %v1844, %v2256
    %v2258 = vrot.slane %v608, %v2257
    %v2259 = vsel %vm1849, %v2258, %v2254
    %v2260 = vlaneseq
    %v2261 = vshrl.u32 %v2260, 7
    %v2262 = vsub.s32 %v1851, %v2261
    %v2263 = vrot.slane %v611, %v2262
    %v2264 = vsel %vm1856, %v2263, %v2259
    %v2265 = vlaneseq
    %v2266 = vshrl.u32 %v2265, 7
    %v2267 = vsub.s32 %v1858, %v2266
    %v2268 = vrot.slane %v614, %v2267
    %v2269 = vsel %vm1863, %v2268, %v2264
    %v2270 = vlaneseq
    %v2271 = vshrl.u32 %v2270, 7
    %v2272 = vsub.s32 %v1865, %v2271
    %v2273 = vrot.slane %v617, %v2272
    %v2274 = vsel %vm1870, %v2273, %v2269
    %v2275 = vlaneseq
    %v2276 = vshrl.u32 %v2275, 7
    %v2277 = vsub.s32 %v1872, %v2276
    %v2278 = vrot.slane %v620, %v2277
    %v2279 = vsel %vm1877, %v2278, %v2274
    %v2280 = vlaneseq
    %v2281 = vshrl.u32 %v2280, 7
    %v2282 = vsub.s32 %v1879, %v2281
    %v2283 = vrot.slane %v623, %v2282
    %v2284 = vsel %vm1884, %v2283, %v2279
    %v2285 = vlaneseq
    %v2286 = vshrl.u32 %v2285, 7
    %v2287 = vsub.s32 %v1886, %v2286
    %v2288 = vrot.slane %v626, %v2287
    %v2289 = vsel %vm1891, %v2288, %v2284
    %v2290 = vlaneseq
    %v2291 = vshrl.u32 %v2290, 7
    %v2292 = vsub.s32 %v1893, %v2291
    %v2293 = vrot.slane %v629, %v2292
    %v2294 = vsel %vm1898, %v2293, %v2289
    %v2295 = vlaneseq
    %v2296 = vshrl.u32 %v2295, 7
    %v2297 = vsub.s32 %v1790, %v2296
    %v2298 = vrot.slane %v632, %v2297
    %v2299 = vlaneseq
    %v2300 = vshrl.u32 %v2299, 7
    %v2301 = vsub.s32 %v1795, %v2300
    %v2302 = vrot.slane %v635, %v2301
    %v2303 = vsel %vm1800, %v2302, %v2298
    %v2304 = vlaneseq
    %v2305 = vshrl.u32 %v2304, 7
    %v2306 = vsub.s32 %v1802, %v2305
    %v2307 = vrot.slane %v638, %v2306
    %v2308 = vsel %vm1807, %v2307, %v2303
    %v2309 = vlaneseq
    %v2310 = vshrl.u32 %v2309, 7
    %v2311 = vsub.s32 %v1809, %v2310
    %v2312 = vrot.slane %v641, %v2311
    %v2313 = vsel %vm1814, %v2312, %v2308
    %v2314 = vlaneseq
    %v2315 = vshrl.u32 %v2314, 7
    %v2316 = vsub.s32 %v1816, %v2315
    %v2317 = vrot.slane %v644, %v2316
    %v2318 = vsel %vm1821, %v2317, %v2313
    %v2319 = vlaneseq
    %v2320 = vshrl.u32 %v2319, 7
    %v2321 = vsub.s32 %v1823, %v2320
    %v2322 = vrot.slane %v647, %v2321
    %v2323 = vsel %vm1828, %v2322, %v2318
    %v2324 = vlaneseq
    %v2325 = vshrl.u32 %v2324, 7
    %v2326 = vsub.s32 %v1830, %v2325
    %v2327 = vrot.slane %v650, %v2326
    %v2328 = vsel %vm1835, %v2327, %v2323
    %v2329 = vlaneseq
    %v2330 = vshrl.u32 %v2329, 7
    %v2331 = vsub.s32 %v1837, %v2330
    %v2332 = vrot.slane %v653, %v2331
    %v2333 = vsel %vm1842, %v2332, %v2328
    %v2334 = vlaneseq
    %v2335 = vshrl.u32 %v2334, 7
    %v2336 = vsub.s32 %v1844, %v2335
    %v2337 = vrot.slane %v656, %v2336
    %v2338 = vsel %vm1849, %v2337, %v2333
    %v2339 = vlaneseq
    %v2340 = vshrl.u32 %v2339, 7
    %v2341 = vsub.s32 %v1851, %v2340
    %v2342 = vrot.slane %v659, %v2341
    %v2343 = vsel %vm1856, %v2342, %v2338
    %v2344 = vlaneseq
    %v2345 = vshrl.u32 %v2344, 7
    %v2346 = vsub.s32 %v1858, %v2345
    %v2347 = vrot.slane %v662, %v2346
    %v2348 = vsel %vm1863, %v2347, %v2343
    %v2349 = vlaneseq
    %v2350 = vshrl.u32 %v2349, 7
    %v2351 = vsub.s32 %v1865, %v2350
    %v2352 = vrot.slane %v665, %v2351
    %v2353 = vsel %vm1870, %v2352, %v2348
    %v2354 = vlaneseq
    %v2355 = vshrl.u32 %v2354, 7
    %v2356 = vsub.s32 %v1872, %v2355
    %v2357 = vrot.slane %v668, %v2356
    %v2358 = vsel %vm1877, %v2357, %v2353
    %v2359 = vlaneseq
    %v2360 = vshrl.u32 %v2359, 7
    %v2361 = vsub.s32 %v1879, %v2360
    %v2362 = vrot.slane %v671, %v2361
    %v2363 = vsel %vm1884, %v2362, %v2358
    %v2364 = vlaneseq
    %v2365 = vshrl.u32 %v2364, 7
    %v2366 = vsub.s32 %v1886, %v2365
    %v2367 = vrot.slane %v674, %v2366
    %v2368 = vsel %vm1891, %v2367, %v2363
    %v2369 = vlaneseq
    %v2370 = vshrl.u32 %v2369, 7
    %v2371 = vsub.s32 %v1893, %v2370
    %v2372 = vrot.slane %v677, %v2371
    %v2373 = vsel %vm1898, %v2372, %v2368
    %v2374 = vlaneseq
    %v2375 = vshrl.u32 %v2374, 7
    %v2376 = vsub.s32 %v1790, %v2375
    %v2377 = vrot.slane %v680, %v2376
    %v2378 = vlaneseq
    %v2379 = vshrl.u32 %v2378, 7
    %v2380 = vsub.s32 %v1795, %v2379
    %v2381 = vrot.slane %v683, %v2380
    %v2382 = vsel %vm1800, %v2381, %v2377
    %v2383 = vlaneseq
    %v2384 = vshrl.u32 %v2383, 7
    %v2385 = vsub.s32 %v1802, %v2384
    %v2386 = vrot.slane %v686, %v2385
    %v2387 = vsel %vm1807, %v2386, %v2382
    %v2388 = vlaneseq
    %v2389 = vshrl.u32 %v2388, 7
    %v2390 = vsub.s32 %v1809, %v2389
    %v2391 = vrot.slane %v689, %v2390
    %v2392 = vsel %vm1814, %v2391, %v2387
    %v2393 = vlaneseq
    %v2394 = vshrl.u32 %v2393, 7
    %v2395 = vsub.s32 %v1816, %v2394
    %v2396 = vrot.slane %v692, %v2395
    %v2397 = vsel %vm1821, %v2396, %v2392
    %v2398 = vlaneseq
    %v2399 = vshrl.u32 %v2398, 7
    %v2400 = vsub.s32 %v1823, %v2399
    %v2401 = vrot.slane %v695, %v2400
    %v2402 = vsel %vm1828, %v2401, %v2397
    %v2403 = vlaneseq
    %v2404 = vshrl.u32 %v2403, 7
    %v2405 = vsub.s32 %v1830, %v2404
    %v2406 = vrot.slane %v698, %v2405
    %v2407 = vsel %vm1835, %v2406, %v2402
    %v2408 = vlaneseq
    %v2409 = vshrl.u32 %v2408, 7
    %v2410 = vsub.s32 %v1837, %v2409
    %v2411 = vrot.slane %v701, %v2410
    %v2412 = vsel %vm1842, %v2411, %v2407
    %v2413 = vlaneseq
    %v2414 = vshrl.u32 %v2413, 7
    %v2415 = vsub.s32 %v1844, %v2414
    %v2416 = vrot.slane %v704, %v2415
    %v2417 = vsel %vm1849, %v2416, %v2412
    %v2418 = vlaneseq
    %v2419 = vshrl.u32 %v2418, 7
    %v2420 = vsub.s32 %v1851, %v2419
    %v2421 = vrot.slane %v707, %v2420
    %v2422 = vsel %vm1856, %v2421, %v2417
    %v2423 = vlaneseq
    %v2424 = vshrl.u32 %v2423, 7
    %v2425 = vsub.s32 %v1858, %v2424
    %v2426 = vrot.slane %v710, %v2425
    %v2427 = vsel %vm1863, %v2426, %v2422
    %v2428 = vlaneseq
    %v2429 = vshrl.u32 %v2428, 7
    %v2430 = vsub.s32 %v1865, %v2429
    %v2431 = vrot.slane %v713, %v2430
    %v2432 = vsel %vm1870, %v2431, %v2427
    %v2433 = vlaneseq
    %v2434 = vshrl.u32 %v2433, 7
    %v2435 = vsub.s32 %v1872, %v2434
    %v2436 = vrot.slane %v716, %v2435
    %v2437 = vsel %vm1877, %v2436, %v2432
    %v2438 = vlaneseq
    %v2439 = vshrl.u32 %v2438, 7
    %v2440 = vsub.s32 %v1879, %v2439
    %v2441 = vrot.slane %v719, %v2440
    %v2442 = vsel %vm1884, %v2441, %v2437
    %v2443 = vlaneseq
    %v2444 = vshrl.u32 %v2443, 7
    %v2445 = vsub.s32 %v1886, %v2444
    %v2446 = vrot.slane %v722, %v2445
    %v2447 = vsel %vm1891, %v2446, %v2442
    %v2448 = vlaneseq
    %v2449 = vshrl.u32 %v2448, 7
    %v2450 = vsub.s32 %v1893, %v2449
    %v2451 = vrot.slane %v725, %v2450
    %v2452 = vsel %vm1898, %v2451, %v2447
    %v2453 = vlaneseq
    %v2454 = vshrl.u32 %v2453, 7
    %v2455 = vsub.s32 %v1790, %v2454
    %v2456 = vrot.slane %v728, %v2455
    %v2457 = vlaneseq
    %v2458 = vshrl.u32 %v2457, 7
    %v2459 = vsub.s32 %v1795, %v2458
    %v2460 = vrot.slane %v731, %v2459
    %v2461 = vsel %vm1800, %v2460, %v2456
    %v2462 = vlaneseq
    %v2463 = vshrl.u32 %v2462, 7
    %v2464 = vsub.s32 %v1802, %v2463
    %v2465 = vrot.slane %v734, %v2464
    %v2466 = vsel %vm1807, %v2465, %v2461
    %v2467 = vlaneseq
    %v2468 = vshrl.u32 %v2467, 7
    %v2469 = vsub.s32 %v1809, %v2468
    %v2470 = vrot.slane %v737, %v2469
    %v2471 = vsel %vm1814, %v2470, %v2466
    %v2472 = vlaneseq
    %v2473 = vshrl.u32 %v2472, 7
    %v2474 = vsub.s32 %v1816, %v2473
    %v2475 = vrot.slane %v740, %v2474
    %v2476 = vsel %vm1821, %v2475, %v2471
    %v2477 = vlaneseq
    %v2478 = vshrl.u32 %v2477, 7
    %v2479 = vsub.s32 %v1823, %v2478
    %v2480 = vrot.slane %v743, %v2479
    %v2481 = vsel %vm1828, %v2480, %v2476
    %v2482 = vlaneseq
    %v2483 = vshrl.u32 %v2482, 7
    %v2484 = vsub.s32 %v1830, %v2483
    %v2485 = vrot.slane %v746, %v2484
    %v2486 = vsel %vm1835, %v2485, %v2481
    %v2487 = vlaneseq
    %v2488 = vshrl.u32 %v2487, 7
    %v2489 = vsub.s32 %v1837, %v2488
    %v2490 = vrot.slane %v749, %v2489
    %v2491 = vsel %vm1842, %v2490, %v2486
    %v2492 = vlaneseq
    %v2493 = vshrl.u32 %v2492, 7
    %v2494 = vsub.s32 %v1844, %v2493
    %v2495 = vrot.slane %v752, %v2494
    %v2496 = vsel %vm1849, %v2495, %v2491
    %v2497 = vlaneseq
    %v2498 = vshrl.u32 %v2497, 7
    %v2499 = vsub.s32 %v1851, %v2498
    %v2500 = vrot.slane %v755, %v2499
    %v2501 = vsel %vm1856, %v2500, %v2496
    %v2502 = vlaneseq
    %v2503 = vshrl.u32 %v2502, 7
    %v2504 = vsub.s32 %v1858, %v2503
    %v2505 = vrot.slane %v758, %v2504
    %v2506 = vsel %vm1863, %v2505, %v2501
    %v2507 = vlaneseq
    %v2508 = vshrl.u32 %v2507, 7
    %v2509 = vsub.s32 %v1865, %v2508
    %v2510 = vrot.slane %v761, %v2509
    %v2511 = vsel %vm1870, %v2510, %v2506
    %v2512 = vlaneseq
    %v2513 = vshrl.u32 %v2512, 7
    %v2514 = vsub.s32 %v1872, %v2513
    %v2515 = vrot.slane %v764, %v2514
    %v2516 = vsel %vm1877, %v2515, %v2511
    %v2517 = vlaneseq
    %v2518 = vshrl.u32 %v2517, 7
    %v2519 = vsub.s32 %v1879, %v2518
    %v2520 = vrot.slane %v767, %v2519
    %v2521 = vsel %vm1884, %v2520, %v2516
    %v2522 = vlaneseq
    %v2523 = vshrl.u32 %v2522, 7
    %v2524 = vsub.s32 %v1886, %v2523
    %v2525 = vrot.slane %v770, %v2524
    %v2526 = vsel %vm1891, %v2525, %v2521
    %v2527 = vlaneseq
    %v2528 = vshrl.u32 %v2527, 7
    %v2529 = vsub.s32 %v1893, %v2528
    %v2530 = vrot.slane %v773, %v2529
    %v2531 = vsel %vm1898, %v2530, %v2526
    %v2532 = vlaneseq
    %v2533 = vshrl.u32 %v2532, 7
    %v2534 = vsub.s32 %v1790, %v2533
    %v2535 = vrot.slane %v776, %v2534
    %v2536 = vlaneseq
    %v2537 = vshrl.u32 %v2536, 7
    %v2538 = vsub.s32 %v1795, %v2537
    %v2539 = vrot.slane %v779, %v2538
    %v2540 = vsel %vm1800, %v2539, %v2535
    %v2541 = vlaneseq
    %v2542 = vshrl.u32 %v2541, 7
    %v2543 = vsub.s32 %v1802, %v2542
    %v2544 = vrot.slane %v782, %v2543
    %v2545 = vsel %vm1807, %v2544, %v2540
    %v2546 = vlaneseq
    %v2547 = vshrl.u32 %v2546, 7
    %v2548 = vsub.s32 %v1809, %v2547
    %v2549 = vrot.slane %v785, %v2548
    %v2550 = vsel %vm1814, %v2549, %v2545
    %v2551 = vlaneseq
    %v2552 = vshrl.u32 %v2551, 7
    %v2553 = vsub.s32 %v1816, %v2552
    %v2554 = vrot.slane %v788, %v2553
    %v2555 = vsel %vm1821, %v2554, %v2550
    %v2556 = vlaneseq
    %v2557 = vshrl.u32 %v2556, 7
    %v2558 = vsub.s32 %v1823, %v2557
    %v2559 = vrot.slane %v791, %v2558
    %v2560 = vsel %vm1828, %v2559, %v2555
    %v2561 = vlaneseq
    %v2562 = vshrl.u32 %v2561, 7
    %v2563 = vsub.s32 %v1830, %v2562
    %v2564 = vrot.slane %v794, %v2563
    %v2565 = vsel %vm1835, %v2564, %v2560
    %v2566 = vlaneseq
    %v2567 = vshrl.u32 %v2566, 7
    %v2568 = vsub.s32 %v1837, %v2567
    %v2569 = vrot.slane %v797, %v2568
    %v2570 = vsel %vm1842, %v2569, %v2565
    %v2571 = vlaneseq
    %v2572 = vshrl.u32 %v2571, 7
    %v2573 = vsub.s32 %v1844, %v2572
    %v2574 = vrot.slane %v800, %v2573
    %v2575 = vsel %vm1849, %v2574, %v2570
    %v2576 = vlaneseq
    %v2577 = vshrl.u32 %v2576, 7
    %v2578 = vsub.s32 %v1851, %v2577
    %v2579 = vrot.slane %v803, %v2578
    %v2580 = vsel %vm1856, %v2579, %v2575
    %v2581 = vlaneseq
    %v2582 = vshrl.u32 %v2581, 7
    %v2583 = vsub.s32 %v1858, %v2582
    %v2584 = vrot.slane %v806, %v2583
    %v2585 = vsel %vm1863, %v2584, %v2580
    %v2586 = vlaneseq
    %v2587 = vshrl.u32 %v2586, 7
    %v2588 = vsub.s32 %v1865, %v2587
    %v2589 = vrot.slane %v809, %v2588
    %v2590 = vsel %vm1870, %v2589, %v2585
    %v2591 = vlaneseq
    %v2592 = vshrl.u32 %v2591, 7
    %v2593 = vsub.s32 %v1872, %v2592
    %v2594 = vrot.slane %v812, %v2593
    %v2595 = vsel %vm1877, %v2594, %v2590
    %v2596 = vlaneseq
    %v2597 = vshrl.u32 %v2596, 7
    %v2598 = vsub.s32 %v1879, %v2597
    %v2599 = vrot.slane %v815, %v2598
    %v2600 = vsel %vm1884, %v2599, %v2595
    %v2601 = vlaneseq
    %v2602 = vshrl.u32 %v2601, 7
    %v2603 = vsub.s32 %v1886, %v2602
    %v2604 = vrot.slane %v818, %v2603
    %v2605 = vsel %vm1891, %v2604, %v2600
    %v2606 = vlaneseq
    %v2607 = vshrl.u32 %v2606, 7
    %v2608 = vsub.s32 %v1893, %v2607
    %v2609 = vrot.slane %v821, %v2608
    %v2610 = vsel %vm1898, %v2609, %v2605
    %v2611 = vlaneseq
    %v2612 = vshrl.u32 %v2611, 7
    %v2613 = vsub.s32 %v1790, %v2612
    %v2614 = vrot.slane %v824, %v2613
    %v2615 = vlaneseq
    %v2616 = vshrl.u32 %v2615, 7
    %v2617 = vsub.s32 %v1795, %v2616
    %v2618 = vrot.slane %v827, %v2617
    %v2619 = vsel %vm1800, %v2618, %v2614
    %v2620 = vlaneseq
    %v2621 = vshrl.u32 %v2620, 7
    %v2622 = vsub.s32 %v1802, %v2621
    %v2623 = vrot.slane %v830, %v2622
    %v2624 = vsel %vm1807, %v2623, %v2619
    %v2625 = vlaneseq
    %v2626 = vshrl.u32 %v2625, 7
    %v2627 = vsub.s32 %v1809, %v2626
    %v2628 = vrot.slane %v833, %v2627
    %v2629 = vsel %vm1814, %v2628, %v2624
    %v2630 = vlaneseq
    %v2631 = vshrl.u32 %v2630, 7
    %v2632 = vsub.s32 %v1816, %v2631
    %v2633 = vrot.slane %v836, %v2632
    %v2634 = vsel %vm1821, %v2633, %v2629
    %v2635 = vlaneseq
    %v2636 = vshrl.u32 %v2635, 7
    %v2637 = vsub.s32 %v1823, %v2636
    %v2638 = vrot.slane %v839, %v2637
    %v2639 = vsel %vm1828, %v2638, %v2634
    %v2640 = vlaneseq
    %v2641 = vshrl.u32 %v2640, 7
    %v2642 = vsub.s32 %v1830, %v2641
    %v2643 = vrot.slane %v842, %v2642
    %v2644 = vsel %vm1835, %v2643, %v2639
    %v2645 = vlaneseq
    %v2646 = vshrl.u32 %v2645, 7
    %v2647 = vsub.s32 %v1837, %v2646
    %v2648 = vrot.slane %v845, %v2647
    %v2649 = vsel %vm1842, %v2648, %v2644
    %v2650 = vlaneseq
    %v2651 = vshrl.u32 %v2650, 7
    %v2652 = vsub.s32 %v1844, %v2651
    %v2653 = vrot.slane %v848, %v2652
    %v2654 = vsel %vm1849, %v2653, %v2649
    %v2655 = vlaneseq
    %v2656 = vshrl.u32 %v2655, 7
    %v2657 = vsub.s32 %v1851, %v2656
    %v2658 = vrot.slane %v851, %v2657
    %v2659 = vsel %vm1856, %v2658, %v2654
    %v2660 = vlaneseq
    %v2661 = vshrl.u32 %v2660, 7
    %v2662 = vsub.s32 %v1858, %v2661
    %v2663 = vrot.slane %v854, %v2662
    %v2664 = vsel %vm1863, %v2663, %v2659
    %v2665 = vlaneseq
    %v2666 = vshrl.u32 %v2665, 7
    %v2667 = vsub.s32 %v1865, %v2666
    %v2668 = vrot.slane %v857, %v2667
    %v2669 = vsel %vm1870, %v2668, %v2664
    %v2670 = vlaneseq
    %v2671 = vshrl.u32 %v2670, 7
    %v2672 = vsub.s32 %v1872, %v2671
    %v2673 = vrot.slane %v860, %v2672
    %v2674 = vsel %vm1877, %v2673, %v2669
    %v2675 = vlaneseq
    %v2676 = vshrl.u32 %v2675, 7
    %v2677 = vsub.s32 %v1879, %v2676
    %v2678 = vrot.slane %v863, %v2677
    %v2679 = vsel %vm1884, %v2678, %v2674
    %v2680 = vlaneseq
    %v2681 = vshrl.u32 %v2680, 7
    %v2682 = vsub.s32 %v1886, %v2681
    %v2683 = vrot.slane %v866, %v2682
    %v2684 = vsel %vm1891, %v2683, %v2679
    %v2685 = vlaneseq
    %v2686 = vshrl.u32 %v2685, 7
    %v2687 = vsub.s32 %v1893, %v2686
    %v2688 = vrot.slane %v869, %v2687
    %v2689 = vsel %vm1898, %v2688, %v2684
    %v2690 = vlaneseq
    %v2691 = vshrl.u32 %v2690, 7
    %v2692 = vsub.s32 %v1790, %v2691
    %v2693 = vrot.slane %v872, %v2692
    %v2694 = vlaneseq
    %v2695 = vshrl.u32 %v2694, 7
    %v2696 = vsub.s32 %v1795, %v2695
    %v2697 = vrot.slane %v875, %v2696
    %v2698 = vsel %vm1800, %v2697, %v2693
    %v2699 = vlaneseq
    %v2700 = vshrl.u32 %v2699, 7
    %v2701 = vsub.s32 %v1802, %v2700
    %v2702 = vrot.slane %v878, %v2701
    %v2703 = vsel %vm1807, %v2702, %v2698
    %v2704 = vlaneseq
    %v2705 = vshrl.u32 %v2704, 7
    %v2706 = vsub.s32 %v1809, %v2705
    %v2707 = vrot.slane %v881, %v2706
    %v2708 = vsel %vm1814, %v2707, %v2703
    %v2709 = vlaneseq
    %v2710 = vshrl.u32 %v2709, 7
    %v2711 = vsub.s32 %v1816, %v2710
    %v2712 = vrot.slane %v884, %v2711
    %v2713 = vsel %vm1821, %v2712, %v2708
    %v2714 = vlaneseq
    %v2715 = vshrl.u32 %v2714, 7
    %v2716 = vsub.s32 %v1823, %v2715
    %v2717 = vrot.slane %v887, %v2716
    %v2718 = vsel %vm1828, %v2717, %v2713
    %v2719 = vlaneseq
    %v2720 = vshrl.u32 %v2719, 7
    %v2721 = vsub.s32 %v1830, %v2720
    %v2722 = vrot.slane %v890, %v2721
    %v2723 = vsel %vm1835, %v2722, %v2718
    %v2724 = vlaneseq
    %v2725 = vshrl.u32 %v2724, 7
    %v2726 = vsub.s32 %v1837, %v2725
    %v2727 = vrot.slane %v893, %v2726
    %v2728 = vsel %vm1842, %v2727, %v2723
    %v2729 = vlaneseq
    %v2730 = vshrl.u32 %v2729, 7
    %v2731 = vsub.s32 %v1844, %v2730
    %v2732 = vrot.slane %v896, %v2731
    %v2733 = vsel %vm1849, %v2732, %v2728
    %v2734 = vlaneseq
    %v2735 = vshrl.u32 %v2734, 7
    %v2736 = vsub.s32 %v1851, %v2735
    %v2737 = vrot.slane %v899, %v2736
    %v2738 = vsel %vm1856, %v2737, %v2733
    %v2739 = vlaneseq
    %v2740 = vshrl.u32 %v2739, 7
    %v2741 = vsub.s32 %v1858, %v2740
    %v2742 = vrot.slane %v902, %v2741
    %v2743 = vsel %vm1863, %v2742, %v2738
    %v2744 = vlaneseq
    %v2745 = vshrl.u32 %v2744, 7
    %v2746 = vsub.s32 %v1865, %v2745
    %v2747 = vrot.slane %v905, %v2746
    %v2748 = vsel %vm1870, %v2747, %v2743
    %v2749 = vlaneseq
    %v2750 = vshrl.u32 %v2749, 7
    %v2751 = vsub.s32 %v1872, %v2750
    %v2752 = vrot.slane %v908, %v2751
    %v2753 = vsel %vm1877, %v2752, %v2748
    %v2754 = vlaneseq
    %v2755 = vshrl.u32 %v2754, 7
    %v2756 = vsub.s32 %v1879, %v2755
    %v2757 = vrot.slane %v911, %v2756
    %v2758 = vsel %vm1884, %v2757, %v2753
    %v2759 = vlaneseq
    %v2760 = vshrl.u32 %v2759, 7
    %v2761 = vsub.s32 %v1886, %v2760
    %v2762 = vrot.slane %v914, %v2761
    %v2763 = vsel %vm1891, %v2762, %v2758
    %v2764 = vlaneseq
    %v2765 = vshrl.u32 %v2764, 7
    %v2766 = vsub.s32 %v1893, %v2765
    %v2767 = vrot.slane %v917, %v2766
    %v2768 = vsel %vm1898, %v2767, %v2763
    %v2769 = vlaneseq
    %v2770 = vshrl.u32 %v2769, 7
    %v2771 = vsub.s32 %v1790, %v2770
    %v2772 = vrot.slane %v920, %v2771
    %v2773 = vlaneseq
    %v2774 = vshrl.u32 %v2773, 7
    %v2775 = vsub.s32 %v1795, %v2774
    %v2776 = vrot.slane %v923, %v2775
    %v2777 = vsel %vm1800, %v2776, %v2772
    %v2778 = vlaneseq
    %v2779 = vshrl.u32 %v2778, 7
    %v2780 = vsub.s32 %v1802, %v2779
    %v2781 = vrot.slane %v926, %v2780
    %v2782 = vsel %vm1807, %v2781, %v2777
    %v2783 = vlaneseq
    %v2784 = vshrl.u32 %v2783, 7
    %v2785 = vsub.s32 %v1809, %v2784
    %v2786 = vrot.slane %v929, %v2785
    %v2787 = vsel %vm1814, %v2786, %v2782
    %v2788 = vlaneseq
    %v2789 = vshrl.u32 %v2788, 7
    %v2790 = vsub.s32 %v1816, %v2789
    %v2791 = vrot.slane %v932, %v2790
    %v2792 = vsel %vm1821, %v2791, %v2787
    %v2793 = vlaneseq
    %v2794 = vshrl.u32 %v2793, 7
    %v2795 = vsub.s32 %v1823, %v2794
    %v2796 = vrot.slane %v935, %v2795
    %v2797 = vsel %vm1828, %v2796, %v2792
    %v2798 = vlaneseq
    %v2799 = vshrl.u32 %v2798, 7
    %v2800 = vsub.s32 %v1830, %v2799
    %v2801 = vrot.slane %v938, %v2800
    %v2802 = vsel %vm1835, %v2801, %v2797
    %v2803 = vlaneseq
    %v2804 = vshrl.u32 %v2803, 7
    %v2805 = vsub.s32 %v1837, %v2804
    %v2806 = vrot.slane %v941, %v2805
    %v2807 = vsel %vm1842, %v2806, %v2802
    %v2808 = vlaneseq
    %v2809 = vshrl.u32 %v2808, 7
    %v2810 = vsub.s32 %v1844, %v2809
    %v2811 = vrot.slane %v944, %v2810
    %v2812 = vsel %vm1849, %v2811, %v2807
    %v2813 = vlaneseq
    %v2814 = vshrl.u32 %v2813, 7
    %v2815 = vsub.s32 %v1851, %v2814
    %v2816 = vrot.slane %v947, %v2815
    %v2817 = vsel %vm1856, %v2816, %v2812
    %v2818 = vlaneseq
    %v2819 = vshrl.u32 %v2818, 7
    %v2820 = vsub.s32 %v1858, %v2819
    %v2821 = vrot.slane %v950, %v2820
    %v2822 = vsel %vm1863, %v2821, %v2817
    %v2823 = vlaneseq
    %v2824 = vshrl.u32 %v2823, 7
    %v2825 = vsub.s32 %v1865, %v2824
    %v2826 = vrot.slane %v953, %v2825
    %v2827 = vsel %vm1870, %v2826, %v2822
    %v2828 = vlaneseq
    %v2829 = vshrl.u32 %v2828, 7
    %v2830 = vsub.s32 %v1872, %v2829
    %v2831 = vrot.slane %v956, %v2830
    %v2832 = vsel %vm1877, %v2831, %v2827
    %v2833 = vlaneseq
    %v2834 = vshrl.u32 %v2833, 7
    %v2835 = vsub.s32 %v1879, %v2834
    %v2836 = vrot.slane %v959, %v2835
    %v2837 = vsel %vm1884, %v2836, %v2832
    %v2838 = vlaneseq
    %v2839 = vshrl.u32 %v2838, 7
    %v2840 = vsub.s32 %v1886, %v2839
    %v2841 = vrot.slane %v962, %v2840
    %v2842 = vsel %vm1891, %v2841, %v2837
    %v2843 = vlaneseq
    %v2844 = vshrl.u32 %v2843, 7
    %v2845 = vsub.s32 %v1893, %v2844
    %v2846 = vrot.slane %v965, %v2845
    %v2847 = vsel %vm1898, %v2846, %v2842
    %v2848 = vlaneseq
    %v2849 = vshrl.u32 %v2848, 7
    %v2850 = vsub.s32 %v1790, %v2849
    %v2851 = vrot.slane %v968, %v2850
    %v2852 = vlaneseq
    %v2853 = vshrl.u32 %v2852, 7
    %v2854 = vsub.s32 %v1795, %v2853
    %v2855 = vrot.slane %v971, %v2854
    %v2856 = vsel %vm1800, %v2855, %v2851
    %v2857 = vlaneseq
    %v2858 = vshrl.u32 %v2857, 7
    %v2859 = vsub.s32 %v1802, %v2858
    %v2860 = vrot.slane %v974, %v2859
    %v2861 = vsel %vm1807, %v2860, %v2856
    %v2862 = vlaneseq
    %v2863 = vshrl.u32 %v2862, 7
    %v2864 = vsub.s32 %v1809, %v2863
    %v2865 = vrot.slane %v977, %v2864
    %v2866 = vsel %vm1814, %v2865, %v2861
    %v2867 = vlaneseq
    %v2868 = vshrl.u32 %v2867, 7
    %v2869 = vsub.s32 %v1816, %v2868
    %v2870 = vrot.slane %v980, %v2869
    %v2871 = vsel %vm1821, %v2870, %v2866
    %v2872 = vlaneseq
    %v2873 = vshrl.u32 %v2872, 7
    %v2874 = vsub.s32 %v1823, %v2873
    %v2875 = vrot.slane %v983, %v2874
    %v2876 = vsel %vm1828, %v2875, %v2871
    %v2877 = vlaneseq
    %v2878 = vshrl.u32 %v2877, 7
    %v2879 = vsub.s32 %v1830, %v2878
    %v2880 = vrot.slane %v986, %v2879
    %v2881 = vsel %vm1835, %v2880, %v2876
    %v2882 = vlaneseq
    %v2883 = vshrl.u32 %v2882, 7
    %v2884 = vsub.s32 %v1837, %v2883
    %v2885 = vrot.slane %v989, %v2884
    %v2886 = vsel %vm1842, %v2885, %v2881
    %v2887 = vlaneseq
    %v2888 = vshrl.u32 %v2887, 7
    %v2889 = vsub.s32 %v1844, %v2888
    %v2890 = vrot.slane %v992, %v2889
    %v2891 = vsel %vm1849, %v2890, %v2886
    %v2892 = vlaneseq
    %v2893 = vshrl.u32 %v2892, 7
    %v2894 = vsub.s32 %v1851, %v2893
    %v2895 = vrot.slane %v995, %v2894
    %v2896 = vsel %vm1856, %v2895, %v2891
    %v2897 = vlaneseq
    %v2898 = vshrl.u32 %v2897, 7
    %v2899 = vsub.s32 %v1858, %v2898
    %v2900 = vrot.slane %v998, %v2899
    %v2901 = vsel %vm1863, %v2900, %v2896
    %v2902 = vlaneseq
    %v2903 = vshrl.u32 %v2902, 7
    %v2904 = vsub.s32 %v1865, %v2903
    %v2905 = vrot.slane %v1001, %v2904
    %v2906 = vsel %vm1870, %v2905, %v2901
    %v2907 = vlaneseq
    %v2908 = vshrl.u32 %v2907, 7
    %v2909 = vsub.s32 %v1872, %v2908
    %v2910 = vrot.slane %v1004, %v2909
    %v2911 = vsel %vm1877, %v2910, %v2906
    %v2912 = vlaneseq
    %v2913 = vshrl.u32 %v2912, 7
    %v2914 = vsub.s32 %v1879, %v2913
    %v2915 = vrot.slane %v1007, %v2914
    %v2916 = vsel %vm1884, %v2915, %v2911
    %v2917 = vlaneseq
    %v2918 = vshrl.u32 %v2917, 7
    %v2919 = vsub.s32 %v1886, %v2918
    %v2920 = vrot.slane %v1010, %v2919
    %v2921 = vsel %vm1891, %v2920, %v2916
    %v2922 = vlaneseq
    %v2923 = vshrl.u32 %v2922, 7
    %v2924 = vsub.s32 %v1893, %v2923
    %v2925 = vrot.slane %v1013, %v2924
    %v2926 = vsel %vm1898, %v2925, %v2921
    %v2927 = vlaneseq
    %v2928 = vshrl.u32 %v2927, 7
    %v2929 = vsub.s32 %v1790, %v2928
    %v2930 = vrot.slane %v1016, %v2929
    %v2931 = vlaneseq
    %v2932 = vshrl.u32 %v2931, 7
    %v2933 = vsub.s32 %v1795, %v2932
    %v2934 = vrot.slane %v1019, %v2933
    %v2935 = vsel %vm1800, %v2934, %v2930
    %v2936 = vlaneseq
    %v2937 = vshrl.u32 %v2936, 7
    %v2938 = vsub.s32 %v1802, %v2937
    %v2939 = vrot.slane %v1022, %v2938
    %v2940 = vsel %vm1807, %v2939, %v2935
    %v2941 = vlaneseq
    %v2942 = vshrl.u32 %v2941, 7
    %v2943 = vsub.s32 %v1809, %v2942
    %v2944 = vrot.slane %v1025, %v2943
    %v2945 = vsel %vm1814, %v2944, %v2940
    %v2946 = vlaneseq
    %v2947 = vshrl.u32 %v2946, 7
    %v2948 = vsub.s32 %v1816, %v2947
    %v2949 = vrot.slane %v1028, %v2948
    %v2950 = vsel %vm1821, %v2949, %v2945
    %v2951 = vlaneseq
    %v2952 = vshrl.u32 %v2951, 7
    %v2953 = vsub.s32 %v1823, %v2952
    %v2954 = vrot.slane %v1031, %v2953
    %v2955 = vsel %vm1828, %v2954, %v2950
    %v2956 = vlaneseq
    %v2957 = vshrl.u32 %v2956, 7
    %v2958 = vsub.s32 %v1830, %v2957
    %v2959 = vrot.slane %v1034, %v2958
    %v2960 = vsel %vm1835, %v2959, %v2955
    %v2961 = vlaneseq
    %v2962 = vshrl.u32 %v2961, 7
    %v2963 = vsub.s32 %v1837, %v2962
    %v2964 = vrot.slane %v1037, %v2963
    %v2965 = vsel %vm1842, %v2964, %v2960
    %v2966 = vlaneseq
    %v2967 = vshrl.u32 %v2966, 7
    %v2968 = vsub.s32 %v1844, %v2967
    %v2969 = vrot.slane %v1040, %v2968
    %v2970 = vsel %vm1849, %v2969, %v2965
    %v2971 = vlaneseq
    %v2972 = vshrl.u32 %v2971, 7
    %v2973 = vsub.s32 %v1851, %v2972
    %v2974 = vrot.slane %v1043, %v2973
    %v2975 = vsel %vm1856, %v2974, %v2970
    %v2976 = vlaneseq
    %v2977 = vshrl.u32 %v2976, 7
    %v2978 = vsub.s32 %v1858, %v2977
    %v2979 = vrot.slane %v1046, %v2978
    %v2980 = vsel %vm1863, %v2979, %v2975
    %v2981 = vlaneseq
    %v2982 = vshrl.u32 %v2981, 7
    %v2983 = vsub.s32 %v1865, %v2982
    %v2984 = vrot.slane %v1049, %v2983
    %v2985 = vsel %vm1870, %v2984, %v2980
    %v2986 = vlaneseq
    %v2987 = vshrl.u32 %v2986, 7
    %v2988 = vsub.s32 %v1872, %v2987
    %v2989 = vrot.slane %v1052, %v2988
    %v2990 = vsel %vm1877, %v2989, %v2985
    %v2991 = vlaneseq
    %v2992 = vshrl.u32 %v2991, 7
    %v2993 = vsub.s32 %v1879, %v2992
    %v2994 = vrot.slane %v1055, %v2993
    %v2995 = vsel %vm1884, %v2994, %v2990
    %v2996 = vlaneseq
    %v2997 = vshrl.u32 %v2996, 7
    %v2998 = vsub.s32 %v1886, %v2997
    %v2999 = vrot.slane %v1058, %v2998
    %v3000 = vsel %vm1891, %v2999, %v2995
    %v3001 = vlaneseq
    %v3002 = vshrl.u32 %v3001, 7
    %v3003 = vsub.s32 %v1893, %v3002
    %v3004 = vrot.slane %v1061, %v3003
    %v3005 = vsel %vm1898, %v3004, %v3000
    %v3006 = vlaneseq
    %v3007 = vshrl.u32 %v3006, 7
    %v3008 = vsub.s32 %v1790, %v3007
    %v3009 = vrot.slane %v1064, %v3008
    %v3010 = vlaneseq
    %v3011 = vshrl.u32 %v3010, 7
    %v3012 = vsub.s32 %v1795, %v3011
    %v3013 = vrot.slane %v1067, %v3012
    %v3014 = vsel %vm1800, %v3013, %v3009
    %v3015 = vlaneseq
    %v3016 = vshrl.u32 %v3015, 7
    %v3017 = vsub.s32 %v1802, %v3016
    %v3018 = vrot.slane %v1070, %v3017
    %v3019 = vsel %vm1807, %v3018, %v3014
    %v3020 = vlaneseq
    %v3021 = vshrl.u32 %v3020, 7
    %v3022 = vsub.s32 %v1809, %v3021
    %v3023 = vrot.slane %v1073, %v3022
    %v3024 = vsel %vm1814, %v3023, %v3019
    %v3025 = vlaneseq
    %v3026 = vshrl.u32 %v3025, 7
    %v3027 = vsub.s32 %v1816, %v3026
    %v3028 = vrot.slane %v1076, %v3027
    %v3029 = vsel %vm1821, %v3028, %v3024
    %v3030 = vlaneseq
    %v3031 = vshrl.u32 %v3030, 7
    %v3032 = vsub.s32 %v1823, %v3031
    %v3033 = vrot.slane %v1079, %v3032
    %v3034 = vsel %vm1828, %v3033, %v3029
    %v3035 = vlaneseq
    %v3036 = vshrl.u32 %v3035, 7
    %v3037 = vsub.s32 %v1830, %v3036
    %v3038 = vrot.slane %v1082, %v3037
    %v3039 = vsel %vm1835, %v3038, %v3034
    %v3040 = vlaneseq
    %v3041 = vshrl.u32 %v3040, 7
    %v3042 = vsub.s32 %v1837, %v3041
    %v3043 = vrot.slane %v1085, %v3042
    %v3044 = vsel %vm1842, %v3043, %v3039
    %v3045 = vlaneseq
    %v3046 = vshrl.u32 %v3045, 7
    %v3047 = vsub.s32 %v1844, %v3046
    %v3048 = vrot.slane %v1088, %v3047
    %v3049 = vsel %vm1849, %v3048, %v3044
    %v3050 = vlaneseq
    %v3051 = vshrl.u32 %v3050, 7
    %v3052 = vsub.s32 %v1851, %v3051
    %v3053 = vrot.slane %v1091, %v3052
    %v3054 = vsel %vm1856, %v3053, %v3049
    %v3055 = vlaneseq
    %v3056 = vshrl.u32 %v3055, 7
    %v3057 = vsub.s32 %v1858, %v3056
    %v3058 = vrot.slane %v1094, %v3057
    %v3059 = vsel %vm1863, %v3058, %v3054
    %v3060 = vlaneseq
    %v3061 = vshrl.u32 %v3060, 7
    %v3062 = vsub.s32 %v1865, %v3061
    %v3063 = vrot.slane %v1097, %v3062
    %v3064 = vsel %vm1870, %v3063, %v3059
    %v3065 = vlaneseq
    %v3066 = vshrl.u32 %v3065, 7
    %v3067 = vsub.s32 %v1872, %v3066
    %v3068 = vrot.slane %v1100, %v3067
    %v3069 = vsel %vm1877, %v3068, %v3064
    %v3070 = vlaneseq
    %v3071 = vshrl.u32 %v3070, 7
    %v3072 = vsub.s32 %v1879, %v3071
    %v3073 = vrot.slane %v1103, %v3072
    %v3074 = vsel %vm1884, %v3073, %v3069
    %v3075 = vlaneseq
    %v3076 = vshrl.u32 %v3075, 7
    %v3077 = vsub.s32 %v1886, %v3076
    %v3078 = vrot.slane %v1106, %v3077
    %v3079 = vsel %vm1891, %v3078, %v3074
    %v3080 = vlaneseq
    %v3081 = vshrl.u32 %v3080, 7
    %v3082 = vsub.s32 %v1893, %v3081
    %v3083 = vrot.slane %v1109, %v3082
    %v3084 = vsel %vm1898, %v3083, %v3079
    %v3085 = vlaneseq
    %v3086 = vshrl.u32 %v3085, 7
    %v3087 = vsub.s32 %v1790, %v3086
    %v3088 = vrot.slane %v1112, %v3087
    %v3089 = vlaneseq
    %v3090 = vshrl.u32 %v3089, 7
    %v3091 = vsub.s32 %v1795, %v3090
    %v3092 = vrot.slane %v1115, %v3091
    %v3093 = vsel %vm1800, %v3092, %v3088
    %v3094 = vlaneseq
    %v3095 = vshrl.u32 %v3094, 7
    %v3096 = vsub.s32 %v1802, %v3095
    %v3097 = vrot.slane %v1118, %v3096
    %v3098 = vsel %vm1807, %v3097, %v3093
    %v3099 = vlaneseq
    %v3100 = vshrl.u32 %v3099, 7
    %v3101 = vsub.s32 %v1809, %v3100
    %v3102 = vrot.slane %v1121, %v3101
    %v3103 = vsel %vm1814, %v3102, %v3098
    %v3104 = vlaneseq
    %v3105 = vshrl.u32 %v3104, 7
    %v3106 = vsub.s32 %v1816, %v3105
    %v3107 = vrot.slane %v1124, %v3106
    %v3108 = vsel %vm1821, %v3107, %v3103
    %v3109 = vlaneseq
    %v3110 = vshrl.u32 %v3109, 7
    %v3111 = vsub.s32 %v1823, %v3110
    %v3112 = vrot.slane %v1127, %v3111
    %v3113 = vsel %vm1828, %v3112, %v3108
    %v3114 = vlaneseq
    %v3115 = vshrl.u32 %v3114, 7
    %v3116 = vsub.s32 %v1830, %v3115
    %v3117 = vrot.slane %v1130, %v3116
    %v3118 = vsel %vm1835, %v3117, %v3113
    %v3119 = vlaneseq
    %v3120 = vshrl.u32 %v3119, 7
    %v3121 = vsub.s32 %v1837, %v3120
    %v3122 = vrot.slane %v1133, %v3121
    %v3123 = vsel %vm1842, %v3122, %v3118
    %v3124 = vlaneseq
    %v3125 = vshrl.u32 %v3124, 7
    %v3126 = vsub.s32 %v1844, %v3125
    %v3127 = vrot.slane %v1136, %v3126
    %v3128 = vsel %vm1849, %v3127, %v3123
    %v3129 = vlaneseq
    %v3130 = vshrl.u32 %v3129, 7
    %v3131 = vsub.s32 %v1851, %v3130
    %v3132 = vrot.slane %v1139, %v3131
    %v3133 = vsel %vm1856, %v3132, %v3128
    %v3134 = vlaneseq
    %v3135 = vshrl.u32 %v3134, 7
    %v3136 = vsub.s32 %v1858, %v3135
    %v3137 = vrot.slane %v1142, %v3136
    %v3138 = vsel %vm1863, %v3137, %v3133
    %v3139 = vlaneseq
    %v3140 = vshrl.u32 %v3139, 7
    %v3141 = vsub.s32 %v1865, %v3140
    %v3142 = vrot.slane %v1145, %v3141
    %v3143 = vsel %vm1870, %v3142, %v3138
    %v3144 = vlaneseq
    %v3145 = vshrl.u32 %v3144, 7
    %v3146 = vsub.s32 %v1872, %v3145
    %v3147 = vrot.slane %v1148, %v3146
    %v3148 = vsel %vm1877, %v3147, %v3143
    %v3149 = vlaneseq
    %v3150 = vshrl.u32 %v3149, 7
    %v3151 = vsub.s32 %v1879, %v3150
    %v3152 = vrot.slane %v1151, %v3151
    %v3153 = vsel %vm1884, %v3152, %v3148
    %v3154 = vlaneseq
    %v3155 = vshrl.u32 %v3154, 7
    %v3156 = vsub.s32 %v1886, %v3155
    %v3157 = vrot.slane %v1154, %v3156
    %v3158 = vsel %vm1891, %v3157, %v3153
    %v3159 = vlaneseq
    %v3160 = vshrl.u32 %v3159, 7
    %v3161 = vsub.s32 %v1893, %v3160
    %v3162 = vrot.slane %v1157, %v3161
    %v3163 = vsel %vm1898, %v3162, %v3158
    %v3164 = vlaneseq
    %v3165 = vshrl.u32 %v3164, 7
    %v3166 = vsub.s32 %v1790, %v3165
    %v3167 = vrot.slane %v1160, %v3166
    %v3168 = vlaneseq
    %v3169 = vshrl.u32 %v3168, 7
    %v3170 = vsub.s32 %v1795, %v3169
    %v3171 = vrot.slane %v1163, %v3170
    %v3172 = vsel %vm1800, %v3171, %v3167
    %v3173 = vlaneseq
    %v3174 = vshrl.u32 %v3173, 7
    %v3175 = vsub.s32 %v1802, %v3174
    %v3176 = vrot.slane %v1166, %v3175
    %v3177 = vsel %vm1807, %v3176, %v3172
    %v3178 = vlaneseq
    %v3179 = vshrl.u32 %v3178, 7
    %v3180 = vsub.s32 %v1809, %v3179
    %v3181 = vrot.slane %v1169, %v3180
    %v3182 = vsel %vm1814, %v3181, %v3177
    %v3183 = vlaneseq
    %v3184 = vshrl.u32 %v3183, 7
    %v3185 = vsub.s32 %v1816, %v3184
    %v3186 = vrot.slane %v1172, %v3185
    %v3187 = vsel %vm1821, %v3186, %v3182
    %v3188 = vlaneseq
    %v3189 = vshrl.u32 %v3188, 7
    %v3190 = vsub.s32 %v1823, %v3189
    %v3191 = vrot.slane %v1175, %v3190
    %v3192 = vsel %vm1828, %v3191, %v3187
    %v3193 = vlaneseq
    %v3194 = vshrl.u32 %v3193, 7
    %v3195 = vsub.s32 %v1830, %v3194
    %v3196 = vrot.slane %v1178, %v3195
    %v3197 = vsel %vm1835, %v3196, %v3192
    %v3198 = vlaneseq
    %v3199 = vshrl.u32 %v3198, 7
    %v3200 = vsub.s32 %v1837, %v3199
    %v3201 = vrot.slane %v1181, %v3200
    %v3202 = vsel %vm1842, %v3201, %v3197
    %v3203 = vlaneseq
    %v3204 = vshrl.u32 %v3203, 7
    %v3205 = vsub.s32 %v1844, %v3204
    %v3206 = vrot.slane %v1184, %v3205
    %v3207 = vsel %vm1849, %v3206, %v3202
    %v3208 = vlaneseq
    %v3209 = vshrl.u32 %v3208, 7
    %v3210 = vsub.s32 %v1851, %v3209
    %v3211 = vrot.slane %v1187, %v3210
    %v3212 = vsel %vm1856, %v3211, %v3207
    %v3213 = vlaneseq
    %v3214 = vshrl.u32 %v3213, 7
    %v3215 = vsub.s32 %v1858, %v3214
    %v3216 = vrot.slane %v1190, %v3215
    %v3217 = vsel %vm1863, %v3216, %v3212
    %v3218 = vlaneseq
    %v3219 = vshrl.u32 %v3218, 7
    %v3220 = vsub.s32 %v1865, %v3219
    %v3221 = vrot.slane %v1193, %v3220
    %v3222 = vsel %vm1870, %v3221, %v3217
    %v3223 = vlaneseq
    %v3224 = vshrl.u32 %v3223, 7
    %v3225 = vsub.s32 %v1872, %v3224
    %v3226 = vrot.slane %v1196, %v3225
    %v3227 = vsel %vm1877, %v3226, %v3222
    %v3228 = vlaneseq
    %v3229 = vshrl.u32 %v3228, 7
    %v3230 = vsub.s32 %v1879, %v3229
    %v3231 = vrot.slane %v1199, %v3230
    %v3232 = vsel %vm1884, %v3231, %v3227
    %v3233 = vlaneseq
    %v3234 = vshrl.u32 %v3233, 7
    %v3235 = vsub.s32 %v1886, %v3234
    %v3236 = vrot.slane %v1202, %v3235
    %v3237 = vsel %vm1891, %v3236, %v3232
    %v3238 = vlaneseq
    %v3239 = vshrl.u32 %v3238, 7
    %v3240 = vsub.s32 %v1893, %v3239
    %v3241 = vrot.slane %v1205, %v3240
    %v3242 = vsel %vm1898, %v3241, %v3237
    %v3243 = vlaneseq
    %v3244 = vshrl.u32 %v3243, 7
    %v3245 = vsub.s32 %v1790, %v3244
    %v3246 = vrot.slane %v1208, %v3245
    %v3247 = vlaneseq
    %v3248 = vshrl.u32 %v3247, 7
    %v3249 = vsub.s32 %v1795, %v3248
    %v3250 = vrot.slane %v1211, %v3249
    %v3251 = vsel %vm1800, %v3250, %v3246
    %v3252 = vlaneseq
    %v3253 = vshrl.u32 %v3252, 7
    %v3254 = vsub.s32 %v1802, %v3253
    %v3255 = vrot.slane %v1214, %v3254
    %v3256 = vsel %vm1807, %v3255, %v3251
    %v3257 = vlaneseq
    %v3258 = vshrl.u32 %v3257, 7
    %v3259 = vsub.s32 %v1809, %v3258
    %v3260 = vrot.slane %v1217, %v3259
    %v3261 = vsel %vm1814, %v3260, %v3256
    %v3262 = vlaneseq
    %v3263 = vshrl.u32 %v3262, 7
    %v3264 = vsub.s32 %v1816, %v3263
    %v3265 = vrot.slane %v1220, %v3264
    %v3266 = vsel %vm1821, %v3265, %v3261
    %v3267 = vlaneseq
    %v3268 = vshrl.u32 %v3267, 7
    %v3269 = vsub.s32 %v1823, %v3268
    %v3270 = vrot.slane %v1223, %v3269
    %v3271 = vsel %vm1828, %v3270, %v3266
    %v3272 = vlaneseq
    %v3273 = vshrl.u32 %v3272, 7
    %v3274 = vsub.s32 %v1830, %v3273
    %v3275 = vrot.slane %v1226, %v3274
    %v3276 = vsel %vm1835, %v3275, %v3271
    %v3277 = vlaneseq
    %v3278 = vshrl.u32 %v3277, 7
    %v3279 = vsub.s32 %v1837, %v3278
    %v3280 = vrot.slane %v1229, %v3279
    %v3281 = vsel %vm1842, %v3280, %v3276
    %v3282 = vlaneseq
    %v3283 = vshrl.u32 %v3282, 7
    %v3284 = vsub.s32 %v1844, %v3283
    %v3285 = vrot.slane %v1232, %v3284
    %v3286 = vsel %vm1849, %v3285, %v3281
    %v3287 = vlaneseq
    %v3288 = vshrl.u32 %v3287, 7
    %v3289 = vsub.s32 %v1851, %v3288
    %v3290 = vrot.slane %v1235, %v3289
    %v3291 = vsel %vm1856, %v3290, %v3286
    %v3292 = vlaneseq
    %v3293 = vshrl.u32 %v3292, 7
    %v3294 = vsub.s32 %v1858, %v3293
    %v3295 = vrot.slane %v1238, %v3294
    %v3296 = vsel %vm1863, %v3295, %v3291
    %v3297 = vlaneseq
    %v3298 = vshrl.u32 %v3297, 7
    %v3299 = vsub.s32 %v1865, %v3298
    %v3300 = vrot.slane %v1241, %v3299
    %v3301 = vsel %vm1870, %v3300, %v3296
    %v3302 = vlaneseq
    %v3303 = vshrl.u32 %v3302, 7
    %v3304 = vsub.s32 %v1872, %v3303
    %v3305 = vrot.slane %v1244, %v3304
    %v3306 = vsel %vm1877, %v3305, %v3301
    %v3307 = vlaneseq
    %v3308 = vshrl.u32 %v3307, 7
    %v3309 = vsub.s32 %v1879, %v3308
    %v3310 = vrot.slane %v1247, %v3309
    %v3311 = vsel %vm1884, %v3310, %v3306
    %v3312 = vlaneseq
    %v3313 = vshrl.u32 %v3312, 7
    %v3314 = vsub.s32 %v1886, %v3313
    %v3315 = vrot.slane %v1250, %v3314
    %v3316 = vsel %vm1891, %v3315, %v3311
    %v3317 = vlaneseq
    %v3318 = vshrl.u32 %v3317, 7
    %v3319 = vsub.s32 %v1893, %v3318
    %v3320 = vrot.slane %v1253, %v3319
    %v3321 = vsel %vm1898, %v3320, %v3316
    %v3322 = vlaneseq
    %v3323 = vshrl.u32 %v3322, 7
    %v3324 = vsub.s32 %v1790, %v3323
    %v3325 = vrot.slane %v1256, %v3324
    %v3326 = vlaneseq
    %v3327 = vshrl.u32 %v3326, 7
    %v3328 = vsub.s32 %v1795, %v3327
    %v3329 = vrot.slane %v1259, %v3328
    %v3330 = vsel %vm1800, %v3329, %v3325
    %v3331 = vlaneseq
    %v3332 = vshrl.u32 %v3331, 7
    %v3333 = vsub.s32 %v1802, %v3332
    %v3334 = vrot.slane %v1262, %v3333
    %v3335 = vsel %vm1807, %v3334, %v3330
    %v3336 = vlaneseq
    %v3337 = vshrl.u32 %v3336, 7
    %v3338 = vsub.s32 %v1809, %v3337
    %v3339 = vrot.slane %v1265, %v3338
    %v3340 = vsel %vm1814, %v3339, %v3335
    %v3341 = vlaneseq
    %v3342 = vshrl.u32 %v3341, 7
    %v3343 = vsub.s32 %v1816, %v3342
    %v3344 = vrot.slane %v1268, %v3343
    %v3345 = vsel %vm1821, %v3344, %v3340
    %v3346 = vlaneseq
    %v3347 = vshrl.u32 %v3346, 7
    %v3348 = vsub.s32 %v1823, %v3347
    %v3349 = vrot.slane %v1271, %v3348
    %v3350 = vsel %vm1828, %v3349, %v3345
    %v3351 = vlaneseq
    %v3352 = vshrl.u32 %v3351, 7
    %v3353 = vsub.s32 %v1830, %v3352
    %v3354 = vrot.slane %v1274, %v3353
    %v3355 = vsel %vm1835, %v3354, %v3350
    %v3356 = vlaneseq
    %v3357 = vshrl.u32 %v3356, 7
    %v3358 = vsub.s32 %v1837, %v3357
    %v3359 = vrot.slane %v1277, %v3358
    %v3360 = vsel %vm1842, %v3359, %v3355
    %v3361 = vlaneseq
    %v3362 = vshrl.u32 %v3361, 7
    %v3363 = vsub.s32 %v1844, %v3362
    %v3364 = vrot.slane %v1280, %v3363
    %v3365 = vsel %vm1849, %v3364, %v3360
    %v3366 = vlaneseq
    %v3367 = vshrl.u32 %v3366, 7
    %v3368 = vsub.s32 %v1851, %v3367
    %v3369 = vrot.slane %v1283, %v3368
    %v3370 = vsel %vm1856, %v3369, %v3365
    %v3371 = vlaneseq
    %v3372 = vshrl.u32 %v3371, 7
    %v3373 = vsub.s32 %v1858, %v3372
    %v3374 = vrot.slane %v1286, %v3373
    %v3375 = vsel %vm1863, %v3374, %v3370
    %v3376 = vlaneseq
    %v3377 = vshrl.u32 %v3376, 7
    %v3378 = vsub.s32 %v1865, %v3377
    %v3379 = vrot.slane %v1289, %v3378
    %v3380 = vsel %vm1870, %v3379, %v3375
    %v3381 = vlaneseq
    %v3382 = vshrl.u32 %v3381, 7
    %v3383 = vsub.s32 %v1872, %v3382
    %v3384 = vrot.slane %v1292, %v3383
    %v3385 = vsel %vm1877, %v3384, %v3380
    %v3386 = vlaneseq
    %v3387 = vshrl.u32 %v3386, 7
    %v3388 = vsub.s32 %v1879, %v3387
    %v3389 = vrot.slane %v1295, %v3388
    %v3390 = vsel %vm1884, %v3389, %v3385
    %v3391 = vlaneseq
    %v3392 = vshrl.u32 %v3391, 7
    %v3393 = vsub.s32 %v1886, %v3392
    %v3394 = vrot.slane %v1298, %v3393
    %v3395 = vsel %vm1891, %v3394, %v3390
    %v3396 = vlaneseq
    %v3397 = vshrl.u32 %v3396, 7
    %v3398 = vsub.s32 %v1893, %v3397
    %v3399 = vrot.slane %v1301, %v3398
    %v3400 = vsel %vm1898, %v3399, %v3395
    %vm3401 = vcmask 1041409
    %v3402 = vsel %vm3401, %v2689, %v1899
    %v3403 = vsel %vm3401, %v2768, %v1978
    %v3404 = vsel %vm3401, %v2847, %v2057
    %v3405 = vsel %vm3401, %v2926, %v2136
    %v3406 = vsel %vm3401, %v3005, %v2215
    %v3407 = vsel %vm3401, %v3084, %v2294
    %v3408 = vsel %vm3401, %v3163, %v2373
    %v3409 = vsel %vm3401, %v3242, %v2452
    %v3410 = vsel %vm3401, %v3321, %v2531
    %v3411 = vsel %vm3401, %v3400, %v2610
    %3422 = vmatprep.subr.mxu0 0.0
    %3423 = vmatpush1.msra.mxu0 %v1302
    %3424 = vmatprep.subr.mxu0 0.0
    %3425 = vmatpush1.msra.mxu0 %v1303
    %3426 = vmatprep.subr.mxu0 0.0
    %3427 = vmatpush1.msra.mxu0 %v1304
    %3428 = vmatprep.subr.mxu0 0.0
    %3429 = vmatpush1.msra.mxu0 %v1305
    %3430 = vmatprep.subr.mxu0 0.0
    %3431 = vmatpush1.msra.mxu0 %v1306
    %3432 = vmatprep.subr.mxu0 0.0
    %3433 = vmatpush1.msra.mxu0 %v1307
    %3434 = vmatprep.subr.mxu0 0.0
    %3435 = vmatpush1.msra.mxu0 %v1308
    %3436 = vmatprep.subr.mxu0 0.0
    %3437 = vmatpush1.msra.mxu0 %v1309
    %3438 = vmatprep.subr.mxu0 0.0
    %3439 = vmatpush1.msra.mxu0 %v1310
    %3440 = vmatprep.subr.mxu0 0.0
    %3441 = vmatpush1.msra.mxu0 %v1311
    %3442 = vmatprep.subr.mxu0 0.0
    %3443 = vmatpush1.msra.mxu0 %v1312
    %3444 = vmatprep.subr.mxu0 0.0
    %3445 = vmatpush1.msra.mxu0 %v1313
    %3446 = vmatprep.subr.mxu0 0.0
    %3447 = vmatpush1.msra.mxu0 %v1314
    %3448 = vmatprep.subr.mxu0 0.0
    %3449 = vmatpush1.msra.mxu0 %v1315
    %3450 = vmatprep.subr.mxu0 0.0
    %3451 = vmatpush1.msra.mxu0 %v1316
    %3452 = vmatprep.subr.mxu0 0.0
    %3453 = vmatpush1.msra.mxu0 %v1317
    %3454 = vmatprep.subr.mxu0 0.0
    %3455 = vmatpush1.msra.mxu0 %v1318
    %3456 = vmatprep.subr.mxu0 0.0
    %3457 = vmatpush1.msra.mxu0 %v1319
    %3458 = vmatprep.subr.mxu0 0.0
    %3459 = vmatpush1.msra.mxu0 %v1320
    %3460 = vmatprep.subr.mxu0 0.0
    %3461 = vmatpush1.msra.mxu0 %v1321
    %3462 = vmatprep.subr.mxu0 0.0
    %3463 = vmatpush1.msra.mxu0 %v1322
    %3464 = vmatprep.subr.mxu0 0.0
    %3465 = vmatpush1.msra.mxu0 %v1323
    %3466 = vmatprep.subr.mxu0 0.0
    %3467 = vmatpush1.msra.mxu0 %v1324
    %3468 = vmatprep.subr.mxu0 0.0
    %3469 = vmatpush1.msra.mxu0 %v1325
    %3470 = vmatprep.subr.mxu0 0.0
    %3471 = vmatpush1.msra.mxu0 %v1326
    %3472 = vmatprep.subr.mxu0 0.0
    %3473 = vmatpush1.msra.mxu0 %v1327
    %3474 = vmatprep.subr.mxu0 0.0
    %3475 = vmatpush1.msra.mxu0 %v1328
    %3476 = vmatprep.subr.mxu0 0.0
    %3477 = vmatpush1.msra.mxu0 %v1329
    %3478 = vmatprep.subr.mxu0 0.0
    %3479 = vmatpush1.msra.mxu0 %v1330
    %3480 = vmatprep.subr.mxu0 0.0
    %3481 = vmatpush1.msra.mxu0 %v1331
    %3482 = vmatprep.subr.mxu0 0.0
    %3483 = vmatpush1.msra.mxu0 %v1332
    %3484 = vmatprep.subr.mxu0 0.0
    %3485 = vmatpush1.msra.mxu0 %v1333
    %3486 = vmatprep.mubr.f32.mxu0 %v3403
    %3487 = vmatmul.mubr.f32.gmra.mrb[0].mxu0 %v3402
    %v3488 = vpop.f32.mrb[0].mxu0
    %v3489 = vadd.f32 %v1467, %v3488
    %v3490 = vpop.f32.mrb[0].mxu0
    %3491 = vdwg.mxu0
    %3492 = vmatprep.subr.mxu0 0.0
    %3493 = vmatpush1.msra.mxu0 %v1334
    %3494 = vmatprep.subr.mxu0 0.0
    %3495 = vmatpush1.msra.mxu0 %v1335
    %3496 = vmatprep.subr.mxu0 0.0
    %3497 = vmatpush1.msra.mxu0 %v1336
    %3498 = vmatprep.subr.mxu0 0.0
    %3499 = vmatpush1.msra.mxu0 %v1337
    %3500 = vmatprep.subr.mxu0 0.0
    %3501 = vmatpush1.msra.mxu0 %v1338
    %3502 = vmatprep.subr.mxu0 0.0
    %3503 = vmatpush1.msra.mxu0 %v1339
    %3504 = vmatprep.subr.mxu0 0.0
    %3505 = vmatpush1.msra.mxu0 %v1340
    %3506 = vmatprep.subr.mxu0 0.0
    %3507 = vmatpush1.msra.mxu0 %v1341
    %3508 = vmatprep.subr.mxu0 0.0
    %3509 = vmatpush1.msra.mxu0 %v1342
    %3510 = vmatprep.subr.mxu0 0.0
    %3511 = vmatpush1.msra.mxu0 %v1343
    %3512 = vmatprep.subr.mxu0 0.0
    %3513 = vmatpush1.msra.mxu0 %v1344
    %3514 = vmatprep.subr.mxu0 0.0
    %3515 = vmatpush1.msra.mxu0 %v1345
    %3516 = vmatprep.subr.mxu0 0.0
    %3517 = vmatpush1.msra.mxu0 %v1346
    %3518 = vmatprep.subr.mxu0 0.0
    %3519 = vmatpush1.msra.mxu0 %v1347
    %3520 = vmatprep.subr.mxu0 0.0
    %3521 = vmatpush1.msra.mxu0 %v1348
    %3522 = vmatprep.subr.mxu0 0.0
    %3523 = vmatpush1.msra.mxu0 %v1349
    %3524 = vmatprep.subr.mxu0 0.0
    %3525 = vmatpush1.msra.mxu0 %v1350
    %3526 = vmatprep.subr.mxu0 0.0
    %3527 = vmatpush1.msra.mxu0 %v1351
    %3528 = vmatprep.subr.mxu0 0.0
    %3529 = vmatpush1.msra.mxu0 %v1352
    %3530 = vmatprep.subr.mxu0 0.0
    %3531 = vmatpush1.msra.mxu0 %v1353
    %3532 = vmatprep.subr.mxu0 0.0
    %3533 = vmatpush1.msra.mxu0 %v1354
    %3534 = vmatprep.subr.mxu0 0.0
    %3535 = vmatpush1.msra.mxu0 %v1355
    %3536 = vmatprep.subr.mxu0 0.0
    %3537 = vmatpush1.msra.mxu0 %v1356
    %3538 = vmatprep.subr.mxu0 0.0
    %3539 = vmatpush1.msra.mxu0 %v1357
    %3540 = vmatprep.subr.mxu0 0.0
    %3541 = vmatpush1.msra.mxu0 %v1358
    %3542 = vmatprep.subr.mxu0 0.0
    %3543 = vmatpush1.msra.mxu0 %v1359
    %3544 = vmatprep.subr.mxu0 0.0
    %3545 = vmatpush1.msra.mxu0 %v1360
    %3546 = vmatprep.subr.mxu0 0.0
    %3547 = vmatpush1.msra.mxu0 %v1361
    %3548 = vmatprep.subr.mxu0 0.0
    %3549 = vmatpush1.msra.mxu0 %v1362
    %3550 = vmatprep.subr.mxu0 0.0
    %3551 = vmatpush1.msra.mxu0 %v1363
    %3552 = vmatprep.subr.mxu0 0.0
    %3553 = vmatpush1.msra.mxu0 %v1364
    %3554 = vmatprep.subr.mxu0 0.0
    %3555 = vmatpush1.msra.mxu0 %v1365
    %3556 = vmatprep.mubr.f32.mxu0 %v3405
    %3557 = vmatmul.mubr.f32.gmra.mrb[0].mxu0 %v3404
    %v3558 = vpop.f32.mrb[0].mxu0
    %v3559 = vadd.f32 %v3489, %v3558
    %v3560 = vpop.f32.mrb[0].mxu0
    %3561 = vdwg.mxu0
    %3562 = vmatprep.subr.mxu0 0.0
    %3563 = vmatpush1.msra.mxu0 %v1366
    %3564 = vmatprep.subr.mxu0 0.0
    %3565 = vmatpush1.msra.mxu0 %v1367
    %3566 = vmatprep.subr.mxu0 0.0
    %3567 = vmatpush1.msra.mxu0 %v1368
    %3568 = vmatprep.subr.mxu0 0.0
    %3569 = vmatpush1.msra.mxu0 %v1369
    %3570 = vmatprep.subr.mxu0 0.0
    %3571 = vmatpush1.msra.mxu0 %v1370
    %3572 = vmatprep.subr.mxu0 0.0
    %3573 = vmatpush1.msra.mxu0 %v1371
    %3574 = vmatprep.subr.mxu0 0.0
    %3575 = vmatpush1.msra.mxu0 %v1372
    %3576 = vmatprep.subr.mxu0 0.0
    %3577 = vmatpush1.msra.mxu0 %v1373
    %3578 = vmatprep.subr.mxu0 0.0
    %3579 = vmatpush1.msra.mxu0 %v1374
    %3580 = vmatprep.subr.mxu0 0.0
    %3581 = vmatpush1.msra.mxu0 %v1375
    %3582 = vmatprep.subr.mxu0 0.0
    %3583 = vmatpush1.msra.mxu0 %v1376
    %3584 = vmatprep.subr.mxu0 0.0
    %3585 = vmatpush1.msra.mxu0 %v1377
    %3586 = vmatprep.subr.mxu0 0.0
    %3587 = vmatpush1.msra.mxu0 %v1378
    %3588 = vmatprep.subr.mxu0 0.0
    %3589 = vmatpush1.msra.mxu0 %v1379
    %3590 = vmatprep.subr.mxu0 0.0
    %3591 = vmatpush1.msra.mxu0 %v1380
    %3592 = vmatprep.subr.mxu0 0.0
    %3593 = vmatpush1.msra.mxu0 %v1381
    %3594 = vmatprep.subr.mxu0 0.0
    %3595 = vmatpush1.msra.mxu0 %v1382
    %3596 = vmatprep.subr.mxu0 0.0
    %3597 = vmatpush1.msra.mxu0 %v1383
    %3598 = vmatprep.subr.mxu0 0.0
    %3599 = vmatpush1.msra.mxu0 %v1384
    %3600 = vmatprep.subr.mxu0 0.0
    %3601 = vmatpush1.msra.mxu0 %v1385
    %3602 = vmatprep.subr.mxu0 0.0
    %3603 = vmatpush1.msra.mxu0 %v1386
    %3604 = vmatprep.subr.mxu0 0.0
    %3605 = vmatpush1.msra.mxu0 %v1387
    %3606 = vmatprep.subr.mxu0 0.0
    %3607 = vmatpush1.msra.mxu0 %v1388
    %3608 = vmatprep.subr.mxu0 0.0
    %3609 = vmatpush1.msra.mxu0 %v1389
    %3610 = vmatprep.subr.mxu0 0.0
    %3611 = vmatpush1.msra.mxu0 %v1390
    %3612 = vmatprep.subr.mxu0 0.0
    %3613 = vmatpush1.msra.mxu0 %v1391
    %3614 = vmatprep.subr.mxu0 0.0
    %3615 = vmatpush1.msra.mxu0 %v1392
    %3616 = vmatprep.subr.mxu0 0.0
    %3617 = vmatpush1.msra.mxu0 %v1393
    %3618 = vmatprep.subr.mxu0 0.0
    %3619 = vmatpush1.msra.mxu0 %v1394
    %3620 = vmatprep.subr.mxu0 0.0
    %3621 = vmatpush1.msra.mxu0 %v1395
    %3622 = vmatprep.subr.mxu0 0.0
    %3623 = vmatpush1.msra.mxu0 %v1396
    %3624 = vmatprep.subr.mxu0 0.0
    %3625 = vmatpush1.msra.mxu0 %v1397
    %3626 = vmatprep.mubr.f32.mxu0 %v3407
    %3627 = vmatmul.mubr.f32.gmra.mrb[0].mxu0 %v3406
    %v3628 = vpop.f32.mrb[0].mxu0
    %v3629 = vadd.f32 %v3559, %v3628
    %v3630 = vpop.f32.mrb[0].mxu0
    %3631 = vdwg.mxu0
    %3632 = vmatprep.subr.mxu0 0.0
    %3633 = vmatpush1.msra.mxu0 %v1398
    %3634 = vmatprep.subr.mxu0 0.0
    %3635 = vmatpush1.msra.mxu0 %v1399
    %3636 = vmatprep.subr.mxu0 0.0
    %3637 = vmatpush1.msra.mxu0 %v1400
    %3638 = vmatprep.subr.mxu0 0.0
    %3639 = vmatpush1.msra.mxu0 %v1401
    %3640 = vmatprep.subr.mxu0 0.0
    %3641 = vmatpush1.msra.mxu0 %v1402
    %3642 = vmatprep.subr.mxu0 0.0
    %3643 = vmatpush1.msra.mxu0 %v1403
    %3644 = vmatprep.subr.mxu0 0.0
    %3645 = vmatpush1.msra.mxu0 %v1404
    %3646 = vmatprep.subr.mxu0 0.0
    %3647 = vmatpush1.msra.mxu0 %v1405
    %3648 = vmatprep.subr.mxu0 0.0
    %3649 = vmatpush1.msra.mxu0 %v1406
    %3650 = vmatprep.subr.mxu0 0.0
    %3651 = vmatpush1.msra.mxu0 %v1407
    %3652 = vmatprep.subr.mxu0 0.0
    %3653 = vmatpush1.msra.mxu0 %v1408
    %3654 = vmatprep.subr.mxu0 0.0
    %3655 = vmatpush1.msra.mxu0 %v1409
    %3656 = vmatprep.subr.mxu0 0.0
    %3657 = vmatpush1.msra.mxu0 %v1410
    %3658 = vmatprep.subr.mxu0 0.0
    %3659 = vmatpush1.msra.mxu0 %v1411
    %3660 = vmatprep.subr.mxu0 0.0
    %3661 = vmatpush1.msra.mxu0 %v1412
    %3662 = vmatprep.subr.mxu0 0.0
    %3663 = vmatpush1.msra.mxu0 %v1413
    %3664 = vmatprep.subr.mxu0 0.0
    %3665 = vmatpush1.msra.mxu0 %v1414
    %3666 = vmatprep.subr.mxu0 0.0
    %3667 = vmatpush1.msra.mxu0 %v1415
    %3668 = vmatprep.subr.mxu0 0.0
    %3669 = vmatpush1.msra.mxu0 %v1416
    %3670 = vmatprep.subr.mxu0 0.0
    %3671 = vmatpush1.msra.mxu0 %v1417
    %3672 = vmatprep.subr.mxu0 0.0
    %3673 = vmatpush1.msra.mxu0 %v1418
    %3674 = vmatprep.subr.mxu0 0.0
    %3675 = vmatpush1.msra.mxu0 %v1419
    %3676 = vmatprep.subr.mxu0 0.0
    %3677 = vmatpush1.msra.mxu0 %v1420
    %3678 = vmatprep.subr.mxu0 0.0
    %3679 = vmatpush1.msra.mxu0 %v1421
    %3680 = vmatprep.subr.mxu0 0.0
    %3681 = vmatpush1.msra.mxu0 %v1422
    %3682 = vmatprep.subr.mxu0 0.0
    %3683 = vmatpush1.msra.mxu0 %v1423
    %3684 = vmatprep.subr.mxu0 0.0
    %3685 = vmatpush1.msra.mxu0 %v1424
    %3686 = vmatprep.subr.mxu0 0.0
    %3687 = vmatpush1.msra.mxu0 %v1425
    %3688 = vmatprep.subr.mxu0 0.0
    %3689 = vmatpush1.msra.mxu0 %v1426
    %3690 = vmatprep.subr.mxu0 0.0
    %3691 = vmatpush1.msra.mxu0 %v1427
    %3692 = vmatprep.subr.mxu0 0.0
    %3693 = vmatpush1.msra.mxu0 %v1428
    %3694 = vmatprep.subr.mxu0 0.0
    %3695 = vmatpush1.msra.mxu0 %v1429
    %3696 = vmatprep.mubr.f32.mxu0 %v3409
    %3697 = vmatmul.mubr.f32.gmra.mrb[0].mxu0 %v3408
    %v3698 = vpop.f32.mrb[0].mxu0
    %v3699 = vadd.f32 %v3629, %v3698
    %v3700 = vpop.f32.mrb[0].mxu0
    %3701 = vdwg.mxu0
    %3702 = vmatprep.subr.mxu0 0.0
    %3703 = vmatpush1.msra.mxu0 %v1430
    %3704 = vmatprep.subr.mxu0 0.0
    %3705 = vmatpush1.msra.mxu0 %v1431
    %3706 = vmatprep.subr.mxu0 0.0
    %3707 = vmatpush1.msra.mxu0 %v1432
    %3708 = vmatprep.subr.mxu0 0.0
    %3709 = vmatpush1.msra.mxu0 %v1433
    %3710 = vmatprep.subr.mxu0 0.0
    %3711 = vmatpush1.msra.mxu0 %v1434
    %3712 = vmatprep.subr.mxu0 0.0
    %3713 = vmatpush1.msra.mxu0 %v1435
    %3714 = vmatprep.subr.mxu0 0.0
    %3715 = vmatpush1.msra.mxu0 %v1436
    %3716 = vmatprep.subr.mxu0 0.0
    %3717 = vmatpush1.msra.mxu0 %v1437
    %3718 = vmatprep.subr.mxu0 0.0
    %3719 = vmatpush1.msra.mxu0 %v1438
    %3720 = vmatprep.subr.mxu0 0.0
    %3721 = vmatpush1.msra.mxu0 %v1439
    %3722 = vmatprep.subr.mxu0 0.0
    %3723 = vmatpush1.msra.mxu0 %v1440
    %3724 = vmatprep.subr.mxu0 0.0
    %3725 = vmatpush1.msra.mxu0 %v1441
    %3726 = vmatprep.subr.mxu0 0.0
    %3727 = vmatpush1.msra.mxu0 %v1442
    %3728 = vmatprep.subr.mxu0 0.0
    %3729 = vmatpush1.msra.mxu0 %v1443
    %3730 = vmatprep.subr.mxu0 0.0
    %3731 = vmatpush1.msra.mxu0 %v1444
    %3732 = vmatprep.subr.mxu0 0.0
    %3733 = vmatpush1.msra.mxu0 %v1445
    %3734 = vmatprep.subr.mxu0 0.0
    %3735 = vmatpush1.msra.mxu0 %v1446
    %3736 = vmatprep.subr.mxu0 0.0
    %3737 = vmatpush1.msra.mxu0 %v1447
    %3738 = vmatprep.subr.mxu0 0.0
    %3739 = vmatpush1.msra.mxu0 %v1448
    %3740 = vmatprep.subr.mxu0 0.0
    %3741 = vmatpush1.msra.mxu0 %v1449
    %3742 = vmatprep.subr.mxu0 0.0
    %3743 = vmatpush1.msra.mxu0 %v1450
    %3744 = vmatprep.subr.mxu0 0.0
    %3745 = vmatpush1.msra.mxu0 %v1451
    %3746 = vmatprep.subr.mxu0 0.0
    %3747 = vmatpush1.msra.mxu0 %v1452
    %3748 = vmatprep.subr.mxu0 0.0
    %3749 = vmatpush1.msra.mxu0 %v1453
    %3750 = vmatprep.subr.mxu0 0.0
    %3751 = vmatpush1.msra.mxu0 %v1454
    %3752 = vmatprep.subr.mxu0 0.0
    %3753 = vmatpush1.msra.mxu0 %v1455
    %3754 = vmatprep.subr.mxu0 0.0
    %3755 = vmatpush1.msra.mxu0 %v1456
    %3756 = vmatprep.subr.mxu0 0.0
    %3757 = vmatpush1.msra.mxu0 %v1457
    %3758 = vmatprep.subr.mxu0 0.0
    %3759 = vmatpush1.msra.mxu0 %v1458
    %3760 = vmatprep.subr.mxu0 0.0
    %3761 = vmatpush1.msra.mxu0 %v1459
    %3762 = vmatprep.subr.mxu0 0.0
    %3763 = vmatpush1.msra.mxu0 %v1460
    %3764 = vmatprep.subr.mxu0 0.0
    %3765 = vmatpush1.msra.mxu0 %v1461
    %3766 = vmatprep.mubr.f32.mxu0 %v3411
    %3767 = vmatmul.mubr.f32.gmra.mrb[0].mxu0 %v3410
    %v3768 = vpop.f32.mrb[0].mxu0
    %v3769 = vadd.f32 %v3699, %v3768
    %v3770 = vpop.f32.mrb[0].mxu0
    %3771 = vdwg.mxu0
    %v3772 = vmax.f32 %v3769, 0.0
    %v3773 = vld [vmem:[%s3] sm:$0x1]
    %v3775 = vlaneseq
    %v3776 = vshrl.u32 %v3775, 7
    %v3777 = vsub.s32 0, %v3776
    %v3778 = vrot.slane %v3773, %v3777
    %v3780 = vmul.f32 %v3772, %v3778
    %v3781 = vld [vmem:[%s4] sm:$0x1]
    %v3783 = vlaneseq
    %v3784 = vshrl.u32 %v3783, 7
    %v3785 = vsub.s32 0, %v3784
    %v3786 = vrot.slane %v3781, %v3785
    %v3788 = vadd.f32 %v3780, %v3786
    %3789 = vst [vmem:[#allocation2] sm:$0x3] %v3788
    // Predicated region
    $region22: #{backbone_head.1} parent=1 // pred_check
      _
    $region23: #{backbone_head.1} parent=1 // pred_check_branch
      %3791 = sbr.rel (0) target = $region25
    $region24: #{backbone_head.1} parent=1 // pred_region
      %s3793 = ssub.s32 32, 32
      %3794 = vsyncadd [#allocation3], %s3793
      %s3796 = sshll.u32 [#allocation2], 4
      %s3797 = int_to_ptr.vmem [resolvable:$true] %s3796
      %3799 = dma.vmem_to_hbm [thread:$0]  %s3797, 32, %s5, [#allocation3]
    $region25: #{backbone_head.1} parent=1 // pred_fallthru
      _
    // Predicated region
    $region26: #{backbone_head.1} parent=1 // pred_check
      _
    $region27: #{backbone_head.1} parent=1 // pred_check_branch
      %3801 = sbr.rel (0) target = $region29
    $region28: #{backbone_head.1} parent=1 // pred_region
      %3802 = dma.done [#allocation3], 32
    $region29: #{backbone_head.1} parent=1 // pred_fallthru
      _
    %3803 = vsyncpa [#allocation3], 1

</llo_original>
